<compile_context>
chip_gen: v7x
topology: tpu7x:2x2x1
jax: 0.10.0
libtpu: 0.0.40
codegen_flags: <defaults>
</compile_context>

<pallas_src>
import functools

import jax
import jax.numpy as jnp
from jax.experimental import pallas as pl
from jax.experimental.pallas import tpu as pltpu  # noqa: F401

# ---- small but structurally faithful hyperparameters ----
N_EMBD = 32          # n_embd
N_HEAD = 4           # n_head  (head_size = 8)
N_LAYER = 2          # n_layer
BLOCK_SIZE = 8       # block_size (== T in this demo)
PITCH_VOCAB = 12
RHYTHM_VOCAB = 10
HEAD_PAD = 128       # merged (pitch|rhythm) head, padded to one 128-lane slab
LN_EPS = 1e-5        # torch.nn.LayerNorm default
NEG_BIG = -1e30      # finite "minus infinity" for causal masking

HID = 4 * N_EMBD                                  # 128, FFN hidden
V_TOT = PITCH_VOCAB + RHYTHM_VOCAB + BLOCK_SIZE   # 30 rows of the merged table
V_PAD = 32                                        # sublane-friendly pad
WA_COLS = 3 * N_EMBD + N_EMBD + HID               # 256: [Wqkv | Wo | W1]


def _layernorm(v, w, b):
    mu = jnp.mean(v, axis=-1, keepdims=True)
    var = jnp.mean((v - mu) ** 2, axis=-1, keepdims=True)
    return (v - mu) * jax.lax.rsqrt(var + LN_EPS) * w + b


# ----------------------------------------------------------------------------
# Fully fused forward kernel: token indices in -> logits out, one invocation.
# ----------------------------------------------------------------------------
def fused_gpt_kernel(idx_ref, emb_ref, wa_ref, w2_ref, wh_ref, vec_ref,
                     out_ref, *, batch, seq):
    B, T = batch, seq
    N = B * T
    C = N_EMBD
    H = N_HEAD
    hs = C // H

    # ---- fused embedding gather: one-hot(pitch | rhythm | pos) @ merged table
    idx = idx_ref[...]                                            # (N, 3) int32
    viota = jax.lax.broadcasted_iota(jnp.int32, (N, V_PAD), 1)
    onehot = ((viota == idx[:, 0:1]) |
              (viota == idx[:, 1:2]) |
              (viota == idx[:, 2:3])).astype(jnp.bfloat16)        # (N, V_PAD)
    x = jnp.dot(onehot, emb_ref[...],
                preferred_element_type=jnp.float32)               # (N, C) f32

    # causal mask built once, shared by all layers / heads / batch elements
    row = jax.lax.broadcasted_iota(jnp.int32, (T, T), 0)
    col = jax.lax.broadcasted_iota(jnp.int32, (T, T), 1)
    causal = (col <= row)[None, :, :]                             # (1, T, T)

    for l in range(N_LAYER):                      # static unroll over layers
        wa = wa_ref[l]                            # (C, 256) bf16
        wqkv = wa[:, 0:3 * C]                     # (C, 3C)
        wo = wa[:, 3 * C:4 * C]                   # (C, C)
        w1 = wa[:, 4 * C:4 * C + HID]             # (C, 4C)
        w2 = w2_ref[l]                            # (4C, C) bf16
        vec = vec_ref[l]                          # (3, 128) f32
        ln1w, ln1b = vec[0:1, 0:C], vec[0:1, C:2 * C]
        ln2w, ln2b = vec[0:1, 2 * C:3 * C], vec[0:1, 3 * C:4 * C]
        bo, b2 = vec[1:2, 0:C], vec[1:2, C:2 * C]
        b1 = vec[2:3, :]                          # (1, 4C)

        # ---- self-attention branch (pre-LN) ----
        # NOTE: the PyTorch Head scales scores by C**-0.5 (C = n_embd); that
        # scale is pre-folded into the Q columns of wqkv at packing time.
        x1 = _layernorm(x, ln1w, ln1b)
        qkv = jnp.dot(x1.astype(jnp.bfloat16), wqkv,
                      preferred_element_type=jnp.float32)          # (N, 3C) f32
        q = qkv[:, 0:C].astype(jnp.bfloat16).reshape(B, T, C)
        k = qkv[:, C:2 * C].astype(jnp.bfloat16).reshape(B, T, C)
        v = qkv[:, 2 * C:3 * C].astype(jnp.bfloat16).reshape(B, T, C)

        # per-head scores (batched over B), then ONE softmax chain for all heads
        s_list = [
            jnp.einsum('bqd,bkd->bqk',
                       q[:, :, h * hs:(h + 1) * hs],
                       k[:, :, h * hs:(h + 1) * hs],
                       preferred_element_type=jnp.float32)         # (B, T, T)
            for h in range(H)
        ]
        s = jnp.concatenate(s_list, axis=0)                        # (H*B, T, T)
        s = jnp.where(causal, s, NEG_BIG)
        s = s - jnp.max(s, axis=-1, keepdims=True)
        e = jnp.exp(s)
        p = (e * pl.reciprocal(jnp.sum(e, axis=-1, keepdims=True),
                               approx=True)).astype(jnp.bfloat16)

        outs = [
            jnp.einsum('bqk,bkd->bqd',
                       p[h * B:(h + 1) * B],
                       v[:, :, h * hs:(h + 1) * hs],
                       preferred_element_type=jnp.float32)         # (B, T, hs)
            for h in range(H)
        ]
        attn = jnp.concatenate(outs, axis=-1).reshape(N, C)        # (N, C) f32

        sa = jnp.dot(attn.astype(jnp.bfloat16), wo,
                     preferred_element_type=jnp.float32) + bo
        x = x + sa                                 # dropout == identity

        # ---- feed-forward branch (pre-LN) ----
        x2 = _layernorm(x, ln2w, ln2b)
        h1 = jnp.dot(x2.astype(jnp.bfloat16), w1,
                     preferred_element_type=jnp.float32) + b1
        h1 = jnp.maximum(h1, 0.0)                  # ReLU
        ff = jnp.dot(h1.astype(jnp.bfloat16), w2,
                     preferred_element_type=jnp.float32) + b2
        x = x + ff                                 # dropout == identity

    # ---- final LayerNorm + merged (lane-padded) vocab heads ----
    fvec = vec_ref[N_LAYER]                        # (3, 128) f32
    lnfw, lnfb = fvec[0:1, 0:C], fvec[0:1, C:2 * C]
    bh = fvec[1:2, :]                              # (1, 128)
    y = _layernorm(x, lnfw, lnfb)
    out_ref[...] = jnp.dot(y.astype(jnp.bfloat16), wh_ref[...],
                           preferred_element_type=jnp.float32) + bh


# ----------------------------------------------------------------------------
# Parameter construction + slab packing (deterministic, mirrors _init_weights)
# ----------------------------------------------------------------------------
def init_params(key):
    C, Hd, L = N_EMBD, HID, N_LAYER
    keys = iter(jax.random.split(key, 32))

    def nrm(shape):
        return 0.02 * jax.random.normal(next(keys), shape, dtype=jnp.float32)

    # merged embedding table: [pitch(12) | rhythm(10) | pos(8) | pad(2)] x C
    emb = jnp.zeros((V_PAD, C), jnp.float32)
    emb = emb.at[:PITCH_VOCAB].set(nrm((PITCH_VOCAB, C)))
    emb = emb.at[PITCH_VOCAB:PITCH_VOCAB + RHYTHM_VOCAB].set(nrm((RHYTHM_VOCAB, C)))
    emb = emb.at[PITCH_VOCAB + RHYTHM_VOCAB:V_TOT].set(nrm((BLOCK_SIZE, C)))

    # per-layer matmul weights packed along lanes: [Wq|Wk|Wv | Wo | W1]
    wqkv = nrm((L, C, 3 * C))
    wqkv = wqkv.at[:, :, 0:C].multiply(jnp.float32(C) ** -0.5)  # fold score scale into Wq
    wo = nrm((L, C, C))
    w1 = nrm((L, C, Hd))
    wa = jnp.concatenate([wqkv, wo, w1], axis=-1)               # (L, C, 256)
    w2 = nrm((L, Hd, C))                                        # (L, 128, 32)

    # merged pitch+rhythm head, lane-padded to HEAD_PAD columns
    wh = jnp.zeros((C, HEAD_PAD), jnp.float32)
    wh = wh.at[:, :PITCH_VOCAB].set(nrm((C, PITCH_VOCAB)))
    wh = wh.at[:, PITCH_VOCAB:PITCH_VOCAB + RHYTHM_VOCAB].set(nrm((C, RHYTHM_VOCAB)))

    # all LN params + linear biases packed into one small f32 slab:
    #   vecs[l, 0] = [ln1_w | ln1_b | ln2_w | ln2_b]
    #   vecs[l, 1] = [bo | b2 | 0...],  vecs[l, 2] = b1
    #   vecs[L, 0] = [lnf_w | lnf_b | 0...],  vecs[L, 1] = bh (pitch|rhythm pad)
    vecs = jnp.zeros((L + 1, 3, 128), jnp.float32)
    ones_c = jnp.ones((C,), jnp.float32)
    for l in range(L):
        vecs = vecs.at[l, 0, 0:C].set(ones_c)           # ln1_w = 1
        vecs = vecs.at[l, 0, 2 * C:3 * C].set(ones_c)   # ln2_w = 1
        # ln1_b, ln2_b, bo, b2, b1 zero-init (already zeros)
    vecs = vecs.at[L, 0, 0:C].set(ones_c)               # lnf_w = 1
    # lnf_b and head biases zero-init

    return {
        "emb": emb.astype(jnp.bfloat16),
        "wa": wa.astype(jnp.bfloat16),
        "w2": w2.astype(jnp.bfloat16),
        "wh": wh.astype(jnp.bfloat16),
        "vecs": vecs,                                    # keep f32 (LN / bias math)
    }


# ----------------------------------------------------------------------------
# Forward: trivial int index packing in JAX, everything else in one kernel.
# ----------------------------------------------------------------------------
@jax.jit
def specialized_gpt_forward(params, pitch_idx, rhythm_idx):
    B, T = pitch_idx.shape
    N = B * T
    pos = jnp.arange(T, dtype=jnp.int32) + (PITCH_VOCAB + RHYTHM_VOCAB)
    idx = jnp.stack(
        [pitch_idx.astype(jnp.int32).reshape(N),
         rhythm_idx.astype(jnp.int32).reshape(N) + PITCH_VOCAB,
         jnp.broadcast_to(pos, (B, T)).reshape(N)],
        axis=-1)                                               # (N, 3) int32

    kernel = functools.partial(fused_gpt_kernel, batch=B, seq=T)
    logits = pl.pallas_call(
        kernel,
        out_shape=jax.ShapeDtypeStruct((N, HEAD_PAD), jnp.float32),
    )(idx, params["emb"], params["wa"], params["w2"], params["wh"], params["vecs"])

    logits = logits.reshape(B, T, HEAD_PAD)
    logits_pitch = logits[..., :PITCH_VOCAB]
    logits_rhythm = logits[..., PITCH_VOCAB:PITCH_VOCAB + RHYTHM_VOCAB]
    return logits_pitch, logits_rhythm


if __name__ == "__main__":
    key = jax.random.PRNGKey(0)
    k_params, k_p, k_r = jax.random.split(key, 3)

    params = init_params(k_params)

    B, T = 2, BLOCK_SIZE
    pitch_idx = jax.random.randint(k_p, (B, T), 0, PITCH_VOCAB, dtype=jnp.int32)
    rhythm_idx = jax.random.randint(k_r, (B, T), 0, RHYTHM_VOCAB, dtype=jnp.int32)

    logits_pitch, logits_rhythm = specialized_gpt_forward(params, pitch_idx, rhythm_idx)
    jax.block_until_ready((logits_pitch, logits_rhythm))

    assert logits_pitch.shape == (B, T, PITCH_VOCAB)
    assert logits_rhythm.shape == (B, T, RHYTHM_VOCAB)
    assert bool(jnp.all(jnp.isfinite(logits_pitch)))
    assert bool(jnp.all(jnp.isfinite(logits_rhythm)))
    print("KERNEL_OK")
</pallas_src>

<mosaic_0001>
module attributes {stable_mosaic.version = 11 : i64} {
  func.func @fused_gpt_kernel(%arg0: memref<16x3xi32, #tpu.memory_space<vmem>>, %arg1: memref<32x32xbf16, #tpu.memory_space<vmem>>, %arg2: memref<2x32x256xbf16, #tpu.memory_space<vmem>>, %arg3: memref<2x128x32xbf16, #tpu.memory_space<vmem>>, %arg4: memref<32x128xbf16, #tpu.memory_space<vmem>>, %arg5: memref<3x3x128xf32, #tpu.memory_space<vmem>>, %arg6: memref<16x128xf32, #tpu.memory_space<vmem>>) attributes {dimension_semantics = [], scalar_prefetch = 0 : i64, scratch_operands = 0 : i64, tpu.core_type = #tpu.core_type<tc>} {
    %c0 = arith.constant 0 : index
    %c0_0 = arith.constant 0 : index
    %0 = vector.load %arg0[%c0, %c0_0] : memref<16x3xi32, #tpu.memory_space<vmem>>, vector<16x3xi32>
    %1 = tpu.iota {dimensions = array<i32: 1>} : vector<16x32xi32>
    %2 = vector.extract_strided_slice %0 {offsets = [0, 0], sizes = [16, 1], strides = [1, 1]} : vector<16x3xi32> to vector<16x1xi32>
    %3 = vector.broadcast %2 : vector<16x1xi32> to vector<16x32xi32>
    %4 = arith.cmpi eq, %1, %3 : vector<16x32xi32>
    %5 = vector.extract_strided_slice %0 {offsets = [0, 1], sizes = [16, 1], strides = [1, 1]} : vector<16x3xi32> to vector<16x1xi32>
    %6 = vector.broadcast %5 : vector<16x1xi32> to vector<16x32xi32>
    %7 = arith.cmpi eq, %1, %6 : vector<16x32xi32>
    %8 = arith.ori %4, %7 : vector<16x32xi1>
    %9 = vector.extract_strided_slice %0 {offsets = [0, 2], sizes = [16, 1], strides = [1, 1]} : vector<16x3xi32> to vector<16x1xi32>
    %10 = vector.broadcast %9 : vector<16x1xi32> to vector<16x32xi32>
    %11 = arith.cmpi eq, %1, %10 : vector<16x32xi32>
    %12 = arith.ori %8, %11 : vector<16x32xi1>
    %13 = arith.extui %12 : vector<16x32xi1> to vector<16x32xi32>
    %14 = arith.sitofp %13 : vector<16x32xi32> to vector<16x32xf32>
    %15 = arith.truncf %14 : vector<16x32xf32> to vector<16x32xbf16>
    %c0_1 = arith.constant 0 : index
    %c0_2 = arith.constant 0 : index
    %16 = vector.load %arg1[%c0_1, %c0_2] : memref<32x32xbf16, #tpu.memory_space<vmem>>, vector<32x32xbf16>
    %cst = arith.constant dense<0.000000e+00> : vector<16x32xf32>
    %17 = tpu.matmul %15, %16, %cst {dimension_numbers = #tpu.dot_dimension_numbers<[1], [0], [0], [1], [0, 0, 1, 1], [], []>} : vector<16x32xbf16>, vector<32x32xbf16>, vector<16x32xf32> -> vector<16x32xf32>
    %18 = tpu.iota {dimensions = array<i32: 0>} : vector<8x8xi32>
    %19 = tpu.iota {dimensions = array<i32: 1>} : vector<8x8xi32>
    %20 = arith.cmpi sle, %19, %18 : vector<8x8xi32>
    %21 = vector.shape_cast %20 : vector<8x8xi1> to vector<1x8x8xi1>
    %c0_3 = arith.constant 0 : index
    %c0_4 = arith.constant 0 : index
    %c0_5 = arith.constant 0 : index
    %22 = vector.load %arg2[%c0_3, %c0_4, %c0_5] : memref<2x32x256xbf16, #tpu.memory_space<vmem>>, vector<1x32x256xbf16>
    %23 = vector.shape_cast %22 : vector<1x32x256xbf16> to vector<32x256xbf16>
    %24 = vector.extract_strided_slice %23 {offsets = [0, 0], sizes = [32, 96], strides = [1, 1]} : vector<32x256xbf16> to vector<32x96xbf16>
    %25 = vector.extract_strided_slice %23 {offsets = [0, 96], sizes = [32, 32], strides = [1, 1]} : vector<32x256xbf16> to vector<32x32xbf16>
    %26 = vector.extract_strided_slice %23 {offsets = [0, 128], sizes = [32, 128], strides = [1, 1]} : vector<32x256xbf16> to vector<32x128xbf16>
    %c0_6 = arith.constant 0 : index
    %c0_7 = arith.constant 0 : index
    %c0_8 = arith.constant 0 : index
    %27 = vector.load %arg3[%c0_6, %c0_7, %c0_8] : memref<2x128x32xbf16, #tpu.memory_space<vmem>>, vector<1x128x32xbf16>
    %28 = vector.shape_cast %27 : vector<1x128x32xbf16> to vector<128x32xbf16>
    %c0_9 = arith.constant 0 : index
    %c0_10 = arith.constant 0 : index
    %c0_11 = arith.constant 0 : index
    %29 = vector.load %arg5[%c0_9, %c0_10, %c0_11] : memref<3x3x128xf32, #tpu.memory_space<vmem>>, vector<1x3x128xf32>
    %30 = vector.shape_cast %29 : vector<1x3x128xf32> to vector<3x128xf32>
    %31 = vector.extract_strided_slice %30 {offsets = [0, 0], sizes = [1, 32], strides = [1, 1]} : vector<3x128xf32> to vector<1x32xf32>
    %32 = vector.extract_strided_slice %30 {offsets = [0, 32], sizes = [1, 32], strides = [1, 1]} : vector<3x128xf32> to vector<1x32xf32>
    %33 = vector.extract_strided_slice %30 {offsets = [0, 64], sizes = [1, 32], strides = [1, 1]} : vector<3x128xf32> to vector<1x32xf32>
    %34 = vector.extract_strided_slice %30 {offsets = [0, 96], sizes = [1, 32], strides = [1, 1]} : vector<3x128xf32> to vector<1x32xf32>
    %35 = vector.extract_strided_slice %30 {offsets = [1, 0], sizes = [1, 32], strides = [1, 1]} : vector<3x128xf32> to vector<1x32xf32>
    %36 = vector.extract_strided_slice %30 {offsets = [1, 32], sizes = [1, 32], strides = [1, 1]} : vector<3x128xf32> to vector<1x32xf32>
    %37 = vector.extract_strided_slice %30 {offsets = [2, 0], sizes = [1, 128], strides = [1, 1]} : vector<3x128xf32> to vector<1x128xf32>
    %cst_12 = arith.constant dense<0.000000e+00> : vector<16xf32>
    %38 = vector.multi_reduction <add>, %17, %cst_12 [1] : vector<16x32xf32> to vector<16xf32>
    %39 = vector.shape_cast %38 : vector<16xf32> to vector<16x1xf32>
    %cst_13 = arith.constant 3.200000e+01 : f32
    %40 = vector.broadcast %cst_13 : f32 to vector<16x1xf32>
    %41 = arith.divf %39, %40 : vector<16x1xf32>
    %42 = vector.broadcast %41 : vector<16x1xf32> to vector<16x32xf32>
    %43 = arith.subf %17, %42 : vector<16x32xf32>
    %44 = arith.mulf %43, %43 : vector<16x32xf32>
    %cst_14 = arith.constant dense<0.000000e+00> : vector<16xf32>
    %45 = vector.multi_reduction <add>, %44, %cst_14 [1] : vector<16x32xf32> to vector<16xf32>
    %46 = vector.shape_cast %45 : vector<16xf32> to vector<16x1xf32>
    %cst_15 = arith.constant 3.200000e+01 : f32
    %47 = vector.broadcast %cst_15 : f32 to vector<16x1xf32>
    %48 = arith.divf %46, %47 : vector<16x1xf32>
    %49 = vector.broadcast %41 : vector<16x1xf32> to vector<16x32xf32>
    %50 = arith.subf %17, %49 : vector<16x32xf32>
    %cst_16 = arith.constant 9.99999974E-6 : f32
    %51 = vector.broadcast %cst_16 : f32 to vector<16x1xf32>
    %52 = arith.addf %48, %51 : vector<16x1xf32>
    %53 = math.rsqrt %52 : vector<16x1xf32>
    %54 = vector.broadcast %53 : vector<16x1xf32> to vector<16x32xf32>
    %55 = arith.mulf %50, %54 : vector<16x32xf32>
    %56 = vector.broadcast %31 : vector<1x32xf32> to vector<16x32xf32>
    %57 = arith.mulf %55, %56 : vector<16x32xf32>
    %58 = vector.broadcast %32 : vector<1x32xf32> to vector<16x32xf32>
    %59 = arith.addf %57, %58 : vector<16x32xf32>
    %60 = arith.truncf %59 : vector<16x32xf32> to vector<16x32xbf16>
    %cst_17 = arith.constant dense<0.000000e+00> : vector<16x96xf32>
    %61 = tpu.matmul %60, %24, %cst_17 {dimension_numbers = #tpu.dot_dimension_numbers<[1], [0], [0], [1], [0, 0, 1, 1], [], []>} : vector<16x32xbf16>, vector<32x96xbf16>, vector<16x96xf32> -> vector<16x96xf32>
    %62 = vector.extract_strided_slice %61 {offsets = [0, 0], sizes = [16, 32], strides = [1, 1]} : vector<16x96xf32> to vector<16x32xf32>
    %63 = arith.truncf %62 : vector<16x32xf32> to vector<16x32xbf16>
    %64 = vector.shape_cast %63 : vector<16x32xbf16> to vector<2x8x32xbf16>
    %65 = vector.extract_strided_slice %61 {offsets = [0, 32], sizes = [16, 32], strides = [1, 1]} : vector<16x96xf32> to vector<16x32xf32>
    %66 = arith.truncf %65 : vector<16x32xf32> to vector<16x32xbf16>
    %67 = vector.shape_cast %66 : vector<16x32xbf16> to vector<2x8x32xbf16>
    %68 = vector.extract_strided_slice %61 {offsets = [0, 64], sizes = [16, 32], strides = [1, 1]} : vector<16x96xf32> to vector<16x32xf32>
    %69 = arith.truncf %68 : vector<16x32xf32> to vector<16x32xbf16>
    %70 = vector.shape_cast %69 : vector<16x32xbf16> to vector<2x8x32xbf16>
    %71 = vector.extract_strided_slice %64 {offsets = [0, 0, 0], sizes = [2, 8, 8], strides = [1, 1, 1]} : vector<2x8x32xbf16> to vector<2x8x8xbf16>
    %72 = vector.extract_strided_slice %67 {offsets = [0, 0, 0], sizes = [2, 8, 8], strides = [1, 1, 1]} : vector<2x8x32xbf16> to vector<2x8x8xbf16>
    "tpu.trace_start"() <{level = 10 : i32, message = "bqd,bkd->bqk"}> : () -> ()
    %cst_18 = arith.constant dense<0.000000e+00> : vector<2x8x8xf32>
    %73 = tpu.matmul %71, %72, %cst_18 {dimension_numbers = #tpu.dot_dimension_numbers<[2], [2], [1], [1], [0, 0, 0, 1, 1, 1], [0], [0]>} : vector<2x8x8xbf16>, vector<2x8x8xbf16>, vector<2x8x8xf32> -> vector<2x8x8xf32>
    "tpu.trace_stop"() : () -> ()
    %74 = vector.extract_strided_slice %64 {offsets = [0, 0, 8], sizes = [2, 8, 8], strides = [1, 1, 1]} : vector<2x8x32xbf16> to vector<2x8x8xbf16>
    %75 = vector.extract_strided_slice %67 {offsets = [0, 0, 8], sizes = [2, 8, 8], strides = [1, 1, 1]} : vector<2x8x32xbf16> to vector<2x8x8xbf16>
    "tpu.trace_start"() <{level = 10 : i32, message = "bqd,bkd->bqk"}> : () -> ()
    %cst_19 = arith.constant dense<0.000000e+00> : vector<2x8x8xf32>
    %76 = tpu.matmul %74, %75, %cst_19 {dimension_numbers = #tpu.dot_dimension_numbers<[2], [2], [1], [1], [0, 0, 0, 1, 1, 1], [0], [0]>} : vector<2x8x8xbf16>, vector<2x8x8xbf16>, vector<2x8x8xf32> -> vector<2x8x8xf32>
    "tpu.trace_stop"() : () -> ()
    %77 = vector.extract_strided_slice %64 {offsets = [0, 0, 16], sizes = [2, 8, 8], strides = [1, 1, 1]} : vector<2x8x32xbf16> to vector<2x8x8xbf16>
    %78 = vector.extract_strided_slice %67 {offsets = [0, 0, 16], sizes = [2, 8, 8], strides = [1, 1, 1]} : vector<2x8x32xbf16> to vector<2x8x8xbf16>
    "tpu.trace_start"() <{level = 10 : i32, message = "bqd,bkd->bqk"}> : () -> ()
    %cst_20 = arith.constant dense<0.000000e+00> : vector<2x8x8xf32>
    %79 = tpu.matmul %77, %78, %cst_20 {dimension_numbers = #tpu.dot_dimension_numbers<[2], [2], [1], [1], [0, 0, 0, 1, 1, 1], [0], [0]>} : vector<2x8x8xbf16>, vector<2x8x8xbf16>, vector<2x8x8xf32> -> vector<2x8x8xf32>
    "tpu.trace_stop"() : () -> ()
    %80 = vector.extract_strided_slice %64 {offsets = [0, 0, 24], sizes = [2, 8, 8], strides = [1, 1, 1]} : vector<2x8x32xbf16> to vector<2x8x8xbf16>
    %81 = vector.extract_strided_slice %67 {offsets = [0, 0, 24], sizes = [2, 8, 8], strides = [1, 1, 1]} : vector<2x8x32xbf16> to vector<2x8x8xbf16>
    "tpu.trace_start"() <{level = 10 : i32, message = "bqd,bkd->bqk"}> : () -> ()
    %cst_21 = arith.constant dense<0.000000e+00> : vector<2x8x8xf32>
    %82 = tpu.matmul %80, %81, %cst_21 {dimension_numbers = #tpu.dot_dimension_numbers<[2], [2], [1], [1], [0, 0, 0, 1, 1, 1], [0], [0]>} : vector<2x8x8xbf16>, vector<2x8x8xbf16>, vector<2x8x8xf32> -> vector<2x8x8xf32>
    "tpu.trace_stop"() : () -> ()
    %83 = tpu.concatenate %73, %76, %79, %82 in 0 : vector<2x8x8xf32>, vector<2x8x8xf32>, vector<2x8x8xf32>, vector<2x8x8xf32> -> vector<8x8x8xf32>
    %cst_22 = arith.constant -1.000000e+30 : f32
    %84 = vector.shape_cast %21 : vector<1x8x8xi1> to vector<1x8x8xi1>
    %85 = vector.broadcast %84 : vector<1x8x8xi1> to vector<8x8x8xi1>
    %86 = vector.broadcast %cst_22 : f32 to vector<8x8x8xf32>
    %87 = arith.select %85, %83, %86 : vector<8x8x8xi1>, vector<8x8x8xf32>
    %cst_23 = arith.constant dense<0xFF800000> : vector<8x8xf32>
    %88 = vector.multi_reduction <maximumf>, %87, %cst_23 [2] : vector<8x8x8xf32> to vector<8x8xf32>
    %89 = vector.shape_cast %88 : vector<8x8xf32> to vector<8x8x1xf32>
    %90 = vector.broadcast %89 : vector<8x8x1xf32> to vector<8x8x8xf32>
    %91 = arith.subf %87, %90 : vector<8x8x8xf32>
    %92 = math.exp %91 : vector<8x8x8xf32>
    %cst_24 = arith.constant dense<0.000000e+00> : vector<8x8xf32>
    %93 = vector.multi_reduction <add>, %92, %cst_24 [2] : vector<8x8x8xf32> to vector<8x8xf32>
    %94 = vector.shape_cast %93 : vector<8x8xf32> to vector<8x8x1xf32>
    %95 = tpu.reciprocal %94 {approx = true} : vector<8x8x1xf32> -> vector<8x8x1xf32>
    %96 = vector.broadcast %95 : vector<8x8x1xf32> to vector<8x8x8xf32>
    %97 = arith.mulf %92, %96 : vector<8x8x8xf32>
    %98 = arith.truncf %97 : vector<8x8x8xf32> to vector<8x8x8xbf16>
    %99 = vector.extract_strided_slice %98 {offsets = [0, 0, 0], sizes = [2, 8, 8], strides = [1, 1, 1]} : vector<8x8x8xbf16> to vector<2x8x8xbf16>
    %100 = vector.extract_strided_slice %70 {offsets = [0, 0, 0], sizes = [2, 8, 8], strides = [1, 1, 1]} : vector<2x8x32xbf16> to vector<2x8x8xbf16>
    "tpu.trace_start"() <{level = 10 : i32, message = "bqk,bkd->bqd"}> : () -> ()
    %cst_25 = arith.constant dense<0.000000e+00> : vector<2x8x8xf32>
    %101 = tpu.matmul %99, %100, %cst_25 {dimension_numbers = #tpu.dot_dimension_numbers<[2], [1], [1], [2], [0, 0, 0, 1, 1, 2], [0], [0]>} : vector<2x8x8xbf16>, vector<2x8x8xbf16>, vector<2x8x8xf32> -> vector<2x8x8xf32>
    "tpu.trace_stop"() : () -> ()
    %102 = vector.extract_strided_slice %98 {offsets = [2, 0, 0], sizes = [2, 8, 8], strides = [1, 1, 1]} : vector<8x8x8xbf16> to vector<2x8x8xbf16>
    %103 = vector.extract_strided_slice %70 {offsets = [0, 0, 8], sizes = [2, 8, 8], strides = [1, 1, 1]} : vector<2x8x32xbf16> to vector<2x8x8xbf16>
    "tpu.trace_start"() <{level = 10 : i32, message = "bqk,bkd->bqd"}> : () -> ()
    %cst_26 = arith.constant dense<0.000000e+00> : vector<2x8x8xf32>
    %104 = tpu.matmul %102, %103, %cst_26 {dimension_numbers = #tpu.dot_dimension_numbers<[2], [1], [1], [2], [0, 0, 0, 1, 1, 2], [0], [0]>} : vector<2x8x8xbf16>, vector<2x8x8xbf16>, vector<2x8x8xf32> -> vector<2x8x8xf32>
    "tpu.trace_stop"() : () -> ()
    %105 = vector.extract_strided_slice %98 {offsets = [4, 0, 0], sizes = [2, 8, 8], strides = [1, 1, 1]} : vector<8x8x8xbf16> to vector<2x8x8xbf16>
    %106 = vector.extract_strided_slice %70 {offsets = [0, 0, 16], sizes = [2, 8, 8], strides = [1, 1, 1]} : vector<2x8x32xbf16> to vector<2x8x8xbf16>
    "tpu.trace_start"() <{level = 10 : i32, message = "bqk,bkd->bqd"}> : () -> ()
    %cst_27 = arith.constant dense<0.000000e+00> : vector<2x8x8xf32>
    %107 = tpu.matmul %105, %106, %cst_27 {dimension_numbers = #tpu.dot_dimension_numbers<[2], [1], [1], [2], [0, 0, 0, 1, 1, 2], [0], [0]>} : vector<2x8x8xbf16>, vector<2x8x8xbf16>, vector<2x8x8xf32> -> vector<2x8x8xf32>
    "tpu.trace_stop"() : () -> ()
    %108 = vector.extract_strided_slice %98 {offsets = [6, 0, 0], sizes = [2, 8, 8], strides = [1, 1, 1]} : vector<8x8x8xbf16> to vector<2x8x8xbf16>
    %109 = vector.extract_strided_slice %70 {offsets = [0, 0, 24], sizes = [2, 8, 8], strides = [1, 1, 1]} : vector<2x8x32xbf16> to vector<2x8x8xbf16>
    "tpu.trace_start"() <{level = 10 : i32, message = "bqk,bkd->bqd"}> : () -> ()
    %cst_28 = arith.constant dense<0.000000e+00> : vector<2x8x8xf32>
    %110 = tpu.matmul %108, %109, %cst_28 {dimension_numbers = #tpu.dot_dimension_numbers<[2], [1], [1], [2], [0, 0, 0, 1, 1, 2], [0], [0]>} : vector<2x8x8xbf16>, vector<2x8x8xbf16>, vector<2x8x8xf32> -> vector<2x8x8xf32>
    "tpu.trace_stop"() : () -> ()
    %111 = tpu.concatenate %101, %104, %107, %110 in 2 : vector<2x8x8xf32>, vector<2x8x8xf32>, vector<2x8x8xf32>, vector<2x8x8xf32> -> vector<2x8x32xf32>
    %112 = vector.shape_cast %111 : vector<2x8x32xf32> to vector<16x32xf32>
    %113 = arith.truncf %112 : vector<16x32xf32> to vector<16x32xbf16>
    %cst_29 = arith.constant dense<0.000000e+00> : vector<16x32xf32>
    %114 = tpu.matmul %113, %25, %cst_29 {dimension_numbers = #tpu.dot_dimension_numbers<[1], [0], [0], [1], [0, 0, 1, 1], [], []>} : vector<16x32xbf16>, vector<32x32xbf16>, vector<16x32xf32> -> vector<16x32xf32>
    %115 = vector.broadcast %35 : vector<1x32xf32> to vector<16x32xf32>
    %116 = arith.addf %114, %115 : vector<16x32xf32>
    %117 = arith.addf %17, %116 : vector<16x32xf32>
    %cst_30 = arith.constant dense<0.000000e+00> : vector<16xf32>
    %118 = vector.multi_reduction <add>, %117, %cst_30 [1] : vector<16x32xf32> to vector<16xf32>
    %119 = vector.shape_cast %118 : vector<16xf32> to vector<16x1xf32>
    %cst_31 = arith.constant 3.200000e+01 : f32
    %120 = vector.broadcast %cst_31 : f32 to vector<16x1xf32>
    %121 = arith.divf %119, %120 : vector<16x1xf32>
    %122 = vector.broadcast %121 : vector<16x1xf32> to vector<16x32xf32>
    %123 = arith.subf %117, %122 : vector<16x32xf32>
    %124 = arith.mulf %123, %123 : vector<16x32xf32>
    %cst_32 = arith.constant dense<0.000000e+00> : vector<16xf32>
    %125 = vector.multi_reduction <add>, %124, %cst_32 [1] : vector<16x32xf32> to vector<16xf32>
    %126 = vector.shape_cast %125 : vector<16xf32> to vector<16x1xf32>
    %cst_33 = arith.constant 3.200000e+01 : f32
    %127 = vector.broadcast %cst_33 : f32 to vector<16x1xf32>
    %128 = arith.divf %126, %127 : vector<16x1xf32>
    %129 = vector.broadcast %121 : vector<16x1xf32> to vector<16x32xf32>
    %130 = arith.subf %117, %129 : vector<16x32xf32>
    %cst_34 = arith.constant 9.99999974E-6 : f32
    %131 = vector.broadcast %cst_34 : f32 to vector<16x1xf32>
    %132 = arith.addf %128, %131 : vector<16x1xf32>
    %133 = math.rsqrt %132 : vector<16x1xf32>
    %134 = vector.broadcast %133 : vector<16x1xf32> to vector<16x32xf32>
    %135 = arith.mulf %130, %134 : vector<16x32xf32>
    %136 = vector.broadcast %33 : vector<1x32xf32> to vector<16x32xf32>
    %137 = arith.mulf %135, %136 : vector<16x32xf32>
    %138 = vector.broadcast %34 : vector<1x32xf32> to vector<16x32xf32>
    %139 = arith.addf %137, %138 : vector<16x32xf32>
    %140 = arith.truncf %139 : vector<16x32xf32> to vector<16x32xbf16>
    %cst_35 = arith.constant dense<0.000000e+00> : vector<16x128xf32>
    %141 = tpu.matmul %140, %26, %cst_35 {dimension_numbers = #tpu.dot_dimension_numbers<[1], [0], [0], [1], [0, 0, 1, 1], [], []>} : vector<16x32xbf16>, vector<32x128xbf16>, vector<16x128xf32> -> vector<16x128xf32>
    %142 = vector.broadcast %37 : vector<1x128xf32> to vector<16x128xf32>
    %143 = arith.addf %141, %142 : vector<16x128xf32>
    %cst_36 = arith.constant 0.000000e+00 : f32
    %144 = vector.broadcast %cst_36 : f32 to vector<16x128xf32>
    %145 = arith.maximumf %143, %144 : vector<16x128xf32>
    %146 = arith.truncf %145 : vector<16x128xf32> to vector<16x128xbf16>
    %cst_37 = arith.constant dense<0.000000e+00> : vector<16x32xf32>
    %147 = tpu.matmul %146, %28, %cst_37 {dimension_numbers = #tpu.dot_dimension_numbers<[1], [0], [0], [1], [0, 0, 1, 1], [], []>} : vector<16x128xbf16>, vector<128x32xbf16>, vector<16x32xf32> -> vector<16x32xf32>
    %148 = vector.broadcast %36 : vector<1x32xf32> to vector<16x32xf32>
    %149 = arith.addf %147, %148 : vector<16x32xf32>
    %150 = arith.addf %117, %149 : vector<16x32xf32>
    %c1 = arith.constant 1 : index
    %c0_38 = arith.constant 0 : index
    %c0_39 = arith.constant 0 : index
    %151 = vector.load %arg2[%c1, %c0_38, %c0_39] : memref<2x32x256xbf16, #tpu.memory_space<vmem>>, vector<1x32x256xbf16>
    %152 = vector.shape_cast %151 : vector<1x32x256xbf16> to vector<32x256xbf16>
    %153 = vector.extract_strided_slice %152 {offsets = [0, 0], sizes = [32, 96], strides = [1, 1]} : vector<32x256xbf16> to vector<32x96xbf16>
    %154 = vector.extract_strided_slice %152 {offsets = [0, 96], sizes = [32, 32], strides = [1, 1]} : vector<32x256xbf16> to vector<32x32xbf16>
    %155 = vector.extract_strided_slice %152 {offsets = [0, 128], sizes = [32, 128], strides = [1, 1]} : vector<32x256xbf16> to vector<32x128xbf16>
    %c1_40 = arith.constant 1 : index
    %c0_41 = arith.constant 0 : index
    %c0_42 = arith.constant 0 : index
    %156 = vector.load %arg3[%c1_40, %c0_41, %c0_42] : memref<2x128x32xbf16, #tpu.memory_space<vmem>>, vector<1x128x32xbf16>
    %157 = vector.shape_cast %156 : vector<1x128x32xbf16> to vector<128x32xbf16>
    %c1_43 = arith.constant 1 : index
    %c0_44 = arith.constant 0 : index
    %c0_45 = arith.constant 0 : index
    %158 = vector.load %arg5[%c1_43, %c0_44, %c0_45] : memref<3x3x128xf32, #tpu.memory_space<vmem>>, vector<1x3x128xf32>
    %159 = vector.shape_cast %158 : vector<1x3x128xf32> to vector<3x128xf32>
    %160 = vector.extract_strided_slice %159 {offsets = [0, 0], sizes = [1, 32], strides = [1, 1]} : vector<3x128xf32> to vector<1x32xf32>
    %161 = vector.extract_strided_slice %159 {offsets = [0, 32], sizes = [1, 32], strides = [1, 1]} : vector<3x128xf32> to vector<1x32xf32>
    %162 = vector.extract_strided_slice %159 {offsets = [0, 64], sizes = [1, 32], strides = [1, 1]} : vector<3x128xf32> to vector<1x32xf32>
    %163 = vector.extract_strided_slice %159 {offsets = [0, 96], sizes = [1, 32], strides = [1, 1]} : vector<3x128xf32> to vector<1x32xf32>
    %164 = vector.extract_strided_slice %159 {offsets = [1, 0], sizes = [1, 32], strides = [1, 1]} : vector<3x128xf32> to vector<1x32xf32>
    %165 = vector.extract_strided_slice %159 {offsets = [1, 32], sizes = [1, 32], strides = [1, 1]} : vector<3x128xf32> to vector<1x32xf32>
    %166 = vector.extract_strided_slice %159 {offsets = [2, 0], sizes = [1, 128], strides = [1, 1]} : vector<3x128xf32> to vector<1x128xf32>
    %cst_46 = arith.constant dense<0.000000e+00> : vector<16xf32>
    %167 = vector.multi_reduction <add>, %150, %cst_46 [1] : vector<16x32xf32> to vector<16xf32>
    %168 = vector.shape_cast %167 : vector<16xf32> to vector<16x1xf32>
    %cst_47 = arith.constant 3.200000e+01 : f32
    %169 = vector.broadcast %cst_47 : f32 to vector<16x1xf32>
    %170 = arith.divf %168, %169 : vector<16x1xf32>
    %171 = vector.broadcast %170 : vector<16x1xf32> to vector<16x32xf32>
    %172 = arith.subf %150, %171 : vector<16x32xf32>
    %173 = arith.mulf %172, %172 : vector<16x32xf32>
    %cst_48 = arith.constant dense<0.000000e+00> : vector<16xf32>
    %174 = vector.multi_reduction <add>, %173, %cst_48 [1] : vector<16x32xf32> to vector<16xf32>
    %175 = vector.shape_cast %174 : vector<16xf32> to vector<16x1xf32>
    %cst_49 = arith.constant 3.200000e+01 : f32
    %176 = vector.broadcast %cst_49 : f32 to vector<16x1xf32>
    %177 = arith.divf %175, %176 : vector<16x1xf32>
    %178 = vector.broadcast %170 : vector<16x1xf32> to vector<16x32xf32>
    %179 = arith.subf %150, %178 : vector<16x32xf32>
    %cst_50 = arith.constant 9.99999974E-6 : f32
    %180 = vector.broadcast %cst_50 : f32 to vector<16x1xf32>
    %181 = arith.addf %177, %180 : vector<16x1xf32>
    %182 = math.rsqrt %181 : vector<16x1xf32>
    %183 = vector.broadcast %182 : vector<16x1xf32> to vector<16x32xf32>
    %184 = arith.mulf %179, %183 : vector<16x32xf32>
    %185 = vector.broadcast %160 : vector<1x32xf32> to vector<16x32xf32>
    %186 = arith.mulf %184, %185 : vector<16x32xf32>
    %187 = vector.broadcast %161 : vector<1x32xf32> to vector<16x32xf32>
    %188 = arith.addf %186, %187 : vector<16x32xf32>
    %189 = arith.truncf %188 : vector<16x32xf32> to vector<16x32xbf16>
    %cst_51 = arith.constant dense<0.000000e+00> : vector<16x96xf32>
    %190 = tpu.matmul %189, %153, %cst_51 {dimension_numbers = #tpu.dot_dimension_numbers<[1], [0], [0], [1], [0, 0, 1, 1], [], []>} : vector<16x32xbf16>, vector<32x96xbf16>, vector<16x96xf32> -> vector<16x96xf32>
    %191 = vector.extract_strided_slice %190 {offsets = [0, 0], sizes = [16, 32], strides = [1, 1]} : vector<16x96xf32> to vector<16x32xf32>
    %192 = arith.truncf %191 : vector<16x32xf32> to vector<16x32xbf16>
    %193 = vector.shape_cast %192 : vector<16x32xbf16> to vector<2x8x32xbf16>
    %194 = vector.extract_strided_slice %190 {offsets = [0, 32], sizes = [16, 32], strides = [1, 1]} : vector<16x96xf32> to vector<16x32xf32>
    %195 = arith.truncf %194 : vector<16x32xf32> to vector<16x32xbf16>
    %196 = vector.shape_cast %195 : vector<16x32xbf16> to vector<2x8x32xbf16>
    %197 = vector.extract_strided_slice %190 {offsets = [0, 64], sizes = [16, 32], strides = [1, 1]} : vector<16x96xf32> to vector<16x32xf32>
    %198 = arith.truncf %197 : vector<16x32xf32> to vector<16x32xbf16>
    %199 = vector.shape_cast %198 : vector<16x32xbf16> to vector<2x8x32xbf16>
    %200 = vector.extract_strided_slice %193 {offsets = [0, 0, 0], sizes = [2, 8, 8], strides = [1, 1, 1]} : vector<2x8x32xbf16> to vector<2x8x8xbf16>
    %201 = vector.extract_strided_slice %196 {offsets = [0, 0, 0], sizes = [2, 8, 8], strides = [1, 1, 1]} : vector<2x8x32xbf16> to vector<2x8x8xbf16>
    "tpu.trace_start"() <{level = 10 : i32, message = "bqd,bkd->bqk"}> : () -> ()
    %cst_52 = arith.constant dense<0.000000e+00> : vector<2x8x8xf32>
    %202 = tpu.matmul %200, %201, %cst_52 {dimension_numbers = #tpu.dot_dimension_numbers<[2], [2], [1], [1], [0, 0, 0, 1, 1, 1], [0], [0]>} : vector<2x8x8xbf16>, vector<2x8x8xbf16>, vector<2x8x8xf32> -> vector<2x8x8xf32>
    "tpu.trace_stop"() : () -> ()
    %203 = vector.extract_strided_slice %193 {offsets = [0, 0, 8], sizes = [2, 8, 8], strides = [1, 1, 1]} : vector<2x8x32xbf16> to vector<2x8x8xbf16>
    %204 = vector.extract_strided_slice %196 {offsets = [0, 0, 8], sizes = [2, 8, 8], strides = [1, 1, 1]} : vector<2x8x32xbf16> to vector<2x8x8xbf16>
    "tpu.trace_start"() <{level = 10 : i32, message = "bqd,bkd->bqk"}> : () -> ()
    %cst_53 = arith.constant dense<0.000000e+00> : vector<2x8x8xf32>
    %205 = tpu.matmul %203, %204, %cst_53 {dimension_numbers = #tpu.dot_dimension_numbers<[2], [2], [1], [1], [0, 0, 0, 1, 1, 1], [0], [0]>} : vector<2x8x8xbf16>, vector<2x8x8xbf16>, vector<2x8x8xf32> -> vector<2x8x8xf32>
    "tpu.trace_stop"() : () -> ()
    %206 = vector.extract_strided_slice %193 {offsets = [0, 0, 16], sizes = [2, 8, 8], strides = [1, 1, 1]} : vector<2x8x32xbf16> to vector<2x8x8xbf16>
    %207 = vector.extract_strided_slice %196 {offsets = [0, 0, 16], sizes = [2, 8, 8], strides = [1, 1, 1]} : vector<2x8x32xbf16> to vector<2x8x8xbf16>
    "tpu.trace_start"() <{level = 10 : i32, message = "bqd,bkd->bqk"}> : () -> ()
    %cst_54 = arith.constant dense<0.000000e+00> : vector<2x8x8xf32>
    %208 = tpu.matmul %206, %207, %cst_54 {dimension_numbers = #tpu.dot_dimension_numbers<[2], [2], [1], [1], [0, 0, 0, 1, 1, 1], [0], [0]>} : vector<2x8x8xbf16>, vector<2x8x8xbf16>, vector<2x8x8xf32> -> vector<2x8x8xf32>
    "tpu.trace_stop"() : () -> ()
    %209 = vector.extract_strided_slice %193 {offsets = [0, 0, 24], sizes = [2, 8, 8], strides = [1, 1, 1]} : vector<2x8x32xbf16> to vector<2x8x8xbf16>
    %210 = vector.extract_strided_slice %196 {offsets = [0, 0, 24], sizes = [2, 8, 8], strides = [1, 1, 1]} : vector<2x8x32xbf16> to vector<2x8x8xbf16>
    "tpu.trace_start"() <{level = 10 : i32, message = "bqd,bkd->bqk"}> : () -> ()
    %cst_55 = arith.constant dense<0.000000e+00> : vector<2x8x8xf32>
    %211 = tpu.matmul %209, %210, %cst_55 {dimension_numbers = #tpu.dot_dimension_numbers<[2], [2], [1], [1], [0, 0, 0, 1, 1, 1], [0], [0]>} : vector<2x8x8xbf16>, vector<2x8x8xbf16>, vector<2x8x8xf32> -> vector<2x8x8xf32>
    "tpu.trace_stop"() : () -> ()
    %212 = tpu.concatenate %202, %205, %208, %211 in 0 : vector<2x8x8xf32>, vector<2x8x8xf32>, vector<2x8x8xf32>, vector<2x8x8xf32> -> vector<8x8x8xf32>
    %cst_56 = arith.constant -1.000000e+30 : f32
    %213 = vector.shape_cast %21 : vector<1x8x8xi1> to vector<1x8x8xi1>
    %214 = vector.broadcast %213 : vector<1x8x8xi1> to vector<8x8x8xi1>
    %215 = vector.broadcast %cst_56 : f32 to vector<8x8x8xf32>
    %216 = arith.select %214, %212, %215 : vector<8x8x8xi1>, vector<8x8x8xf32>
    %cst_57 = arith.constant dense<0xFF800000> : vector<8x8xf32>
    %217 = vector.multi_reduction <maximumf>, %216, %cst_57 [2] : vector<8x8x8xf32> to vector<8x8xf32>
    %218 = vector.shape_cast %217 : vector<8x8xf32> to vector<8x8x1xf32>
    %219 = vector.broadcast %218 : vector<8x8x1xf32> to vector<8x8x8xf32>
    %220 = arith.subf %216, %219 : vector<8x8x8xf32>
    %221 = math.exp %220 : vector<8x8x8xf32>
    %cst_58 = arith.constant dense<0.000000e+00> : vector<8x8xf32>
    %222 = vector.multi_reduction <add>, %221, %cst_58 [2] : vector<8x8x8xf32> to vector<8x8xf32>
    %223 = vector.shape_cast %222 : vector<8x8xf32> to vector<8x8x1xf32>
    %224 = tpu.reciprocal %223 {approx = true} : vector<8x8x1xf32> -> vector<8x8x1xf32>
    %225 = vector.broadcast %224 : vector<8x8x1xf32> to vector<8x8x8xf32>
    %226 = arith.mulf %221, %225 : vector<8x8x8xf32>
    %227 = arith.truncf %226 : vector<8x8x8xf32> to vector<8x8x8xbf16>
    %228 = vector.extract_strided_slice %227 {offsets = [0, 0, 0], sizes = [2, 8, 8], strides = [1, 1, 1]} : vector<8x8x8xbf16> to vector<2x8x8xbf16>
    %229 = vector.extract_strided_slice %199 {offsets = [0, 0, 0], sizes = [2, 8, 8], strides = [1, 1, 1]} : vector<2x8x32xbf16> to vector<2x8x8xbf16>
    "tpu.trace_start"() <{level = 10 : i32, message = "bqk,bkd->bqd"}> : () -> ()
    %cst_59 = arith.constant dense<0.000000e+00> : vector<2x8x8xf32>
    %230 = tpu.matmul %228, %229, %cst_59 {dimension_numbers = #tpu.dot_dimension_numbers<[2], [1], [1], [2], [0, 0, 0, 1, 1, 2], [0], [0]>} : vector<2x8x8xbf16>, vector<2x8x8xbf16>, vector<2x8x8xf32> -> vector<2x8x8xf32>
    "tpu.trace_stop"() : () -> ()
    %231 = vector.extract_strided_slice %227 {offsets = [2, 0, 0], sizes = [2, 8, 8], strides = [1, 1, 1]} : vector<8x8x8xbf16> to vector<2x8x8xbf16>
    %232 = vector.extract_strided_slice %199 {offsets = [0, 0, 8], sizes = [2, 8, 8], strides = [1, 1, 1]} : vector<2x8x32xbf16> to vector<2x8x8xbf16>
    "tpu.trace_start"() <{level = 10 : i32, message = "bqk,bkd->bqd"}> : () -> ()
    %cst_60 = arith.constant dense<0.000000e+00> : vector<2x8x8xf32>
    %233 = tpu.matmul %231, %232, %cst_60 {dimension_numbers = #tpu.dot_dimension_numbers<[2], [1], [1], [2], [0, 0, 0, 1, 1, 2], [0], [0]>} : vector<2x8x8xbf16>, vector<2x8x8xbf16>, vector<2x8x8xf32> -> vector<2x8x8xf32>
    "tpu.trace_stop"() : () -> ()
    %234 = vector.extract_strided_slice %227 {offsets = [4, 0, 0], sizes = [2, 8, 8], strides = [1, 1, 1]} : vector<8x8x8xbf16> to vector<2x8x8xbf16>
    %235 = vector.extract_strided_slice %199 {offsets = [0, 0, 16], sizes = [2, 8, 8], strides = [1, 1, 1]} : vector<2x8x32xbf16> to vector<2x8x8xbf16>
    "tpu.trace_start"() <{level = 10 : i32, message = "bqk,bkd->bqd"}> : () -> ()
    %cst_61 = arith.constant dense<0.000000e+00> : vector<2x8x8xf32>
    %236 = tpu.matmul %234, %235, %cst_61 {dimension_numbers = #tpu.dot_dimension_numbers<[2], [1], [1], [2], [0, 0, 0, 1, 1, 2], [0], [0]>} : vector<2x8x8xbf16>, vector<2x8x8xbf16>, vector<2x8x8xf32> -> vector<2x8x8xf32>
    "tpu.trace_stop"() : () -> ()
    %237 = vector.extract_strided_slice %227 {offsets = [6, 0, 0], sizes = [2, 8, 8], strides = [1, 1, 1]} : vector<8x8x8xbf16> to vector<2x8x8xbf16>
    %238 = vector.extract_strided_slice %199 {offsets = [0, 0, 24], sizes = [2, 8, 8], strides = [1, 1, 1]} : vector<2x8x32xbf16> to vector<2x8x8xbf16>
    "tpu.trace_start"() <{level = 10 : i32, message = "bqk,bkd->bqd"}> : () -> ()
    %cst_62 = arith.constant dense<0.000000e+00> : vector<2x8x8xf32>
    %239 = tpu.matmul %237, %238, %cst_62 {dimension_numbers = #tpu.dot_dimension_numbers<[2], [1], [1], [2], [0, 0, 0, 1, 1, 2], [0], [0]>} : vector<2x8x8xbf16>, vector<2x8x8xbf16>, vector<2x8x8xf32> -> vector<2x8x8xf32>
    "tpu.trace_stop"() : () -> ()
    %240 = tpu.concatenate %230, %233, %236, %239 in 2 : vector<2x8x8xf32>, vector<2x8x8xf32>, vector<2x8x8xf32>, vector<2x8x8xf32> -> vector<2x8x32xf32>
    %241 = vector.shape_cast %240 : vector<2x8x32xf32> to vector<16x32xf32>
    %242 = arith.truncf %241 : vector<16x32xf32> to vector<16x32xbf16>
    %cst_63 = arith.constant dense<0.000000e+00> : vector<16x32xf32>
    %243 = tpu.matmul %242, %154, %cst_63 {dimension_numbers = #tpu.dot_dimension_numbers<[1], [0], [0], [1], [0, 0, 1, 1], [], []>} : vector<16x32xbf16>, vector<32x32xbf16>, vector<16x32xf32> -> vector<16x32xf32>
    %244 = vector.broadcast %164 : vector<1x32xf32> to vector<16x32xf32>
    %245 = arith.addf %243, %244 : vector<16x32xf32>
    %246 = arith.addf %150, %245 : vector<16x32xf32>
    %cst_64 = arith.constant dense<0.000000e+00> : vector<16xf32>
    %247 = vector.multi_reduction <add>, %246, %cst_64 [1] : vector<16x32xf32> to vector<16xf32>
    %248 = vector.shape_cast %247 : vector<16xf32> to vector<16x1xf32>
    %cst_65 = arith.constant 3.200000e+01 : f32
    %249 = vector.broadcast %cst_65 : f32 to vector<16x1xf32>
    %250 = arith.divf %248, %249 : vector<16x1xf32>
    %251 = vector.broadcast %250 : vector<16x1xf32> to vector<16x32xf32>
    %252 = arith.subf %246, %251 : vector<16x32xf32>
    %253 = arith.mulf %252, %252 : vector<16x32xf32>
    %cst_66 = arith.constant dense<0.000000e+00> : vector<16xf32>
    %254 = vector.multi_reduction <add>, %253, %cst_66 [1] : vector<16x32xf32> to vector<16xf32>
    %255 = vector.shape_cast %254 : vector<16xf32> to vector<16x1xf32>
    %cst_67 = arith.constant 3.200000e+01 : f32
    %256 = vector.broadcast %cst_67 : f32 to vector<16x1xf32>
    %257 = arith.divf %255, %256 : vector<16x1xf32>
    %258 = vector.broadcast %250 : vector<16x1xf32> to vector<16x32xf32>
    %259 = arith.subf %246, %258 : vector<16x32xf32>
    %cst_68 = arith.constant 9.99999974E-6 : f32
    %260 = vector.broadcast %cst_68 : f32 to vector<16x1xf32>
    %261 = arith.addf %257, %260 : vector<16x1xf32>
    %262 = math.rsqrt %261 : vector<16x1xf32>
    %263 = vector.broadcast %262 : vector<16x1xf32> to vector<16x32xf32>
    %264 = arith.mulf %259, %263 : vector<16x32xf32>
    %265 = vector.broadcast %162 : vector<1x32xf32> to vector<16x32xf32>
    %266 = arith.mulf %264, %265 : vector<16x32xf32>
    %267 = vector.broadcast %163 : vector<1x32xf32> to vector<16x32xf32>
    %268 = arith.addf %266, %267 : vector<16x32xf32>
    %269 = arith.truncf %268 : vector<16x32xf32> to vector<16x32xbf16>
    %cst_69 = arith.constant dense<0.000000e+00> : vector<16x128xf32>
    %270 = tpu.matmul %269, %155, %cst_69 {dimension_numbers = #tpu.dot_dimension_numbers<[1], [0], [0], [1], [0, 0, 1, 1], [], []>} : vector<16x32xbf16>, vector<32x128xbf16>, vector<16x128xf32> -> vector<16x128xf32>
    %271 = vector.broadcast %166 : vector<1x128xf32> to vector<16x128xf32>
    %272 = arith.addf %270, %271 : vector<16x128xf32>
    %cst_70 = arith.constant 0.000000e+00 : f32
    %273 = vector.broadcast %cst_70 : f32 to vector<16x128xf32>
    %274 = arith.maximumf %272, %273 : vector<16x128xf32>
    %275 = arith.truncf %274 : vector<16x128xf32> to vector<16x128xbf16>
    %cst_71 = arith.constant dense<0.000000e+00> : vector<16x32xf32>
    %276 = tpu.matmul %275, %157, %cst_71 {dimension_numbers = #tpu.dot_dimension_numbers<[1], [0], [0], [1], [0, 0, 1, 1], [], []>} : vector<16x128xbf16>, vector<128x32xbf16>, vector<16x32xf32> -> vector<16x32xf32>
    %277 = vector.broadcast %165 : vector<1x32xf32> to vector<16x32xf32>
    %278 = arith.addf %276, %277 : vector<16x32xf32>
    %279 = arith.addf %246, %278 : vector<16x32xf32>
    %c2 = arith.constant 2 : index
    %c0_72 = arith.constant 0 : index
    %c0_73 = arith.constant 0 : index
    %280 = vector.load %arg5[%c2, %c0_72, %c0_73] : memref<3x3x128xf32, #tpu.memory_space<vmem>>, vector<1x3x128xf32>
    %281 = vector.shape_cast %280 : vector<1x3x128xf32> to vector<3x128xf32>
    %282 = vector.extract_strided_slice %281 {offsets = [0, 0], sizes = [1, 32], strides = [1, 1]} : vector<3x128xf32> to vector<1x32xf32>
    %283 = vector.extract_strided_slice %281 {offsets = [0, 32], sizes = [1, 32], strides = [1, 1]} : vector<3x128xf32> to vector<1x32xf32>
    %284 = vector.extract_strided_slice %281 {offsets = [1, 0], sizes = [1, 128], strides = [1, 1]} : vector<3x128xf32> to vector<1x128xf32>
    %cst_74 = arith.constant dense<0.000000e+00> : vector<16xf32>
    %285 = vector.multi_reduction <add>, %279, %cst_74 [1] : vector<16x32xf32> to vector<16xf32>
    %286 = vector.shape_cast %285 : vector<16xf32> to vector<16x1xf32>
    %cst_75 = arith.constant 3.200000e+01 : f32
    %287 = vector.broadcast %cst_75 : f32 to vector<16x1xf32>
    %288 = arith.divf %286, %287 : vector<16x1xf32>
    %289 = vector.broadcast %288 : vector<16x1xf32> to vector<16x32xf32>
    %290 = arith.subf %279, %289 : vector<16x32xf32>
    %291 = arith.mulf %290, %290 : vector<16x32xf32>
    %cst_76 = arith.constant dense<0.000000e+00> : vector<16xf32>
    %292 = vector.multi_reduction <add>, %291, %cst_76 [1] : vector<16x32xf32> to vector<16xf32>
    %293 = vector.shape_cast %292 : vector<16xf32> to vector<16x1xf32>
    %cst_77 = arith.constant 3.200000e+01 : f32
    %294 = vector.broadcast %cst_77 : f32 to vector<16x1xf32>
    %295 = arith.divf %293, %294 : vector<16x1xf32>
    %296 = vector.broadcast %288 : vector<16x1xf32> to vector<16x32xf32>
    %297 = arith.subf %279, %296 : vector<16x32xf32>
    %cst_78 = arith.constant 9.99999974E-6 : f32
    %298 = vector.broadcast %cst_78 : f32 to vector<16x1xf32>
    %299 = arith.addf %295, %298 : vector<16x1xf32>
    %300 = math.rsqrt %299 : vector<16x1xf32>
    %301 = vector.broadcast %300 : vector<16x1xf32> to vector<16x32xf32>
    %302 = arith.mulf %297, %301 : vector<16x32xf32>
    %303 = vector.broadcast %282 : vector<1x32xf32> to vector<16x32xf32>
    %304 = arith.mulf %302, %303 : vector<16x32xf32>
    %305 = vector.broadcast %283 : vector<1x32xf32> to vector<16x32xf32>
    %306 = arith.addf %304, %305 : vector<16x32xf32>
    %307 = arith.truncf %306 : vector<16x32xf32> to vector<16x32xbf16>
    %c0_79 = arith.constant 0 : index
    %c0_80 = arith.constant 0 : index
    %308 = vector.load %arg4[%c0_79, %c0_80] : memref<32x128xbf16, #tpu.memory_space<vmem>>, vector<32x128xbf16>
    %cst_81 = arith.constant dense<0.000000e+00> : vector<16x128xf32>
    %309 = tpu.matmul %307, %308, %cst_81 {dimension_numbers = #tpu.dot_dimension_numbers<[1], [0], [0], [1], [0, 0, 1, 1], [], []>} : vector<16x32xbf16>, vector<32x128xbf16>, vector<16x128xf32> -> vector<16x128xf32>
    %310 = vector.broadcast %284 : vector<1x128xf32> to vector<16x128xf32>
    %311 = arith.addf %309, %310 : vector<16x128xf32>
    %c0_82 = arith.constant 0 : index
    %c0_83 = arith.constant 0 : index
    %312 = vector.load %arg6[%c0_82, %c0_83] : memref<16x128xf32, #tpu.memory_space<vmem>>, vector<16x128xf32>
    tpu.vector_store %arg6[%c0_82, %c0_83], %311 {strides = array<i32>} : memref<16x128xf32, #tpu.memory_space<vmem>>, vector<16x128xf32>,
    return
  }
}

</mosaic_0001>

<llo_original>
// kernel: specialized_gpt_forward.1
$region0: #{specialized_gpt_forward.1}
  #allocation0 [shape = 'u32[]', space=smem, size = 0x4, offset = 0x4, fixed_abs, tag = 'smem constant byte address 0x4 - core index']
  #allocation1 [shape = 'u32[144,128]{1,0:T(1,128)}', space=vmem, size = 0x12000, scoped, tag = 'internal scratch']
  %s0 = inlined_call_operand.vmem [shape: s32[16,3], index: 0, kind: input, shape index: {}]
  %s1 = inlined_call_operand.vmem [shape: bf16[32,32], index: 1, kind: input, shape index: {}]
  %s2 = inlined_call_operand.vmem [shape: bf16[2,32,256], index: 2, kind: input, shape index: {}]
  %s3 = inlined_call_operand.vmem [shape: bf16[2,128,32], index: 3, kind: input, shape index: {}]
  %s4 = inlined_call_operand.vmem [shape: bf16[32,128], index: 4, kind: input, shape index: {}]
  %s5 = inlined_call_operand.vmem [shape: f32[3,3,128], index: 5, kind: input, shape index: {}]
  %s6 = inlined_call_operand.vmem [shape: f32[16,128], index: 6, kind: output, shape index: {}]
  %s7 = sld [smem:[#allocation0]]
  $region34: #{specialized_gpt_forward.1} parent=0
    _
  %s9 = ssub.s32 1, %s7
  %s10 = scalar_select 0, %s9, %s7
  // Predicated region
  $region2: #{specialized_gpt_forward.1} parent=0 // pred_check
    _
  $region3: #{specialized_gpt_forward.1} parent=0 // pred_check_branch
    %12 = sbr.rel (0) target = $region5
  $region4: #{specialized_gpt_forward.1} parent=0 // pred_region
    _
  $region5: #{specialized_gpt_forward.1} parent=0 // pred_fallthru
    _
  // Predicated region
  $region6: #{specialized_gpt_forward.1} parent=0 // pred_check
    _
  $region7: #{specialized_gpt_forward.1} parent=0 // pred_check_branch
    %14 = sbr.rel (0) target = $region9
  $region8: #{specialized_gpt_forward.1} parent=0 // pred_region
    _
  $region9: #{specialized_gpt_forward.1} parent=0 // pred_fallthru
    _
  // Predicated region
  $region10: #{specialized_gpt_forward.1} parent=0 // pred_check
    _
  $region11: #{specialized_gpt_forward.1} parent=0 // pred_check_branch
    %16 = sbr.rel (0) target = $region13
  $region12: #{specialized_gpt_forward.1} parent=0 // pred_region
    _
  $region13: #{specialized_gpt_forward.1} parent=0 // pred_fallthru
    _
  // Predicated region
  $region14: #{specialized_gpt_forward.1} parent=0 // pred_check
    _
  $region15: #{specialized_gpt_forward.1} parent=0 // pred_check_branch
    %18 = sbr.rel (0) target = $region17
  $region16: #{specialized_gpt_forward.1} parent=0 // pred_region
    _
  $region17: #{specialized_gpt_forward.1} parent=0 // pred_fallthru
    _
  // Predicated region
  $region18: #{specialized_gpt_forward.1} parent=0 // pred_check
    _
  $region19: #{specialized_gpt_forward.1} parent=0 // pred_check_branch
    %20 = sbr.rel (0) target = $region21
  $region20: #{specialized_gpt_forward.1} parent=0 // pred_region
    _
  $region21: #{specialized_gpt_forward.1} parent=0 // pred_fallthru
    _
  // Predicated region
  $region22: #{specialized_gpt_forward.1} parent=0 // pred_check
    _
  $region23: #{specialized_gpt_forward.1} parent=0 // pred_check_branch
    %22 = sbr.rel (0) target = $region25
  $region24: #{specialized_gpt_forward.1} parent=0 // pred_region
    _
  $region25: #{specialized_gpt_forward.1} parent=0 // pred_fallthru
    _
  %v24 = vld [vmem:[%s0] sm:$0xff]
  %v25 = vld [vmem:[%s0 + $0x8] sm:$0xff]
  %v26 = vlaneseq
  %v27 = vand.u32 %v26, 127
  %28 = vset.pattern.permute.xlu0 0
  %29 = vperm.xlu0 %28, %v24
  %v30 = vpop.permute.xlu0 %29
  %31 = vset.pattern.permute.xlu0 0
  %32 = vperm.xlu0 %31, %v25
  %v33 = vpop.permute.xlu0 %32
  %vm34 = vcmp.eq.s32.totalorder %v27, %v30
  %vm35 = vcmp.eq.s32.totalorder %v27, %v33
  %36 = vset.pattern.permute.xlu0 1
  %37 = vperm.xlu0 %36, %v24
  %v38 = vpop.permute.xlu0 %37
  %39 = vset.pattern.permute.xlu0 1
  %40 = vperm.xlu0 %39, %v25
  %v41 = vpop.permute.xlu0 %40
  %vm42 = vcmp.eq.s32.totalorder %v27, %v38
  %vm43 = vcmp.eq.s32.totalorder %v27, %v41
  %vm44 = vmor %vm34, %vm42
  %vm45 = vmor %vm35, %vm43
  %46 = vset.pattern.permute.xlu0 2
  %47 = vperm.xlu0 %46, %v24
  %v48 = vpop.permute.xlu0 %47
  %49 = vset.pattern.permute.xlu0 2
  %50 = vperm.xlu0 %49, %v25
  %v51 = vpop.permute.xlu0 %50
  %vm52 = vcmp.eq.s32.totalorder %v27, %v48
  %vm53 = vcmp.eq.s32.totalorder %v27, %v51
  %vm54 = vmor %vm44, %vm52
  %vm55 = vmor %vm45, %vm53
  %v56 = vsel %vm54, 1, 0
  %v57 = vsel %vm55, 1, 0
  %v58 = vcvt.s32.f32 %v56
  %v59 = vcvt.s32.f32 %v57
  %v60 = vpack.c.bf16 %v59, %v58
  %v61 = vld [vmem:[%s1] sm:$0xf]
  %v62 = vld [vmem:[%s1 + $0x4] sm:$0xf]
  %v63 = vld [vmem:[%s1 + $0x8] sm:$0xf]
  %v64 = vld [vmem:[%s1 + $0xc] sm:$0xf]
  %v69 = vunpack.c.l.b16 %v61
  %v70 = vunpack.c.l.b16 %v62
  %v71 = vunpack.c.l.b16 %v63
  %v72 = vunpack.c.l.b16 %v64
  %v73 = vpack.c.b16 %v70, %v69
  %v74 = vpack.c.b16 %v72, %v71
  %vm77 = vcmask 261120
  %v79 = vsel %vm77, %v60, 0
  %81 = vmatprep.subr.bf16.mxu0 0
  %82 = vmatpush1.bf16.msra.mxu0 %v73
  %83 = vmatprep.subr.bf16.mxu0 0
  %84 = vmatpush1.bf16.msra.mxu0 %v74
  %85 = vmatprep.subr.bf16.mxu0 0
  %86 = vmatpush1.bf16.msra.mxu0 0
  %87 = vmatprep.subr.bf16.mxu0 0
  %88 = vmatpush1.bf16.msra.mxu0 0
  %89 = vmatprep.subr.bf16.mxu0 0
  %90 = vmatpush1.bf16.msra.mxu0 0
  %91 = vmatprep.subr.bf16.mxu0 0
  %92 = vmatpush1.bf16.msra.mxu0 0
  %93 = vmatprep.subr.bf16.mxu0 0
  %94 = vmatpush1.bf16.msra.mxu0 0
  %95 = vmatprep.subr.bf16.mxu0 0
  %96 = vmatpush1.bf16.msra.mxu0 0
  %97 = vmatprep.subr.bf16.mxu0 0
  %98 = vmatpush1.bf16.msra.mxu0 0
  %99 = vmatprep.subr.bf16.mxu0 0
  %100 = vmatpush1.bf16.msra.mxu0 0
  %101 = vmatprep.subr.bf16.mxu0 0
  %102 = vmatpush1.bf16.msra.mxu0 0
  %103 = vmatprep.subr.bf16.mxu0 0
  %104 = vmatpush1.bf16.msra.mxu0 0
  %105 = vmatprep.subr.bf16.mxu0 0
  %106 = vmatpush1.bf16.msra.mxu0 0
  %107 = vmatprep.subr.bf16.mxu0 0
  %108 = vmatpush1.bf16.msra.mxu0 0
  %109 = vmatprep.subr.bf16.mxu0 0
  %110 = vmatpush1.bf16.msra.mxu0 0
  %111 = vmatprep.subr.bf16.mxu0 0
  %112 = vmatpush1.bf16.msra.mxu0 0
  %113 = vmatprep.mubr.bf16.mxu0 0
  %114 = vmatmul.mubr.bf16.gmra.mrb[0].mxu0 %v79
  %v115 = vpop.f32.mrb[0].mxu0
  %v116 = vadd.f32 0.0, %v115
  %v117 = vpop.f32.mrb[0].mxu0
  %v118 = vpop.f32.mrb[0].mxu0
  %v119 = vadd.f32 0.0, %v118
  %v120 = vpop.f32.mrb[0].mxu0
  %121 = vdwg.mxu0
  %v122 = vlaneseq
  %v123 = vshrl.u32 %v122, 7
  %vm124 = vcmp.le.s32.totalorder %v27, %v123
  %v125 = vld [vmem:[%s2] sm:$0xff]
  %v126 = vld [vmem:[%s2 + $0x8] sm:$0xff]
  %v127 = vld [vmem:[%s2 + $0x10] sm:$0xff]
  %v128 = vld [vmem:[%s2 + $0x18] sm:$0xff]
  %v129 = vld [vmem:[%s3] sm:$0xf]
  %v130 = vld [vmem:[%s3 + $0x4] sm:$0xf]
  %v131 = vld [vmem:[%s3 + $0x8] sm:$0xf]
  %v132 = vld [vmem:[%s3 + $0xc] sm:$0xf]
  %v133 = vld [vmem:[%s3 + $0x10] sm:$0xf]
  %v134 = vld [vmem:[%s3 + $0x14] sm:$0xf]
  %v135 = vld [vmem:[%s3 + $0x18] sm:$0xf]
  %v136 = vld [vmem:[%s3 + $0x1c] sm:$0xf]
  %v137 = vld [vmem:[%s3 + $0x20] sm:$0xf]
  %v138 = vld [vmem:[%s3 + $0x24] sm:$0xf]
  %v139 = vld [vmem:[%s3 + $0x28] sm:$0xf]
  %v140 = vld [vmem:[%s3 + $0x2c] sm:$0xf]
  %v141 = vld [vmem:[%s3 + $0x30] sm:$0xf]
  %v142 = vld [vmem:[%s3 + $0x34] sm:$0xf]
  %v143 = vld [vmem:[%s3 + $0x38] sm:$0xf]
  %v144 = vld [vmem:[%s3 + $0x3c] sm:$0xf]
  %v145 = vld [vmem:[%s5] sm:$0x7]
  %v146 = vsel %vm77, %v116, 0.0
  %147 = vadd.xlane.f32.xlu0 %v146
  %v148 = vpop.xlane.xlu0 %147
  %v149 = vsel %vm77, %v119, 0.0
  %150 = vadd.xlane.f32.xlu0 %v149
  %v151 = vpop.xlane.xlu0 %150
  %v152 = vrcp.pop 32.0
  %v153 = vmul.f32 %v148, %v152
  %v154 = vmul.f32 %v151, %v152
  %v155 = vsub.f32 %v116, %v153
  %v156 = vsub.f32 %v119, %v154
  %v157 = vmul.f32 %v155, %v155
  %v158 = vmul.f32 %v156, %v156
  %v159 = vsel %vm77, %v157, 0.0
  %160 = vadd.xlane.f32.xlu0 %v159
  %v161 = vpop.xlane.xlu0 %160
  %v162 = vsel %vm77, %v158, 0.0
  %163 = vadd.xlane.f32.xlu0 %v162
  %v164 = vpop.xlane.xlu0 %163
  %v165 = vmul.f32 %v161, %v152
  %v166 = vmul.f32 %v164, %v152
  %v167 = vadd.f32 %v165, 1e-05
  %v168 = vadd.f32 %v166, 1e-05
  %v169 = vrsqrt.pop %v167
  %v170 = vrsqrt.pop %v168
  %v171 = vmul.f32 %v155, %v169
  %v172 = vmul.f32 %v156, %v170
  %v173 = vlaneseq
  %v174 = vshrl.u32 %v173, 7
  %v175 = vsub.s32 0, %v174
  %v176 = vrot.slane %v145, %v175
  %v177 = vmul.f32 %v171, %v176
  %v178 = vmul.f32 %v172, %v176
  %180 = vrot.lane.b32.xlu0 %v176, 96
  %v181 = vpop.permute.xlu0 %180
  %v183 = vadd.f32 %v177, %v181
  %v184 = vadd.f32 %v178, %v181
  %v185 = vpack.c.bf16 %v184, %v183
  %v190 = vunpack.c.l.b16 %v125
  %v191 = vunpack.c.l.b16 %v126
  %v192 = vunpack.c.l.b16 %v127
  %v193 = vunpack.c.l.b16 %v128
  %v194 = vpack.c.b16 %v191, %v190
  %v195 = vpack.c.b16 %v193, %v192
  %v199 = vsel %vm77, %v185, 0
  %201 = vmatprep.subr.bf16.mxu0 0
  %202 = vmatpush1.bf16.msra.mxu0 %v194
  %203 = vmatprep.subr.bf16.mxu0 0
  %204 = vmatpush1.bf16.msra.mxu0 %v195
  %205 = vmatprep.subr.bf16.mxu0 0
  %206 = vmatpush1.bf16.msra.mxu0 0
  %207 = vmatprep.subr.bf16.mxu0 0
  %208 = vmatpush1.bf16.msra.mxu0 0
  %209 = vmatprep.subr.bf16.mxu0 0
  %210 = vmatpush1.bf16.msra.mxu0 0
  %211 = vmatprep.subr.bf16.mxu0 0
  %212 = vmatpush1.bf16.msra.mxu0 0
  %213 = vmatprep.subr.bf16.mxu0 0
  %214 = vmatpush1.bf16.msra.mxu0 0
  %215 = vmatprep.subr.bf16.mxu0 0
  %216 = vmatpush1.bf16.msra.mxu0 0
  %217 = vmatprep.subr.bf16.mxu0 0
  %218 = vmatpush1.bf16.msra.mxu0 0
  %219 = vmatprep.subr.bf16.mxu0 0
  %220 = vmatpush1.bf16.msra.mxu0 0
  %221 = vmatprep.subr.bf16.mxu0 0
  %222 = vmatpush1.bf16.msra.mxu0 0
  %223 = vmatprep.subr.bf16.mxu0 0
  %224 = vmatpush1.bf16.msra.mxu0 0
  %225 = vmatprep.subr.bf16.mxu0 0
  %226 = vmatpush1.bf16.msra.mxu0 0
  %227 = vmatprep.subr.bf16.mxu0 0
  %228 = vmatpush1.bf16.msra.mxu0 0
  %229 = vmatprep.subr.bf16.mxu0 0
  %230 = vmatpush1.bf16.msra.mxu0 0
  %231 = vmatprep.subr.bf16.mxu0 0
  %232 = vmatpush1.bf16.msra.mxu0 0
  %233 = vmatprep.mubr.bf16.mxu0 0
  %234 = vmatmul.mubr.bf16.gmra.mrb[0].mxu0 %v199
  %v235 = vpop.f32.mrb[0].mxu0
  %v236 = vadd.f32 0.0, %v235
  %v237 = vpop.f32.mrb[0].mxu0
  %v238 = vpop.f32.mrb[0].mxu0
  %v239 = vadd.f32 0.0, %v238
  %v240 = vpop.f32.mrb[0].mxu0
  %241 = vdwg.mxu0
  %v242 = vpack.c.bf16 %v239, %v236
  %v244 = vunpack.c.l.b16 %v242
  %v245 = vunpack.c.h.b16 %v242
  %v246 = vpack.c.b16 %v244, %v244
  %v247 = vpack.c.b16 %v245, %v245
  %248 = vrot.lane.b32.xlu0 %v246, 96
  %v249 = vpop.permute.xlu0 %248
  %vm250 = vcmask 64512
  %v252 = vsel %vm250, %v246, 0
  %v255 = vsel %vm250, %v249, 0
  %257 = vmatprep.subr.bf16.mxu0 0
  %258 = vmatpush1.bf16.xpose.msra.mxu0 %v255
  %259 = vmatprep.subr.bf16.mxu0 0
  %260 = vmatpush1.bf16.xpose.msra.mxu0 0
  %261 = vmatprep.subr.bf16.mxu0 0
  %262 = vmatpush1.bf16.xpose.msra.mxu0 0
  %263 = vmatprep.subr.bf16.mxu0 0
  %264 = vmatpush1.bf16.xpose.msra.mxu0 0
  %265 = vmatprep.subr.bf16.mxu0 0
  %266 = vmatpush1.bf16.xpose.msra.mxu0 0
  %267 = vmatprep.subr.bf16.mxu0 0
  %268 = vmatpush1.bf16.xpose.msra.mxu0 0
  %269 = vmatprep.subr.bf16.mxu0 0
  %270 = vmatpush1.bf16.xpose.msra.mxu0 0
  %271 = vmatprep.subr.bf16.mxu0 0
  %272 = vmatpush1.bf16.xpose.msra.mxu0 0
  %273 = vmatprep.subr.bf16.mxu0 0
  %274 = vmatpush1.bf16.xpose.msra.mxu0 0
  %275 = vmatprep.subr.bf16.mxu0 0
  %276 = vmatpush1.bf16.xpose.msra.mxu0 0
  %277 = vmatprep.subr.bf16.mxu0 0
  %278 = vmatpush1.bf16.xpose.msra.mxu0 0
  %279 = vmatprep.subr.bf16.mxu0 0
  %280 = vmatpush1.bf16.xpose.msra.mxu0 0
  %281 = vmatprep.subr.bf16.mxu0 0
  %282 = vmatpush1.bf16.xpose.msra.mxu0 0
  %283 = vmatprep.subr.bf16.mxu0 0
  %284 = vmatpush1.bf16.xpose.msra.mxu0 0
  %285 = vmatprep.subr.bf16.mxu0 0
  %286 = vmatpush1.bf16.xpose.msra.mxu0 0
  %287 = vmatprep.subr.bf16.mxu0 0
  %288 = vmatpush1.bf16.xpose.msra.mxu0 0
  %289 = vmatprep.mubr.bf16.mxu0 0
  %290 = vmatmul.mubr.bf16.gmra.mrb[0].mxu0 %v252
  %v291 = vpop.f32.mrb[0].mxu0
  %v292 = vadd.f32 0.0, %v291
  %v293 = vpop.f32.mrb[0].mxu0
  %v294 = vpop.f32.mrb[0].mxu0
  %v295 = vpop.f32.mrb[0].mxu0
  %296 = vdwg.mxu0
  %297 = vrot.lane.b32.xlu0 %v247, 96
  %v298 = vpop.permute.xlu0 %297
  %v300 = vsel %vm250, %v247, 0
  %v303 = vsel %vm250, %v298, 0
  %305 = vmatprep.subr.bf16.mxu0 0
  %306 = vmatpush1.bf16.xpose.msra.mxu0 %v303
  %307 = vmatprep.subr.bf16.mxu0 0
  %308 = vmatpush1.bf16.xpose.msra.mxu0 0
  %309 = vmatprep.subr.bf16.mxu0 0
  %310 = vmatpush1.bf16.xpose.msra.mxu0 0
  %311 = vmatprep.subr.bf16.mxu0 0
  %312 = vmatpush1.bf16.xpose.msra.mxu0 0
  %313 = vmatprep.subr.bf16.mxu0 0
  %314 = vmatpush1.bf16.xpose.msra.mxu0 0
  %315 = vmatprep.subr.bf16.mxu0 0
  %316 = vmatpush1.bf16.xpose.msra.mxu0 0
  %317 = vmatprep.subr.bf16.mxu0 0
  %318 = vmatpush1.bf16.xpose.msra.mxu0 0
  %319 = vmatprep.subr.bf16.mxu0 0
  %320 = vmatpush1.bf16.xpose.msra.mxu0 0
  %321 = vmatprep.subr.bf16.mxu0 0
  %322 = vmatpush1.bf16.xpose.msra.mxu0 0
  %323 = vmatprep.subr.bf16.mxu0 0
  %324 = vmatpush1.bf16.xpose.msra.mxu0 0
  %325 = vmatprep.subr.bf16.mxu0 0
  %326 = vmatpush1.bf16.xpose.msra.mxu0 0
  %327 = vmatprep.subr.bf16.mxu0 0
  %328 = vmatpush1.bf16.xpose.msra.mxu0 0
  %329 = vmatprep.subr.bf16.mxu0 0
  %330 = vmatpush1.bf16.xpose.msra.mxu0 0
  %331 = vmatprep.subr.bf16.mxu0 0
  %332 = vmatpush1.bf16.xpose.msra.mxu0 0
  %333 = vmatprep.subr.bf16.mxu0 0
  %334 = vmatpush1.bf16.xpose.msra.mxu0 0
  %335 = vmatprep.subr.bf16.mxu0 0
  %336 = vmatpush1.bf16.xpose.msra.mxu0 0
  %337 = vmatprep.mubr.bf16.mxu0 0
  %338 = vmatmul.mubr.bf16.gmra.mrb[0].mxu0 %v300
  %v339 = vpop.f32.mrb[0].mxu0
  %v340 = vadd.f32 0.0, %v339
  %v341 = vpop.f32.mrb[0].mxu0
  %v342 = vpop.f32.mrb[0].mxu0
  %v343 = vpop.f32.mrb[0].mxu0
  %344 = vdwg.mxu0
  %345 = vrot.lane.b32.xlu0 %v246, 120
  %v346 = vpop.permute.xlu0 %345
  %347 = vrot.lane.b32.xlu0 %v246, 88
  %v348 = vpop.permute.xlu0 %347
  %v350 = vsel %vm250, %v346, 0
  %v353 = vsel %vm250, %v348, 0
  %355 = vmatprep.subr.bf16.mxu0 0
  %356 = vmatpush1.bf16.xpose.msra.mxu0 %v353
  %357 = vmatprep.subr.bf16.mxu0 0
  %358 = vmatpush1.bf16.xpose.msra.mxu0 0
  %359 = vmatprep.subr.bf16.mxu0 0
  %360 = vmatpush1.bf16.xpose.msra.mxu0 0
  %361 = vmatprep.subr.bf16.mxu0 0
  %362 = vmatpush1.bf16.xpose.msra.mxu0 0
  %363 = vmatprep.subr.bf16.mxu0 0
  %364 = vmatpush1.bf16.xpose.msra.mxu0 0
  %365 = vmatprep.subr.bf16.mxu0 0
  %366 = vmatpush1.bf16.xpose.msra.mxu0 0
  %367 = vmatprep.subr.bf16.mxu0 0
  %368 = vmatpush1.bf16.xpose.msra.mxu0 0
  %369 = vmatprep.subr.bf16.mxu0 0
  %370 = vmatpush1.bf16.xpose.msra.mxu0 0
  %371 = vmatprep.subr.bf16.mxu0 0
  %372 = vmatpush1.bf16.xpose.msra.mxu0 0
  %373 = vmatprep.subr.bf16.mxu0 0
  %374 = vmatpush1.bf16.xpose.msra.mxu0 0
  %375 = vmatprep.subr.bf16.mxu0 0
  %376 = vmatpush1.bf16.xpose.msra.mxu0 0
  %377 = vmatprep.subr.bf16.mxu0 0
  %378 = vmatpush1.bf16.xpose.msra.mxu0 0
  %379 = vmatprep.subr.bf16.mxu0 0
  %380 = vmatpush1.bf16.xpose.msra.mxu0 0
  %381 = vmatprep.subr.bf16.mxu0 0
  %382 = vmatpush1.bf16.xpose.msra.mxu0 0
  %383 = vmatprep.subr.bf16.mxu0 0
  %384 = vmatpush1.bf16.xpose.msra.mxu0 0
  %385 = vmatprep.subr.bf16.mxu0 0
  %386 = vmatpush1.bf16.xpose.msra.mxu0 0
  %387 = vmatprep.mubr.bf16.mxu0 0
  %388 = vmatmul.mubr.bf16.gmra.mrb[0].mxu0 %v350
  %v389 = vpop.f32.mrb[0].mxu0
  %v390 = vadd.f32 0.0, %v389
  %v391 = vpop.f32.mrb[0].mxu0
  %v392 = vpop.f32.mrb[0].mxu0
  %v393 = vpop.f32.mrb[0].mxu0
  %394 = vdwg.mxu0
  %395 = vrot.lane.b32.xlu0 %v247, 120
  %v396 = vpop.permute.xlu0 %395
  %397 = vrot.lane.b32.xlu0 %v247, 88
  %v398 = vpop.permute.xlu0 %397
  %v400 = vsel %vm250, %v396, 0
  %v403 = vsel %vm250, %v398, 0
  %405 = vmatprep.subr.bf16.mxu0 0
  %406 = vmatpush1.bf16.xpose.msra.mxu0 %v403
  %407 = vmatprep.subr.bf16.mxu0 0
  %408 = vmatpush1.bf16.xpose.msra.mxu0 0
  %409 = vmatprep.subr.bf16.mxu0 0
  %410 = vmatpush1.bf16.xpose.msra.mxu0 0
  %411 = vmatprep.subr.bf16.mxu0 0
  %412 = vmatpush1.bf16.xpose.msra.mxu0 0
  %413 = vmatprep.subr.bf16.mxu0 0
  %414 = vmatpush1.bf16.xpose.msra.mxu0 0
  %415 = vmatprep.subr.bf16.mxu0 0
  %416 = vmatpush1.bf16.xpose.msra.mxu0 0
  %417 = vmatprep.subr.bf16.mxu0 0
  %418 = vmatpush1.bf16.xpose.msra.mxu0 0
  %419 = vmatprep.subr.bf16.mxu0 0
  %420 = vmatpush1.bf16.xpose.msra.mxu0 0
  %421 = vmatprep.subr.bf16.mxu0 0
  %422 = vmatpush1.bf16.xpose.msra.mxu0 0
  %423 = vmatprep.subr.bf16.mxu0 0
  %424 = vmatpush1.bf16.xpose.msra.mxu0 0
  %425 = vmatprep.subr.bf16.mxu0 0
  %426 = vmatpush1.bf16.xpose.msra.mxu0 0
  %427 = vmatprep.subr.bf16.mxu0 0
  %428 = vmatpush1.bf16.xpose.msra.mxu0 0
  %429 = vmatprep.subr.bf16.mxu0 0
  %430 = vmatpush1.bf16.xpose.msra.mxu0 0
  %431 = vmatprep.subr.bf16.mxu0 0
  %432 = vmatpush1.bf16.xpose.msra.mxu0 0
  %433 = vmatprep.subr.bf16.mxu0 0
  %434 = vmatpush1.bf16.xpose.msra.mxu0 0
  %435 = vmatprep.subr.bf16.mxu0 0
  %436 = vmatpush1.bf16.xpose.msra.mxu0 0
  %437 = vmatprep.mubr.bf16.mxu0 0
  %438 = vmatmul.mubr.bf16.gmra.mrb[0].mxu0 %v400
  %v439 = vpop.f32.mrb[0].mxu0
  %v440 = vadd.f32 0.0, %v439
  %v441 = vpop.f32.mrb[0].mxu0
  %v442 = vpop.f32.mrb[0].mxu0
  %v443 = vpop.f32.mrb[0].mxu0
  %444 = vdwg.mxu0
  %445 = vrot.lane.b32.xlu0 %v246, 112
  %v446 = vpop.permute.xlu0 %445
  %447 = vrot.lane.b32.xlu0 %v246, 80
  %v448 = vpop.permute.xlu0 %447
  %v450 = vsel %vm250, %v446, 0
  %v453 = vsel %vm250, %v448, 0
  %455 = vmatprep.subr.bf16.mxu0 0
  %456 = vmatpush1.bf16.xpose.msra.mxu0 %v453
  %457 = vmatprep.subr.bf16.mxu0 0
  %458 = vmatpush1.bf16.xpose.msra.mxu0 0
  %459 = vmatprep.subr.bf16.mxu0 0
  %460 = vmatpush1.bf16.xpose.msra.mxu0 0
  %461 = vmatprep.subr.bf16.mxu0 0
  %462 = vmatpush1.bf16.xpose.msra.mxu0 0
  %463 = vmatprep.subr.bf16.mxu0 0
  %464 = vmatpush1.bf16.xpose.msra.mxu0 0
  %465 = vmatprep.subr.bf16.mxu0 0
  %466 = vmatpush1.bf16.xpose.msra.mxu0 0
  %467 = vmatprep.subr.bf16.mxu0 0
  %468 = vmatpush1.bf16.xpose.msra.mxu0 0
  %469 = vmatprep.subr.bf16.mxu0 0
  %470 = vmatpush1.bf16.xpose.msra.mxu0 0
  %471 = vmatprep.subr.bf16.mxu0 0
  %472 = vmatpush1.bf16.xpose.msra.mxu0 0
  %473 = vmatprep.subr.bf16.mxu0 0
  %474 = vmatpush1.bf16.xpose.msra.mxu0 0
  %475 = vmatprep.subr.bf16.mxu0 0
  %476 = vmatpush1.bf16.xpose.msra.mxu0 0
  %477 = vmatprep.subr.bf16.mxu0 0
  %478 = vmatpush1.bf16.xpose.msra.mxu0 0
  %479 = vmatprep.subr.bf16.mxu0 0
  %480 = vmatpush1.bf16.xpose.msra.mxu0 0
  %481 = vmatprep.subr.bf16.mxu0 0
  %482 = vmatpush1.bf16.xpose.msra.mxu0 0
  %483 = vmatprep.subr.bf16.mxu0 0
  %484 = vmatpush1.bf16.xpose.msra.mxu0 0
  %485 = vmatprep.subr.bf16.mxu0 0
  %486 = vmatpush1.bf16.xpose.msra.mxu0 0
  %487 = vmatprep.mubr.bf16.mxu0 0
  %488 = vmatmul.mubr.bf16.gmra.mrb[0].mxu0 %v450
  %v489 = vpop.f32.mrb[0].mxu0
  %v490 = vadd.f32 0.0, %v489
  %v491 = vpop.f32.mrb[0].mxu0
  %v492 = vpop.f32.mrb[0].mxu0
  %v493 = vpop.f32.mrb[0].mxu0
  %494 = vdwg.mxu0
  %495 = vrot.lane.b32.xlu0 %v247, 112
  %v496 = vpop.permute.xlu0 %495
  %497 = vrot.lane.b32.xlu0 %v247, 80
  %v498 = vpop.permute.xlu0 %497
  %v500 = vsel %vm250, %v496, 0
  %v503 = vsel %vm250, %v498, 0
  %505 = vmatprep.subr.bf16.mxu0 0
  %506 = vmatpush1.bf16.xpose.msra.mxu0 %v503
  %507 = vmatprep.subr.bf16.mxu0 0
  %508 = vmatpush1.bf16.xpose.msra.mxu0 0
  %509 = vmatprep.subr.bf16.mxu0 0
  %510 = vmatpush1.bf16.xpose.msra.mxu0 0
  %511 = vmatprep.subr.bf16.mxu0 0
  %512 = vmatpush1.bf16.xpose.msra.mxu0 0
  %513 = vmatprep.subr.bf16.mxu0 0
  %514 = vmatpush1.bf16.xpose.msra.mxu0 0
  %515 = vmatprep.subr.bf16.mxu0 0
  %516 = vmatpush1.bf16.xpose.msra.mxu0 0
  %517 = vmatprep.subr.bf16.mxu0 0
  %518 = vmatpush1.bf16.xpose.msra.mxu0 0
  %519 = vmatprep.subr.bf16.mxu0 0
  %520 = vmatpush1.bf16.xpose.msra.mxu0 0
  %521 = vmatprep.subr.bf16.mxu0 0
  %522 = vmatpush1.bf16.xpose.msra.mxu0 0
  %523 = vmatprep.subr.bf16.mxu0 0
  %524 = vmatpush1.bf16.xpose.msra.mxu0 0
  %525 = vmatprep.subr.bf16.mxu0 0
  %526 = vmatpush1.bf16.xpose.msra.mxu0 0
  %527 = vmatprep.subr.bf16.mxu0 0
  %528 = vmatpush1.bf16.xpose.msra.mxu0 0
  %529 = vmatprep.subr.bf16.mxu0 0
  %530 = vmatpush1.bf16.xpose.msra.mxu0 0
  %531 = vmatprep.subr.bf16.mxu0 0
  %532 = vmatpush1.bf16.xpose.msra.mxu0 0
  %533 = vmatprep.subr.bf16.mxu0 0
  %534 = vmatpush1.bf16.xpose.msra.mxu0 0
  %535 = vmatprep.subr.bf16.mxu0 0
  %536 = vmatpush1.bf16.xpose.msra.mxu0 0
  %537 = vmatprep.mubr.bf16.mxu0 0
  %538 = vmatmul.mubr.bf16.gmra.mrb[0].mxu0 %v500
  %v539 = vpop.f32.mrb[0].mxu0
  %v540 = vadd.f32 0.0, %v539
  %v541 = vpop.f32.mrb[0].mxu0
  %v542 = vpop.f32.mrb[0].mxu0
  %v543 = vpop.f32.mrb[0].mxu0
  %544 = vdwg.mxu0
  %545 = vrot.lane.b32.xlu0 %v246, 104
  %v546 = vpop.permute.xlu0 %545
  %547 = vrot.lane.b32.xlu0 %v246, 72
  %v548 = vpop.permute.xlu0 %547
  %v550 = vsel %vm250, %v546, 0
  %v553 = vsel %vm250, %v548, 0
  %555 = vmatprep.subr.bf16.mxu0 0
  %556 = vmatpush1.bf16.xpose.msra.mxu0 %v553
  %557 = vmatprep.subr.bf16.mxu0 0
  %558 = vmatpush1.bf16.xpose.msra.mxu0 0
  %559 = vmatprep.subr.bf16.mxu0 0
  %560 = vmatpush1.bf16.xpose.msra.mxu0 0
  %561 = vmatprep.subr.bf16.mxu0 0
  %562 = vmatpush1.bf16.xpose.msra.mxu0 0
  %563 = vmatprep.subr.bf16.mxu0 0
  %564 = vmatpush1.bf16.xpose.msra.mxu0 0
  %565 = vmatprep.subr.bf16.mxu0 0
  %566 = vmatpush1.bf16.xpose.msra.mxu0 0
  %567 = vmatprep.subr.bf16.mxu0 0
  %568 = vmatpush1.bf16.xpose.msra.mxu0 0
  %569 = vmatprep.subr.bf16.mxu0 0
  %570 = vmatpush1.bf16.xpose.msra.mxu0 0
  %571 = vmatprep.subr.bf16.mxu0 0
  %572 = vmatpush1.bf16.xpose.msra.mxu0 0
  %573 = vmatprep.subr.bf16.mxu0 0
  %574 = vmatpush1.bf16.xpose.msra.mxu0 0
  %575 = vmatprep.subr.bf16.mxu0 0
  %576 = vmatpush1.bf16.xpose.msra.mxu0 0
  %577 = vmatprep.subr.bf16.mxu0 0
  %578 = vmatpush1.bf16.xpose.msra.mxu0 0
  %579 = vmatprep.subr.bf16.mxu0 0
  %580 = vmatpush1.bf16.xpose.msra.mxu0 0
  %581 = vmatprep.subr.bf16.mxu0 0
  %582 = vmatpush1.bf16.xpose.msra.mxu0 0
  %583 = vmatprep.subr.bf16.mxu0 0
  %584 = vmatpush1.bf16.xpose.msra.mxu0 0
  %585 = vmatprep.subr.bf16.mxu0 0
  %586 = vmatpush1.bf16.xpose.msra.mxu0 0
  %587 = vmatprep.mubr.bf16.mxu0 0
  %588 = vmatmul.mubr.bf16.gmra.mrb[0].mxu0 %v550
  %v589 = vpop.f32.mrb[0].mxu0
  %v590 = vadd.f32 0.0, %v589
  %v591 = vpop.f32.mrb[0].mxu0
  %v592 = vpop.f32.mrb[0].mxu0
  %v593 = vpop.f32.mrb[0].mxu0
  %594 = vdwg.mxu0
  %595 = vrot.lane.b32.xlu0 %v247, 104
  %v596 = vpop.permute.xlu0 %595
  %597 = vrot.lane.b32.xlu0 %v247, 72
  %v598 = vpop.permute.xlu0 %597
  %v600 = vsel %vm250, %v596, 0
  %v603 = vsel %vm250, %v598, 0
  %605 = vmatprep.subr.bf16.mxu0 0
  %606 = vmatpush1.bf16.xpose.msra.mxu0 %v603
  %607 = vmatprep.subr.bf16.mxu0 0
  %608 = vmatpush1.bf16.xpose.msra.mxu0 0
  %609 = vmatprep.subr.bf16.mxu0 0
  %610 = vmatpush1.bf16.xpose.msra.mxu0 0
  %611 = vmatprep.subr.bf16.mxu0 0
  %612 = vmatpush1.bf16.xpose.msra.mxu0 0
  %613 = vmatprep.subr.bf16.mxu0 0
  %614 = vmatpush1.bf16.xpose.msra.mxu0 0
  %615 = vmatprep.subr.bf16.mxu0 0
  %616 = vmatpush1.bf16.xpose.msra.mxu0 0
  %617 = vmatprep.subr.bf16.mxu0 0
  %618 = vmatpush1.bf16.xpose.msra.mxu0 0
  %619 = vmatprep.subr.bf16.mxu0 0
  %620 = vmatpush1.bf16.xpose.msra.mxu0 0
  %621 = vmatprep.subr.bf16.mxu0 0
  %622 = vmatpush1.bf16.xpose.msra.mxu0 0
  %623 = vmatprep.subr.bf16.mxu0 0
  %624 = vmatpush1.bf16.xpose.msra.mxu0 0
  %625 = vmatprep.subr.bf16.mxu0 0
  %626 = vmatpush1.bf16.xpose.msra.mxu0 0
  %627 = vmatprep.subr.bf16.mxu0 0
  %628 = vmatpush1.bf16.xpose.msra.mxu0 0
  %629 = vmatprep.subr.bf16.mxu0 0
  %630 = vmatpush1.bf16.xpose.msra.mxu0 0
  %631 = vmatprep.subr.bf16.mxu0 0
  %632 = vmatpush1.bf16.xpose.msra.mxu0 0
  %633 = vmatprep.subr.bf16.mxu0 0
  %634 = vmatpush1.bf16.xpose.msra.mxu0 0
  %635 = vmatprep.subr.bf16.mxu0 0
  %636 = vmatpush1.bf16.xpose.msra.mxu0 0
  %637 = vmatprep.mubr.bf16.mxu0 0
  %638 = vmatmul.mubr.bf16.gmra.mrb[0].mxu0 %v600
  %v639 = vpop.f32.mrb[0].mxu0
  %v640 = vadd.f32 0.0, %v639
  %v641 = vpop.f32.mrb[0].mxu0
  %v642 = vpop.f32.mrb[0].mxu0
  %v643 = vpop.f32.mrb[0].mxu0
  %644 = vdwg.mxu0
  %v645 = vsel %vm124, 1, 0
  %vm646 = vcmp.eq.s32.totalorder %v645, 1
  %v647 = vsel %vm646, %v292, -1e+30
  %v648 = vsel %vm646, %v340, -1e+30
  %v649 = vsel %vm646, %v390, -1e+30
  %v650 = vsel %vm646, %v440, -1e+30
  %v651 = vsel %vm646, %v490, -1e+30
  %v652 = vsel %vm646, %v540, -1e+30
  %v653 = vsel %vm646, %v590, -1e+30
  %v654 = vsel %vm646, %v640, -1e+30
  %v655 = vsel %vm250, %v647, -inf
  %656 = vmax.xlane.f32.xlu0 %v655
  %v657 = vpop.xlane.xlu0 %656
  %v658 = vsel %vm250, %v648, -inf
  %659 = vmax.xlane.f32.xlu0 %v658
  %v660 = vpop.xlane.xlu0 %659
  %v661 = vsel %vm250, %v649, -inf
  %662 = vmax.xlane.f32.xlu0 %v661
  %v663 = vpop.xlane.xlu0 %662
  %v664 = vsel %vm250, %v650, -inf
  %665 = vmax.xlane.f32.xlu0 %v664
  %v666 = vpop.xlane.xlu0 %665
  %v667 = vsel %vm250, %v651, -inf
  %668 = vmax.xlane.f32.xlu0 %v667
  %v669 = vpop.xlane.xlu0 %668
  %v670 = vsel %vm250, %v652, -inf
  %671 = vmax.xlane.f32.xlu0 %v670
  %v672 = vpop.xlane.xlu0 %671
  %v673 = vsel %vm250, %v653, -inf
  %674 = vmax.xlane.f32.xlu0 %v673
  %v675 = vpop.xlane.xlu0 %674
  %v676 = vsel %vm250, %v654, -inf
  %677 = vmax.xlane.f32.xlu0 %v676
  %v678 = vpop.xlane.xlu0 %677
  %v679 = vsub.f32 %v647, %v657
  %v680 = vsub.f32 %v648, %v660
  %v681 = vsub.f32 %v649, %v663
  %v682 = vsub.f32 %v650, %v666
  %v683 = vsub.f32 %v651, %v669
  %v684 = vsub.f32 %v652, %v672
  %v685 = vsub.f32 %v653, %v675
  %v686 = vsub.f32 %v654, %v678
  %v687 = vmul.f32 %v679, 1.442695
  %v688 = vpow.pop %v687
  %v689 = vmul.f32 %v680, 1.442695
  %v690 = vpow.pop %v689
  %v691 = vmul.f32 %v681, 1.442695
  %v692 = vpow.pop %v691
  %v693 = vmul.f32 %v682, 1.442695
  %v694 = vpow.pop %v693
  %v695 = vmul.f32 %v683, 1.442695
  %v696 = vpow.pop %v695
  %v697 = vmul.f32 %v684, 1.442695
  %v698 = vpow.pop %v697
  %v699 = vmul.f32 %v685, 1.442695
  %v700 = vpow.pop %v699
  %v701 = vmul.f32 %v686, 1.442695
  %v702 = vpow.pop %v701
  %v703 = vsel %vm250, %v688, 0.0
  %704 = vadd.xlane.f32.xlu0 %v703
  %v705 = vpop.xlane.xlu0 %704
  %v706 = vsel %vm250, %v690, 0.0
  %707 = vadd.xlane.f32.xlu0 %v706
  %v708 = vpop.xlane.xlu0 %707
  %v709 = vsel %vm250, %v692, 0.0
  %710 = vadd.xlane.f32.xlu0 %v709
  %v711 = vpop.xlane.xlu0 %710
  %v712 = vsel %vm250, %v694, 0.0
  %713 = vadd.xlane.f32.xlu0 %v712
  %v714 = vpop.xlane.xlu0 %713
  %v715 = vsel %vm250, %v696, 0.0
  %716 = vadd.xlane.f32.xlu0 %v715
  %v717 = vpop.xlane.xlu0 %716
  %v718 = vsel %vm250, %v698, 0.0
  %719 = vadd.xlane.f32.xlu0 %v718
  %v720 = vpop.xlane.xlu0 %719
  %v721 = vsel %vm250, %v700, 0.0
  %722 = vadd.xlane.f32.xlu0 %v721
  %v723 = vpop.xlane.xlu0 %722
  %v724 = vsel %vm250, %v702, 0.0
  %725 = vadd.xlane.f32.xlu0 %v724
  %v726 = vpop.xlane.xlu0 %725
  %v727 = vrcp.pop %v705
  %v728 = vrcp.pop %v708
  %v729 = vrcp.pop %v711
  %v730 = vrcp.pop %v714
  %v731 = vrcp.pop %v717
  %v732 = vrcp.pop %v720
  %v733 = vrcp.pop %v723
  %v734 = vrcp.pop %v726
  %v735 = vmul.f32 %v688, %v727
  %v736 = vmul.f32 %v690, %v728
  %v737 = vmul.f32 %v692, %v729
  %v738 = vmul.f32 %v694, %v730
  %v739 = vmul.f32 %v696, %v731
  %v740 = vmul.f32 %v698, %v732
  %v741 = vmul.f32 %v700, %v733
  %v742 = vmul.f32 %v702, %v734
  %v743 = vpack.c.bf16 %v735, %v735
  %v744 = vpack.c.bf16 %v736, %v736
  %v745 = vpack.c.bf16 %v737, %v737
  %v746 = vpack.c.bf16 %v738, %v738
  %v747 = vpack.c.bf16 %v739, %v739
  %v748 = vpack.c.bf16 %v740, %v740
  %v749 = vpack.c.bf16 %v741, %v741
  %v750 = vpack.c.bf16 %v742, %v742
  %751 = vrot.lane.b32.xlu0 %v246, 64
  %v752 = vpop.permute.xlu0 %751
  %v754 = vsel %vm250, %v743, 0
  %vm756 = vcmask 1043456
  %v758 = vsel %vm756, %v752, 0
  %760 = vmatprep.subr.bf16.mxu0 0
  %761 = vmatpush1.bf16.msra.mxu0 %v758
  %762 = vmatprep.subr.bf16.mxu0 0
  %763 = vmatpush1.bf16.msra.mxu0 0
  %764 = vmatprep.subr.bf16.mxu0 0
  %765 = vmatpush1.bf16.msra.mxu0 0
  %766 = vmatprep.subr.bf16.mxu0 0
  %767 = vmatpush1.bf16.msra.mxu0 0
  %768 = vmatprep.subr.bf16.mxu0 0
  %769 = vmatpush1.bf16.msra.mxu0 0
  %770 = vmatprep.subr.bf16.mxu0 0
  %771 = vmatpush1.bf16.msra.mxu0 0
  %772 = vmatprep.subr.bf16.mxu0 0
  %773 = vmatpush1.bf16.msra.mxu0 0
  %774 = vmatprep.subr.bf16.mxu0 0
  %775 = vmatpush1.bf16.msra.mxu0 0
  %776 = vmatprep.subr.bf16.mxu0 0
  %777 = vmatpush1.bf16.msra.mxu0 0
  %778 = vmatprep.subr.bf16.mxu0 0
  %779 = vmatpush1.bf16.msra.mxu0 0
  %780 = vmatprep.subr.bf16.mxu0 0
  %781 = vmatpush1.bf16.msra.mxu0 0
  %782 = vmatprep.subr.bf16.mxu0 0
  %783 = vmatpush1.bf16.msra.mxu0 0
  %784 = vmatprep.subr.bf16.mxu0 0
  %785 = vmatpush1.bf16.msra.mxu0 0
  %786 = vmatprep.subr.bf16.mxu0 0
  %787 = vmatpush1.bf16.msra.mxu0 0
  %788 = vmatprep.subr.bf16.mxu0 0
  %789 = vmatpush1.bf16.msra.mxu0 0
  %790 = vmatprep.subr.bf16.mxu0 0
  %791 = vmatpush1.bf16.msra.mxu0 0
  %792 = vmatprep.mubr.bf16.mxu0 0
  %793 = vmatmul.mubr.bf16.gmra.mrb[0].mxu0 %v754
  %v794 = vpop.f32.mrb[0].mxu0
  %v795 = vadd.f32 0.0, %v794
  %v796 = vpop.f32.mrb[0].mxu0
  %v797 = vpop.f32.mrb[0].mxu0
  %v798 = vpop.f32.mrb[0].mxu0
  %799 = vdwg.mxu0
  %800 = vrot.lane.b32.xlu0 %v247, 64
  %v801 = vpop.permute.xlu0 %800
  %v803 = vsel %vm250, %v744, 0
  %v806 = vsel %vm756, %v801, 0
  %808 = vmatprep.subr.bf16.mxu0 0
  %809 = vmatpush1.bf16.msra.mxu0 %v806
  %810 = vmatprep.subr.bf16.mxu0 0
  %811 = vmatpush1.bf16.msra.mxu0 0
  %812 = vmatprep.subr.bf16.mxu0 0
  %813 = vmatpush1.bf16.msra.mxu0 0
  %814 = vmatprep.subr.bf16.mxu0 0
  %815 = vmatpush1.bf16.msra.mxu0 0
  %816 = vmatprep.subr.bf16.mxu0 0
  %817 = vmatpush1.bf16.msra.mxu0 0
  %818 = vmatprep.subr.bf16.mxu0 0
  %819 = vmatpush1.bf16.msra.mxu0 0
  %820 = vmatprep.subr.bf16.mxu0 0
  %821 = vmatpush1.bf16.msra.mxu0 0
  %822 = vmatprep.subr.bf16.mxu0 0
  %823 = vmatpush1.bf16.msra.mxu0 0
  %824 = vmatprep.subr.bf16.mxu0 0
  %825 = vmatpush1.bf16.msra.mxu0 0
  %826 = vmatprep.subr.bf16.mxu0 0
  %827 = vmatpush1.bf16.msra.mxu0 0
  %828 = vmatprep.subr.bf16.mxu0 0
  %829 = vmatpush1.bf16.msra.mxu0 0
  %830 = vmatprep.subr.bf16.mxu0 0
  %831 = vmatpush1.bf16.msra.mxu0 0
  %832 = vmatprep.subr.bf16.mxu0 0
  %833 = vmatpush1.bf16.msra.mxu0 0
  %834 = vmatprep.subr.bf16.mxu0 0
  %835 = vmatpush1.bf16.msra.mxu0 0
  %836 = vmatprep.subr.bf16.mxu0 0
  %837 = vmatpush1.bf16.msra.mxu0 0
  %838 = vmatprep.subr.bf16.mxu0 0
  %839 = vmatpush1.bf16.msra.mxu0 0
  %840 = vmatprep.mubr.bf16.mxu0 0
  %841 = vmatmul.mubr.bf16.gmra.mrb[0].mxu0 %v803
  %v842 = vpop.f32.mrb[0].mxu0
  %v843 = vadd.f32 0.0, %v842
  %v844 = vpop.f32.mrb[0].mxu0
  %v845 = vpop.f32.mrb[0].mxu0
  %v846 = vpop.f32.mrb[0].mxu0
  %847 = vdwg.mxu0
  %848 = vrot.lane.b32.xlu0 %v246, 56
  %v849 = vpop.permute.xlu0 %848
  %v851 = vsel %vm250, %v745, 0
  %v854 = vsel %vm756, %v849, 0
  %856 = vmatprep.subr.bf16.mxu0 0
  %857 = vmatpush1.bf16.msra.mxu0 %v854
  %858 = vmatprep.subr.bf16.mxu0 0
  %859 = vmatpush1.bf16.msra.mxu0 0
  %860 = vmatprep.subr.bf16.mxu0 0
  %861 = vmatpush1.bf16.msra.mxu0 0
  %862 = vmatprep.subr.bf16.mxu0 0
  %863 = vmatpush1.bf16.msra.mxu0 0
  %864 = vmatprep.subr.bf16.mxu0 0
  %865 = vmatpush1.bf16.msra.mxu0 0
  %866 = vmatprep.subr.bf16.mxu0 0
  %867 = vmatpush1.bf16.msra.mxu0 0
  %868 = vmatprep.subr.bf16.mxu0 0
  %869 = vmatpush1.bf16.msra.mxu0 0
  %870 = vmatprep.subr.bf16.mxu0 0
  %871 = vmatpush1.bf16.msra.mxu0 0
  %872 = vmatprep.subr.bf16.mxu0 0
  %873 = vmatpush1.bf16.msra.mxu0 0
  %874 = vmatprep.subr.bf16.mxu0 0
  %875 = vmatpush1.bf16.msra.mxu0 0
  %876 = vmatprep.subr.bf16.mxu0 0
  %877 = vmatpush1.bf16.msra.mxu0 0
  %878 = vmatprep.subr.bf16.mxu0 0
  %879 = vmatpush1.bf16.msra.mxu0 0
  %880 = vmatprep.subr.bf16.mxu0 0
  %881 = vmatpush1.bf16.msra.mxu0 0
  %882 = vmatprep.subr.bf16.mxu0 0
  %883 = vmatpush1.bf16.msra.mxu0 0
  %884 = vmatprep.subr.bf16.mxu0 0
  %885 = vmatpush1.bf16.msra.mxu0 0
  %886 = vmatprep.subr.bf16.mxu0 0
  %887 = vmatpush1.bf16.msra.mxu0 0
  %888 = vmatprep.mubr.bf16.mxu0 0
  %889 = vmatmul.mubr.bf16.gmra.mrb[0].mxu0 %v851
  %v890 = vpop.f32.mrb[0].mxu0
  %v891 = vadd.f32 0.0, %v890
  %v892 = vpop.f32.mrb[0].mxu0
  %v893 = vpop.f32.mrb[0].mxu0
  %v894 = vpop.f32.mrb[0].mxu0
  %895 = vdwg.mxu0
  %896 = vrot.lane.b32.xlu0 %v247, 56
  %v897 = vpop.permute.xlu0 %896
  %v899 = vsel %vm250, %v746, 0
  %v902 = vsel %vm756, %v897, 0
  %904 = vmatprep.subr.bf16.mxu0 0
  %905 = vmatpush1.bf16.msra.mxu0 %v902
  %906 = vmatprep.subr.bf16.mxu0 0
  %907 = vmatpush1.bf16.msra.mxu0 0
  %908 = vmatprep.subr.bf16.mxu0 0
  %909 = vmatpush1.bf16.msra.mxu0 0
  %910 = vmatprep.subr.bf16.mxu0 0
  %911 = vmatpush1.bf16.msra.mxu0 0
  %912 = vmatprep.subr.bf16.mxu0 0
  %913 = vmatpush1.bf16.msra.mxu0 0
  %914 = vmatprep.subr.bf16.mxu0 0
  %915 = vmatpush1.bf16.msra.mxu0 0
  %916 = vmatprep.subr.bf16.mxu0 0
  %917 = vmatpush1.bf16.msra.mxu0 0
  %918 = vmatprep.subr.bf16.mxu0 0
  %919 = vmatpush1.bf16.msra.mxu0 0
  %920 = vmatprep.subr.bf16.mxu0 0
  %921 = vmatpush1.bf16.msra.mxu0 0
  %922 = vmatprep.subr.bf16.mxu0 0
  %923 = vmatpush1.bf16.msra.mxu0 0
  %924 = vmatprep.subr.bf16.mxu0 0
  %925 = vmatpush1.bf16.msra.mxu0 0
  %926 = vmatprep.subr.bf16.mxu0 0
  %927 = vmatpush1.bf16.msra.mxu0 0
  %928 = vmatprep.subr.bf16.mxu0 0
  %929 = vmatpush1.bf16.msra.mxu0 0
  %930 = vmatprep.subr.bf16.mxu0 0
  %931 = vmatpush1.bf16.msra.mxu0 0
  %932 = vmatprep.subr.bf16.mxu0 0
  %933 = vmatpush1.bf16.msra.mxu0 0
  %934 = vmatprep.subr.bf16.mxu0 0
  %935 = vmatpush1.bf16.msra.mxu0 0
  %936 = vmatprep.mubr.bf16.mxu0 0
  %937 = vmatmul.mubr.bf16.gmra.mrb[0].mxu0 %v899
  %v938 = vpop.f32.mrb[0].mxu0
  %v939 = vadd.f32 0.0, %v938
  %v940 = vpop.f32.mrb[0].mxu0
  %v941 = vpop.f32.mrb[0].mxu0
  %v942 = vpop.f32.mrb[0].mxu0
  %943 = vdwg.mxu0
  %944 = vrot.lane.b32.xlu0 %v246, 48
  %v945 = vpop.permute.xlu0 %944
  %v947 = vsel %vm250, %v747, 0
  %v950 = vsel %vm756, %v945, 0
  %952 = vmatprep.subr.bf16.mxu0 0
  %953 = vmatpush1.bf16.msra.mxu0 %v950
  %954 = vmatprep.subr.bf16.mxu0 0
  %955 = vmatpush1.bf16.msra.mxu0 0
  %956 = vmatprep.subr.bf16.mxu0 0
  %957 = vmatpush1.bf16.msra.mxu0 0
  %958 = vmatprep.subr.bf16.mxu0 0
  %959 = vmatpush1.bf16.msra.mxu0 0
  %960 = vmatprep.subr.bf16.mxu0 0
  %961 = vmatpush1.bf16.msra.mxu0 0
  %962 = vmatprep.subr.bf16.mxu0 0
  %963 = vmatpush1.bf16.msra.mxu0 0
  %964 = vmatprep.subr.bf16.mxu0 0
  %965 = vmatpush1.bf16.msra.mxu0 0
  %966 = vmatprep.subr.bf16.mxu0 0
  %967 = vmatpush1.bf16.msra.mxu0 0
  %968 = vmatprep.subr.bf16.mxu0 0
  %969 = vmatpush1.bf16.msra.mxu0 0
  %970 = vmatprep.subr.bf16.mxu0 0
  %971 = vmatpush1.bf16.msra.mxu0 0
  %972 = vmatprep.subr.bf16.mxu0 0
  %973 = vmatpush1.bf16.msra.mxu0 0
  %974 = vmatprep.subr.bf16.mxu0 0
  %975 = vmatpush1.bf16.msra.mxu0 0
  %976 = vmatprep.subr.bf16.mxu0 0
  %977 = vmatpush1.bf16.msra.mxu0 0
  %978 = vmatprep.subr.bf16.mxu0 0
  %979 = vmatpush1.bf16.msra.mxu0 0
  %980 = vmatprep.subr.bf16.mxu0 0
  %981 = vmatpush1.bf16.msra.mxu0 0
  %982 = vmatprep.subr.bf16.mxu0 0
  %983 = vmatpush1.bf16.msra.mxu0 0
  %984 = vmatprep.mubr.bf16.mxu0 0
  %985 = vmatmul.mubr.bf16.gmra.mrb[0].mxu0 %v947
  %v986 = vpop.f32.mrb[0].mxu0
  %v987 = vadd.f32 0.0, %v986
  %v988 = vpop.f32.mrb[0].mxu0
  %v989 = vpop.f32.mrb[0].mxu0
  %v990 = vpop.f32.mrb[0].mxu0
  %991 = vdwg.mxu0
  %992 = vrot.lane.b32.xlu0 %v247, 48
  %v993 = vpop.permute.xlu0 %992
  %v995 = vsel %vm250, %v748, 0
  %v998 = vsel %vm756, %v993, 0
  %1000 = vmatprep.subr.bf16.mxu0 0
  %1001 = vmatpush1.bf16.msra.mxu0 %v998
  %1002 = vmatprep.subr.bf16.mxu0 0
  %1003 = vmatpush1.bf16.msra.mxu0 0
  %1004 = vmatprep.subr.bf16.mxu0 0
  %1005 = vmatpush1.bf16.msra.mxu0 0
  %1006 = vmatprep.subr.bf16.mxu0 0
  %1007 = vmatpush1.bf16.msra.mxu0 0
  %1008 = vmatprep.subr.bf16.mxu0 0
  %1009 = vmatpush1.bf16.msra.mxu0 0
  %1010 = vmatprep.subr.bf16.mxu0 0
  %1011 = vmatpush1.bf16.msra.mxu0 0
  %1012 = vmatprep.subr.bf16.mxu0 0
  %1013 = vmatpush1.bf16.msra.mxu0 0
  %1014 = vmatprep.subr.bf16.mxu0 0
  %1015 = vmatpush1.bf16.msra.mxu0 0
  %1016 = vmatprep.subr.bf16.mxu0 0
  %1017 = vmatpush1.bf16.msra.mxu0 0
  %1018 = vmatprep.subr.bf16.mxu0 0
  %1019 = vmatpush1.bf16.msra.mxu0 0
  %1020 = vmatprep.subr.bf16.mxu0 0
  %1021 = vmatpush1.bf16.msra.mxu0 0
  %1022 = vmatprep.subr.bf16.mxu0 0
  %1023 = vmatpush1.bf16.msra.mxu0 0
  %1024 = vmatprep.subr.bf16.mxu0 0
  %1025 = vmatpush1.bf16.msra.mxu0 0
  %1026 = vmatprep.subr.bf16.mxu0 0
  %1027 = vmatpush1.bf16.msra.mxu0 0
  %1028 = vmatprep.subr.bf16.mxu0 0
  %1029 = vmatpush1.bf16.msra.mxu0 0
  %1030 = vmatprep.subr.bf16.mxu0 0
  %1031 = vmatpush1.bf16.msra.mxu0 0
  %1032 = vmatprep.mubr.bf16.mxu0 0
  %1033 = vmatmul.mubr.bf16.gmra.mrb[0].mxu0 %v995
  %v1034 = vpop.f32.mrb[0].mxu0
  %v1035 = vadd.f32 0.0, %v1034
  %v1036 = vpop.f32.mrb[0].mxu0
  %v1037 = vpop.f32.mrb[0].mxu0
  %v1038 = vpop.f32.mrb[0].mxu0
  %1039 = vdwg.mxu0
  %1040 = vrot.lane.b32.xlu0 %v246, 40
  %v1041 = vpop.permute.xlu0 %1040
  %v1043 = vsel %vm250, %v749, 0
  %v1046 = vsel %vm756, %v1041, 0
  %1048 = vmatprep.subr.bf16.mxu0 0
  %1049 = vmatpush1.bf16.msra.mxu0 %v1046
  %1050 = vmatprep.subr.bf16.mxu0 0
  %1051 = vmatpush1.bf16.msra.mxu0 0
  %1052 = vmatprep.subr.bf16.mxu0 0
  %1053 = vmatpush1.bf16.msra.mxu0 0
  %1054 = vmatprep.subr.bf16.mxu0 0
  %1055 = vmatpush1.bf16.msra.mxu0 0
  %1056 = vmatprep.subr.bf16.mxu0 0
  %1057 = vmatpush1.bf16.msra.mxu0 0
  %1058 = vmatprep.subr.bf16.mxu0 0
  %1059 = vmatpush1.bf16.msra.mxu0 0
  %1060 = vmatprep.subr.bf16.mxu0 0
  %1061 = vmatpush1.bf16.msra.mxu0 0
  %1062 = vmatprep.subr.bf16.mxu0 0
  %1063 = vmatpush1.bf16.msra.mxu0 0
  %1064 = vmatprep.subr.bf16.mxu0 0
  %1065 = vmatpush1.bf16.msra.mxu0 0
  %1066 = vmatprep.subr.bf16.mxu0 0
  %1067 = vmatpush1.bf16.msra.mxu0 0
  %1068 = vmatprep.subr.bf16.mxu0 0
  %1069 = vmatpush1.bf16.msra.mxu0 0
  %1070 = vmatprep.subr.bf16.mxu0 0
  %1071 = vmatpush1.bf16.msra.mxu0 0
  %1072 = vmatprep.subr.bf16.mxu0 0
  %1073 = vmatpush1.bf16.msra.mxu0 0
  %1074 = vmatprep.subr.bf16.mxu0 0
  %1075 = vmatpush1.bf16.msra.mxu0 0
  %1076 = vmatprep.subr.bf16.mxu0 0
  %1077 = vmatpush1.bf16.msra.mxu0 0
  %1078 = vmatprep.subr.bf16.mxu0 0
  %1079 = vmatpush1.bf16.msra.mxu0 0
  %1080 = vmatprep.mubr.bf16.mxu0 0
  %1081 = vmatmul.mubr.bf16.gmra.mrb[0].mxu0 %v1043
  %v1082 = vpop.f32.mrb[0].mxu0
  %v1083 = vadd.f32 0.0, %v1082
  %v1084 = vpop.f32.mrb[0].mxu0
  %v1085 = vpop.f32.mrb[0].mxu0
  %v1086 = vpop.f32.mrb[0].mxu0
  %1087 = vdwg.mxu0
  %1088 = vrot.lane.b32.xlu0 %v247, 40
  %v1089 = vpop.permute.xlu0 %1088
  %v1091 = vsel %vm250, %v750, 0
  %v1094 = vsel %vm756, %v1089, 0
  %1096 = vmatprep.subr.bf16.mxu0 0
  %1097 = vmatpush1.bf16.msra.mxu0 %v1094
  %1098 = vmatprep.subr.bf16.mxu0 0
  %1099 = vmatpush1.bf16.msra.mxu0 0
  %1100 = vmatprep.subr.bf16.mxu0 0
  %1101 = vmatpush1.bf16.msra.mxu0 0
  %1102 = vmatprep.subr.bf16.mxu0 0
  %1103 = vmatpush1.bf16.msra.mxu0 0
  %1104 = vmatprep.subr.bf16.mxu0 0
  %1105 = vmatpush1.bf16.msra.mxu0 0
  %1106 = vmatprep.subr.bf16.mxu0 0
  %1107 = vmatpush1.bf16.msra.mxu0 0
  %1108 = vmatprep.subr.bf16.mxu0 0
  %1109 = vmatpush1.bf16.msra.mxu0 0
  %1110 = vmatprep.subr.bf16.mxu0 0
  %1111 = vmatpush1.bf16.msra.mxu0 0
  %1112 = vmatprep.subr.bf16.mxu0 0
  %1113 = vmatpush1.bf16.msra.mxu0 0
  %1114 = vmatprep.subr.bf16.mxu0 0
  %1115 = vmatpush1.bf16.msra.mxu0 0
  %1116 = vmatprep.subr.bf16.mxu0 0
  %1117 = vmatpush1.bf16.msra.mxu0 0
  %1118 = vmatprep.subr.bf16.mxu0 0
  %1119 = vmatpush1.bf16.msra.mxu0 0
  %1120 = vmatprep.subr.bf16.mxu0 0
  %1121 = vmatpush1.bf16.msra.mxu0 0
  %1122 = vmatprep.subr.bf16.mxu0 0
  %1123 = vmatpush1.bf16.msra.mxu0 0
  %1124 = vmatprep.subr.bf16.mxu0 0
  %1125 = vmatpush1.bf16.msra.mxu0 0
  %1126 = vmatprep.subr.bf16.mxu0 0
  %1127 = vmatpush1.bf16.msra.mxu0 0
  %1128 = vmatprep.mubr.bf16.mxu0 0
  %1129 = vmatmul.mubr.bf16.gmra.mrb[0].mxu0 %v1091
  %v1130 = vpop.f32.mrb[0].mxu0
  %v1131 = vadd.f32 0.0, %v1130
  %v1132 = vpop.f32.mrb[0].mxu0
  %v1133 = vpop.f32.mrb[0].mxu0
  %v1134 = vpop.f32.mrb[0].mxu0
  %1135 = vdwg.mxu0
  %1138 = vrot.lane.b32.xlu0 %v891, 8
  %v1139 = vpop.permute.xlu0 %1138
  %1140 = vrot.lane.b32.xlu0 %v939, 8
  %v1141 = vpop.permute.xlu0 %1140
  %1146 = vrot.lane.b32.xlu0 %v987, 16
  %v1147 = vpop.permute.xlu0 %1146
  %1148 = vrot.lane.b32.xlu0 %v1035, 16
  %v1149 = vpop.permute.xlu0 %1148
  %1154 = vrot.lane.b32.xlu0 %v1083, 24
  %v1155 = vpop.permute.xlu0 %1154
  %1156 = vrot.lane.b32.xlu0 %v1131, 24
  %v1157 = vpop.permute.xlu0 %1156
  %v1160 = vsel %vm250, %v795, %v1139
  %v1161 = vsel %vm250, %v843, %v1141
  %vm1162 = vcmask 130048
  %v1163 = vsel %vm1162, %v1160, %v1147
  %v1164 = vsel %vm1162, %v1161, %v1149
  %vm1165 = vcmask 195584
  %v1166 = vsel %vm1165, %v1163, %v1155
  %v1167 = vsel %vm1165, %v1164, %v1157
  %v1168 = vpack.c.bf16 %v1167, %v1166
  %v1169 = vlaneseq
  %v1170 = vshrl.u32 %v1169, 7
  %v1171 = vsub.s32 1, %v1170
  %v1172 = vrot.slane %v145, %v1171
  %1173 = vrot.lane.b32.xlu0 %v194, 32
  %v1174 = vpop.permute.xlu0 %1173
  %1175 = vrot.lane.b32.xlu0 %v195, 32
  %v1176 = vpop.permute.xlu0 %1175
  %v1180 = vsel %vm77, %v1168, 0
  %1182 = vmatprep.subr.bf16.mxu0 0
  %1183 = vmatpush1.bf16.msra.mxu0 %v1174
  %1184 = vmatprep.subr.bf16.mxu0 0
  %1185 = vmatpush1.bf16.msra.mxu0 %v1176
  %1186 = vmatprep.subr.bf16.mxu0 0
  %1187 = vmatpush1.bf16.msra.mxu0 0
  %1188 = vmatprep.subr.bf16.mxu0 0
  %1189 = vmatpush1.bf16.msra.mxu0 0
  %1190 = vmatprep.subr.bf16.mxu0 0
  %1191 = vmatpush1.bf16.msra.mxu0 0
  %1192 = vmatprep.subr.bf16.mxu0 0
  %1193 = vmatpush1.bf16.msra.mxu0 0
  %1194 = vmatprep.subr.bf16.mxu0 0
  %1195 = vmatpush1.bf16.msra.mxu0 0
  %1196 = vmatprep.subr.bf16.mxu0 0
  %1197 = vmatpush1.bf16.msra.mxu0 0
  %1198 = vmatprep.subr.bf16.mxu0 0
  %1199 = vmatpush1.bf16.msra.mxu0 0
  %1200 = vmatprep.subr.bf16.mxu0 0
  %1201 = vmatpush1.bf16.msra.mxu0 0
  %1202 = vmatprep.subr.bf16.mxu0 0
  %1203 = vmatpush1.bf16.msra.mxu0 0
  %1204 = vmatprep.subr.bf16.mxu0 0
  %1205 = vmatpush1.bf16.msra.mxu0 0
  %1206 = vmatprep.subr.bf16.mxu0 0
  %1207 = vmatpush1.bf16.msra.mxu0 0
  %1208 = vmatprep.subr.bf16.mxu0 0
  %1209 = vmatpush1.bf16.msra.mxu0 0
  %1210 = vmatprep.subr.bf16.mxu0 0
  %1211 = vmatpush1.bf16.msra.mxu0 0
  %1212 = vmatprep.subr.bf16.mxu0 0
  %1213 = vmatpush1.bf16.msra.mxu0 0
  %1214 = vmatprep.mubr.bf16.mxu0 0
  %1215 = vmatmul.mubr.bf16.gmra.mrb[0].mxu0 %v1180
  %v1216 = vpop.f32.mrb[0].mxu0
  %v1217 = vadd.f32 %v1172, %v1216
  %v1218 = vpop.f32.mrb[0].mxu0
  %v1219 = vpop.f32.mrb[0].mxu0
  %v1220 = vadd.f32 %v1172, %v1219
  %v1221 = vpop.f32.mrb[0].mxu0
  %1222 = vdwg.mxu0
  %v1223 = vadd.f32 %v116, %v1217
  %v1224 = vadd.f32 %v119, %v1220
  %v1225 = vsel %vm77, %v1223, 0.0
  %1226 = vadd.xlane.f32.xlu0 %v1225
  %v1227 = vpop.xlane.xlu0 %1226
  %v1228 = vsel %vm77, %v1224, 0.0
  %1229 = vadd.xlane.f32.xlu0 %v1228
  %v1230 = vpop.xlane.xlu0 %1229
  %v1231 = vmul.f32 %v1227, %v152
  %v1232 = vmul.f32 %v1230, %v152
  %v1233 = vsub.f32 %v1223, %v1231
  %v1234 = vsub.f32 %v1224, %v1232
  %v1235 = vmul.f32 %v1233, %v1233
  %v1236 = vmul.f32 %v1234, %v1234
  %v1237 = vsel %vm77, %v1235, 0.0
  %1238 = vadd.xlane.f32.xlu0 %v1237
  %v1239 = vpop.xlane.xlu0 %1238
  %v1240 = vsel %vm77, %v1236, 0.0
  %1241 = vadd.xlane.f32.xlu0 %v1240
  %v1242 = vpop.xlane.xlu0 %1241
  %v1243 = vmul.f32 %v1239, %v152
  %v1244 = vmul.f32 %v1242, %v152
  %v1245 = vadd.f32 %v1243, 1e-05
  %v1246 = vadd.f32 %v1244, 1e-05
  %v1247 = vrsqrt.pop %v1245
  %v1248 = vrsqrt.pop %v1246
  %v1249 = vmul.f32 %v1233, %v1247
  %v1250 = vmul.f32 %v1234, %v1248
  %1251 = vrot.lane.b32.xlu0 %v176, 64
  %v1252 = vpop.permute.xlu0 %1251
  %v1254 = vmul.f32 %v1249, %v1252
  %v1255 = vmul.f32 %v1250, %v1252
  %1256 = vrot.lane.b32.xlu0 %v176, 32
  %v1257 = vpop.permute.xlu0 %1256
  %v1259 = vadd.f32 %v1254, %v1257
  %v1260 = vadd.f32 %v1255, %v1257
  %v1261 = vpack.c.bf16 %v1260, %v1259
  %v1262 = vlaneseq
  %v1263 = vshrl.u32 %v1262, 7
  %v1264 = vsub.s32 2, %v1263
  %v1265 = vrot.slane %v145, %v1264
  %v1266 = vunpack.c.h.b16 %v125
  %v1267 = vunpack.c.h.b16 %v126
  %v1268 = vunpack.c.h.b16 %v127
  %v1269 = vunpack.c.h.b16 %v128
  %v1270 = vpack.c.b16 %v1267, %v1266
  %v1271 = vpack.c.b16 %v1269, %v1268
  %v1275 = vsel %vm77, %v1261, 0
  %1277 = vmatprep.subr.bf16.mxu0 0
  %1278 = vmatpush1.bf16.msra.mxu0 %v1270
  %1279 = vmatprep.subr.bf16.mxu0 0
  %1280 = vmatpush1.bf16.msra.mxu0 %v1271
  %1281 = vmatprep.subr.bf16.mxu0 0
  %1282 = vmatpush1.bf16.msra.mxu0 0
  %1283 = vmatprep.subr.bf16.mxu0 0
  %1284 = vmatpush1.bf16.msra.mxu0 0
  %1285 = vmatprep.subr.bf16.mxu0 0
  %1286 = vmatpush1.bf16.msra.mxu0 0
  %1287 = vmatprep.subr.bf16.mxu0 0
  %1288 = vmatpush1.bf16.msra.mxu0 0
  %1289 = vmatprep.subr.bf16.mxu0 0
  %1290 = vmatpush1.bf16.msra.mxu0 0
  %1291 = vmatprep.subr.bf16.mxu0 0
  %1292 = vmatpush1.bf16.msra.mxu0 0
  %1293 = vmatprep.subr.bf16.mxu0 0
  %1294 = vmatpush1.bf16.msra.mxu0 0
  %1295 = vmatprep.subr.bf16.mxu0 0
  %1296 = vmatpush1.bf16.msra.mxu0 0
  %1297 = vmatprep.subr.bf16.mxu0 0
  %1298 = vmatpush1.bf16.msra.mxu0 0
  %1299 = vmatprep.subr.bf16.mxu0 0
  %1300 = vmatpush1.bf16.msra.mxu0 0
  %1301 = vmatprep.subr.bf16.mxu0 0
  %1302 = vmatpush1.bf16.msra.mxu0 0
  %1303 = vmatprep.subr.bf16.mxu0 0
  %1304 = vmatpush1.bf16.msra.mxu0 0
  %1305 = vmatprep.subr.bf16.mxu0 0
  %1306 = vmatpush1.bf16.msra.mxu0 0
  %1307 = vmatprep.subr.bf16.mxu0 0
  %1308 = vmatpush1.bf16.msra.mxu0 0
  %1309 = vmatprep.mubr.bf16.mxu0 0
  %1310 = vmatmul.mubr.bf16.gmra.mrb[0].mxu0 %v1275
  %v1311 = vpop.f32.mrb[0].mxu0
  %v1312 = vadd.f32 %v1265, %v1311
  %v1313 = vpop.f32.mrb[0].mxu0
  %v1314 = vpop.f32.mrb[0].mxu0
  %v1315 = vadd.f32 %v1265, %v1314
  %v1316 = vpop.f32.mrb[0].mxu0
  %1317 = vdwg.mxu0
  %v1318 = vmax.f32 %v1312, 0.0
  %v1319 = vmax.f32 %v1315, 0.0
  %v1320 = vpack.c.bf16 %v1319, %v1318
  %v1337 = vunpack.c.l.b16 %v129
  %v1338 = vunpack.c.l.b16 %v130
  %v1339 = vunpack.c.l.b16 %v131
  %v1340 = vunpack.c.l.b16 %v132
  %v1341 = vunpack.c.l.b16 %v133
  %v1342 = vunpack.c.l.b16 %v134
  %v1343 = vunpack.c.l.b16 %v135
  %v1344 = vunpack.c.l.b16 %v136
  %v1345 = vunpack.c.l.b16 %v137
  %v1346 = vunpack.c.l.b16 %v138
  %v1347 = vunpack.c.l.b16 %v139
  %v1348 = vunpack.c.l.b16 %v140
  %v1349 = vunpack.c.l.b16 %v141
  %v1350 = vunpack.c.l.b16 %v142
  %v1351 = vunpack.c.l.b16 %v143
  %v1352 = vunpack.c.l.b16 %v144
  %v1353 = vpack.c.b16 %v1338, %v1337
  %v1354 = vpack.c.b16 %v1340, %v1339
  %v1355 = vpack.c.b16 %v1342, %v1341
  %v1356 = vpack.c.b16 %v1344, %v1343
  %v1357 = vpack.c.b16 %v1346, %v1345
  %v1358 = vpack.c.b16 %v1348, %v1347
  %v1359 = vpack.c.b16 %v1350, %v1349
  %v1360 = vpack.c.b16 %v1352, %v1351
  %1370 = vrot.lane.b32.xlu0 %v1172, 96
  %v1371 = vpop.permute.xlu0 %1370
  %1373 = vmatprep.subr.bf16.mxu0 0
  %1374 = vmatpush1.bf16.msra.mxu0 %v1353
  %1375 = vmatprep.subr.bf16.mxu0 0
  %1376 = vmatpush1.bf16.msra.mxu0 %v1354
  %1377 = vmatprep.subr.bf16.mxu0 0
  %1378 = vmatpush1.bf16.msra.mxu0 %v1355
  %1379 = vmatprep.subr.bf16.mxu0 0
  %1380 = vmatpush1.bf16.msra.mxu0 %v1356
  %1381 = vmatprep.subr.bf16.mxu0 0
  %1382 = vmatpush1.bf16.msra.mxu0 %v1357
  %1383 = vmatprep.subr.bf16.mxu0 0
  %1384 = vmatpush1.bf16.msra.mxu0 %v1358
  %1385 = vmatprep.subr.bf16.mxu0 0
  %1386 = vmatpush1.bf16.msra.mxu0 %v1359
  %1387 = vmatprep.subr.bf16.mxu0 0
  %1388 = vmatpush1.bf16.msra.mxu0 %v1360
  %1389 = vmatprep.subr.bf16.mxu0 0
  %1390 = vmatpush1.bf16.msra.mxu0 0
  %1391 = vmatprep.subr.bf16.mxu0 0
  %1392 = vmatpush1.bf16.msra.mxu0 0
  %1393 = vmatprep.subr.bf16.mxu0 0
  %1394 = vmatpush1.bf16.msra.mxu0 0
  %1395 = vmatprep.subr.bf16.mxu0 0
  %1396 = vmatpush1.bf16.msra.mxu0 0
  %1397 = vmatprep.subr.bf16.mxu0 0
  %1398 = vmatpush1.bf16.msra.mxu0 0
  %1399 = vmatprep.subr.bf16.mxu0 0
  %1400 = vmatpush1.bf16.msra.mxu0 0
  %1401 = vmatprep.subr.bf16.mxu0 0
  %1402 = vmatpush1.bf16.msra.mxu0 0
  %1403 = vmatprep.subr.bf16.mxu0 0
  %1404 = vmatpush1.bf16.msra.mxu0 0
  %1405 = vmatprep.mubr.bf16.mxu0 0
  %1406 = vmatmul.mubr.bf16.gmra.mrb[0].mxu0 %v1320
  %v1407 = vpop.f32.mrb[0].mxu0
  %v1408 = vadd.f32 %v1371, %v1407
  %v1409 = vpop.f32.mrb[0].mxu0
  %v1410 = vpop.f32.mrb[0].mxu0
  %v1411 = vadd.f32 %v1371, %v1410
  %v1412 = vpop.f32.mrb[0].mxu0
  %1413 = vdwg.mxu0
  %v1414 = vadd.f32 %v1223, %v1408
  %v1415 = vadd.f32 %v1224, %v1411
  %s1416 = scalar_lea.vmem %s2, 32
  %v1417 = vld [vmem:[%s1416] sm:$0xff]
  %v1418 = vld [vmem:[%s1416 + $0x8] sm:$0xff]
  %v1419 = vld [vmem:[%s1416 + $0x10] sm:$0xff]
  %v1420 = vld [vmem:[%s1416 + $0x18] sm:$0xff]
  %s1421 = scalar_lea.vmem %s3, 64
  %v1422 = vld [vmem:[%s1421] sm:$0xf]
  %v1423 = vld [vmem:[%s1421 + $0x4] sm:$0xf]
  %v1424 = vld [vmem:[%s1421 + $0x8] sm:$0xf]
  %v1425 = vld [vmem:[%s1421 + $0xc] sm:$0xf]
  %v1426 = vld [vmem:[%s1421 + $0x10] sm:$0xf]
  %v1427 = vld [vmem:[%s1421 + $0x14] sm:$0xf]
  %v1428 = vld [vmem:[%s1421 + $0x18] sm:$0xf]
  %v1429 = vld [vmem:[%s1421 + $0x1c] sm:$0xf]
  %v1430 = vld [vmem:[%s1421 + $0x20] sm:$0xf]
  %v1431 = vld [vmem:[%s1421 + $0x24] sm:$0xf]
  %v1432 = vld [vmem:[%s1421 + $0x28] sm:$0xf]
  %v1433 = vld [vmem:[%s1421 + $0x2c] sm:$0xf]
  %v1434 = vld [vmem:[%s1421 + $0x30] sm:$0xf]
  %v1435 = vld [vmem:[%s1421 + $0x34] sm:$0xf]
  %v1436 = vld [vmem:[%s1421 + $0x38] sm:$0xf]
  %v1437 = vld [vmem:[%s1421 + $0x3c] sm:$0xf]
  %s1438 = scalar_lea.vmem %s5, 4
  %v1439 = vld [vmem:[%s1438] sm:$0x7]
  %v1440 = vsel %vm77, %v1414, 0.0
  %1441 = vadd.xlane.f32.xlu0 %v1440
  %v1442 = vpop.xlane.xlu0 %1441
  %v1443 = vsel %vm77, %v1415, 0.0
  %1444 = vadd.xlane.f32.xlu0 %v1443
  %v1445 = vpop.xlane.xlu0 %1444
  %v1446 = vmul.f32 %v1442, %v152
  %v1447 = vmul.f32 %v1445, %v152
  %v1448 = vsub.f32 %v1414, %v1446
  %v1449 = vsub.f32 %v1415, %v1447
  %v1450 = vmul.f32 %v1448, %v1448
  %v1451 = vmul.f32 %v1449, %v1449
  %v1452 = vsel %vm77, %v1450, 0.0
  %1453 = vadd.xlane.f32.xlu0 %v1452
  %v1454 = vpop.xlane.xlu0 %1453
  %v1455 = vsel %vm77, %v1451, 0.0
  %1456 = vadd.xlane.f32.xlu0 %v1455
  %v1457 = vpop.xlane.xlu0 %1456
  %v1458 = vmul.f32 %v1454, %v152
  %v1459 = vmul.f32 %v1457, %v152
  %v1460 = vadd.f32 %v1458, 1e-05
  %v1461 = vadd.f32 %v1459, 1e-05
  %v1462 = vrsqrt.pop %v1460
  %v1463 = vrsqrt.pop %v1461
  %v1464 = vmul.f32 %v1448, %v1462
  %v1465 = vmul.f32 %v1449, %v1463
  %v1466 = vlaneseq
  %v1467 = vshrl.u32 %v1466, 7
  %v1468 = vsub.s32 0, %v1467
  %v1469 = vrot.slane %v1439, %v1468
  %v1470 = vmul.f32 %v1464, %v1469
  %v1471 = vmul.f32 %v1465, %v1469
  %1473 = vrot.lane.b32.xlu0 %v1469, 96
  %v1474 = vpop.permute.xlu0 %1473
  %v1476 = vadd.f32 %v1470, %v1474
  %v1477 = vadd.f32 %v1471, %v1474
  %v1478 = vpack.c.bf16 %v1477, %v1476
  %v1483 = vunpack.c.l.b16 %v1417
  %v1484 = vunpack.c.l.b16 %v1418
  %v1485 = vunpack.c.l.b16 %v1419
  %v1486 = vunpack.c.l.b16 %v1420
  %v1487 = vpack.c.b16 %v1484, %v1483
  %v1488 = vpack.c.b16 %v1486, %v1485
  %v1492 = vsel %vm77, %v1478, 0
  %1494 = vmatprep.subr.bf16.mxu0 0
  %1495 = vmatpush1.bf16.msra.mxu0 %v1487
  %1496 = vmatprep.subr.bf16.mxu0 0
  %1497 = vmatpush1.bf16.msra.mxu0 %v1488
  %1498 = vmatprep.subr.bf16.mxu0 0
  %1499 = vmatpush1.bf16.msra.mxu0 0
  %1500 = vmatprep.subr.bf16.mxu0 0
  %1501 = vmatpush1.bf16.msra.mxu0 0
  %1502 = vmatprep.subr.bf16.mxu0 0
  %1503 = vmatpush1.bf16.msra.mxu0 0
  %1504 = vmatprep.subr.bf16.mxu0 0
  %1505 = vmatpush1.bf16.msra.mxu0 0
  %1506 = vmatprep.subr.bf16.mxu0 0
  %1507 = vmatpush1.bf16.msra.mxu0 0
  %1508 = vmatprep.subr.bf16.mxu0 0
  %1509 = vmatpush1.bf16.msra.mxu0 0
  %1510 = vmatprep.subr.bf16.mxu0 0
  %1511 = vmatpush1.bf16.msra.mxu0 0
  %1512 = vmatprep.subr.bf16.mxu0 0
  %1513 = vmatpush1.bf16.msra.mxu0 0
  %1514 = vmatprep.subr.bf16.mxu0 0
  %1515 = vmatpush1.bf16.msra.mxu0 0
  %1516 = vmatprep.subr.bf16.mxu0 0
  %1517 = vmatpush1.bf16.msra.mxu0 0
  %1518 = vmatprep.subr.bf16.mxu0 0
  %1519 = vmatpush1.bf16.msra.mxu0 0
  %1520 = vmatprep.subr.bf16.mxu0 0
  %1521 = vmatpush1.bf16.msra.mxu0 0
  %1522 = vmatprep.subr.bf16.mxu0 0
  %1523 = vmatpush1.bf16.msra.mxu0 0
  %1524 = vmatprep.subr.bf16.mxu0 0
  %1525 = vmatpush1.bf16.msra.mxu0 0
  %1526 = vmatprep.mubr.bf16.mxu0 0
  %1527 = vmatmul.mubr.bf16.gmra.mrb[0].mxu0 %v1492
  %v1528 = vpop.f32.mrb[0].mxu0
  %v1529 = vadd.f32 0.0, %v1528
  %v1530 = vpop.f32.mrb[0].mxu0
  %v1531 = vpop.f32.mrb[0].mxu0
  %v1532 = vadd.f32 0.0, %v1531
  %v1533 = vpop.f32.mrb[0].mxu0
  %1534 = vdwg.mxu0
  %v1535 = vpack.c.bf16 %v1532, %v1529
  %v1537 = vunpack.c.l.b16 %v1535
  %v1538 = vunpack.c.h.b16 %v1535
  %v1539 = vpack.c.b16 %v1537, %v1537
  %v1540 = vpack.c.b16 %v1538, %v1538
  %1541 = vrot.lane.b32.xlu0 %v1539, 96
  %v1542 = vpop.permute.xlu0 %1541
  %v1544 = vsel %vm250, %v1539, 0
  %v1547 = vsel %vm250, %v1542, 0
  %1549 = vmatprep.subr.bf16.mxu0 0
  %1550 = vmatpush1.bf16.xpose.msra.mxu0 %v1547
  %1551 = vmatprep.subr.bf16.mxu0 0
  %1552 = vmatpush1.bf16.xpose.msra.mxu0 0
  %1553 = vmatprep.subr.bf16.mxu0 0
  %1554 = vmatpush1.bf16.xpose.msra.mxu0 0
  %1555 = vmatprep.subr.bf16.mxu0 0
  %1556 = vmatpush1.bf16.xpose.msra.mxu0 0
  %1557 = vmatprep.subr.bf16.mxu0 0
  %1558 = vmatpush1.bf16.xpose.msra.mxu0 0
  %1559 = vmatprep.subr.bf16.mxu0 0
  %1560 = vmatpush1.bf16.xpose.msra.mxu0 0
  %1561 = vmatprep.subr.bf16.mxu0 0
  %1562 = vmatpush1.bf16.xpose.msra.mxu0 0
  %1563 = vmatprep.subr.bf16.mxu0 0
  %1564 = vmatpush1.bf16.xpose.msra.mxu0 0
  %1565 = vmatprep.subr.bf16.mxu0 0
  %1566 = vmatpush1.bf16.xpose.msra.mxu0 0
  %1567 = vmatprep.subr.bf16.mxu0 0
  %1568 = vmatpush1.bf16.xpose.msra.mxu0 0
  %1569 = vmatprep.subr.bf16.mxu0 0
  %1570 = vmatpush1.bf16.xpose.msra.mxu0 0
  %1571 = vmatprep.subr.bf16.mxu0 0
  %1572 = vmatpush1.bf16.xpose.msra.mxu0 0
  %1573 = vmatprep.subr.bf16.mxu0 0
  %1574 = vmatpush1.bf16.xpose.msra.mxu0 0
  %1575 = vmatprep.subr.bf16.mxu0 0
  %1576 = vmatpush1.bf16.xpose.msra.mxu0 0
  %1577 = vmatprep.subr.bf16.mxu0 0
  %1578 = vmatpush1.bf16.xpose.msra.mxu0 0
  %1579 = vmatprep.subr.bf16.mxu0 0
  %1580 = vmatpush1.bf16.xpose.msra.mxu0 0
  %1581 = vmatprep.mubr.bf16.mxu0 0
  %1582 = vmatmul.mubr.bf16.gmra.mrb[0].mxu0 %v1544
  %v1583 = vpop.f32.mrb[0].mxu0
  %v1584 = vadd.f32 0.0, %v1583
  %v1585 = vpop.f32.mrb[0].mxu0
  %v1586 = vpop.f32.mrb[0].mxu0
  %v1587 = vpop.f32.mrb[0].mxu0
  %1588 = vdwg.mxu0
  %1589 = vrot.lane.b32.xlu0 %v1540, 96
  %v1590 = vpop.permute.xlu0 %1589
  %v1592 = vsel %vm250, %v1540, 0
  %v1595 = vsel %vm250, %v1590, 0
  %1597 = vmatprep.subr.bf16.mxu0 0
  %1598 = vmatpush1.bf16.xpose.msra.mxu0 %v1595
  %1599 = vmatprep.subr.bf16.mxu0 0
  %1600 = vmatpush1.bf16.xpose.msra.mxu0 0
  %1601 = vmatprep.subr.bf16.mxu0 0
  %1602 = vmatpush1.bf16.xpose.msra.mxu0 0
  %1603 = vmatprep.subr.bf16.mxu0 0
  %1604 = vmatpush1.bf16.xpose.msra.mxu0 0
  %1605 = vmatprep.subr.bf16.mxu0 0
  %1606 = vmatpush1.bf16.xpose.msra.mxu0 0
  %1607 = vmatprep.subr.bf16.mxu0 0
  %1608 = vmatpush1.bf16.xpose.msra.mxu0 0
  %1609 = vmatprep.subr.bf16.mxu0 0
  %1610 = vmatpush1.bf16.xpose.msra.mxu0 0
  %1611 = vmatprep.subr.bf16.mxu0 0
  %1612 = vmatpush1.bf16.xpose.msra.mxu0 0
  %1613 = vmatprep.subr.bf16.mxu0 0
  %1614 = vmatpush1.bf16.xpose.msra.mxu0 0
  %1615 = vmatprep.subr.bf16.mxu0 0
  %1616 = vmatpush1.bf16.xpose.msra.mxu0 0
  %1617 = vmatprep.subr.bf16.mxu0 0
  %1618 = vmatpush1.bf16.xpose.msra.mxu0 0
  %1619 = vmatprep.subr.bf16.mxu0 0
  %1620 = vmatpush1.bf16.xpose.msra.mxu0 0
  %1621 = vmatprep.subr.bf16.mxu0 0
  %1622 = vmatpush1.bf16.xpose.msra.mxu0 0
  %1623 = vmatprep.subr.bf16.mxu0 0
  %1624 = vmatpush1.bf16.xpose.msra.mxu0 0
  %1625 = vmatprep.subr.bf16.mxu0 0
  %1626 = vmatpush1.bf16.xpose.msra.mxu0 0
  %1627 = vmatprep.subr.bf16.mxu0 0
  %1628 = vmatpush1.bf16.xpose.msra.mxu0 0
  %1629 = vmatprep.mubr.bf16.mxu0 0
  %1630 = vmatmul.mubr.bf16.gmra.mrb[0].mxu0 %v1592
  %v1631 = vpop.f32.mrb[0].mxu0
  %v1632 = vadd.f32 0.0, %v1631
  %v1633 = vpop.f32.mrb[0].mxu0
  %v1634 = vpop.f32.mrb[0].mxu0
  %v1635 = vpop.f32.mrb[0].mxu0
  %1636 = vdwg.mxu0
  %1637 = vrot.lane.b32.xlu0 %v1539, 120
  %v1638 = vpop.permute.xlu0 %1637
  %1639 = vrot.lane.b32.xlu0 %v1539, 88
  %v1640 = vpop.permute.xlu0 %1639
  %v1642 = vsel %vm250, %v1638, 0
  %v1645 = vsel %vm250, %v1640, 0
  %1647 = vmatprep.subr.bf16.mxu0 0
  %1648 = vmatpush1.bf16.xpose.msra.mxu0 %v1645
  %1649 = vmatprep.subr.bf16.mxu0 0
  %1650 = vmatpush1.bf16.xpose.msra.mxu0 0
  %1651 = vmatprep.subr.bf16.mxu0 0
  %1652 = vmatpush1.bf16.xpose.msra.mxu0 0
  %1653 = vmatprep.subr.bf16.mxu0 0
  %1654 = vmatpush1.bf16.xpose.msra.mxu0 0
  %1655 = vmatprep.subr.bf16.mxu0 0
  %1656 = vmatpush1.bf16.xpose.msra.mxu0 0
  %1657 = vmatprep.subr.bf16.mxu0 0
  %1658 = vmatpush1.bf16.xpose.msra.mxu0 0
  %1659 = vmatprep.subr.bf16.mxu0 0
  %1660 = vmatpush1.bf16.xpose.msra.mxu0 0
  %1661 = vmatprep.subr.bf16.mxu0 0
  %1662 = vmatpush1.bf16.xpose.msra.mxu0 0
  %1663 = vmatprep.subr.bf16.mxu0 0
  %1664 = vmatpush1.bf16.xpose.msra.mxu0 0
  %1665 = vmatprep.subr.bf16.mxu0 0
  %1666 = vmatpush1.bf16.xpose.msra.mxu0 0
  %1667 = vmatprep.subr.bf16.mxu0 0
  %1668 = vmatpush1.bf16.xpose.msra.mxu0 0
  %1669 = vmatprep.subr.bf16.mxu0 0
  %1670 = vmatpush1.bf16.xpose.msra.mxu0 0
  %1671 = vmatprep.subr.bf16.mxu0 0
  %1672 = vmatpush1.bf16.xpose.msra.mxu0 0
  %1673 = vmatprep.subr.bf16.mxu0 0
  %1674 = vmatpush1.bf16.xpose.msra.mxu0 0
  %1675 = vmatprep.subr.bf16.mxu0 0
  %1676 = vmatpush1.bf16.xpose.msra.mxu0 0
  %1677 = vmatprep.subr.bf16.mxu0 0
  %1678 = vmatpush1.bf16.xpose.msra.mxu0 0
  %1679 = vmatprep.mubr.bf16.mxu0 0
  %1680 = vmatmul.mubr.bf16.gmra.mrb[0].mxu0 %v1642
  %v1681 = vpop.f32.mrb[0].mxu0
  %v1682 = vadd.f32 0.0, %v1681
  %v1683 = vpop.f32.mrb[0].mxu0
  %v1684 = vpop.f32.mrb[0].mxu0
  %v1685 = vpop.f32.mrb[0].mxu0
  %1686 = vdwg.mxu0
  %1687 = vrot.lane.b32.xlu0 %v1540, 120
  %v1688 = vpop.permute.xlu0 %1687
  %1689 = vrot.lane.b32.xlu0 %v1540, 88
  %v1690 = vpop.permute.xlu0 %1689
  %v1692 = vsel %vm250, %v1688, 0
  %v1695 = vsel %vm250, %v1690, 0
  %1697 = vmatprep.subr.bf16.mxu0 0
  %1698 = vmatpush1.bf16.xpose.msra.mxu0 %v1695
  %1699 = vmatprep.subr.bf16.mxu0 0
  %1700 = vmatpush1.bf16.xpose.msra.mxu0 0
  %1701 = vmatprep.subr.bf16.mxu0 0
  %1702 = vmatpush1.bf16.xpose.msra.mxu0 0
  %1703 = vmatprep.subr.bf16.mxu0 0
  %1704 = vmatpush1.bf16.xpose.msra.mxu0 0
  %1705 = vmatprep.subr.bf16.mxu0 0
  %1706 = vmatpush1.bf16.xpose.msra.mxu0 0
  %1707 = vmatprep.subr.bf16.mxu0 0
  %1708 = vmatpush1.bf16.xpose.msra.mxu0 0
  %1709 = vmatprep.subr.bf16.mxu0 0
  %1710 = vmatpush1.bf16.xpose.msra.mxu0 0
  %1711 = vmatprep.subr.bf16.mxu0 0
  %1712 = vmatpush1.bf16.xpose.msra.mxu0 0
  %1713 = vmatprep.subr.bf16.mxu0 0
  %1714 = vmatpush1.bf16.xpose.msra.mxu0 0
  %1715 = vmatprep.subr.bf16.mxu0 0
  %1716 = vmatpush1.bf16.xpose.msra.mxu0 0
  %1717 = vmatprep.subr.bf16.mxu0 0
  %1718 = vmatpush1.bf16.xpose.msra.mxu0 0
  %1719 = vmatprep.subr.bf16.mxu0 0
  %1720 = vmatpush1.bf16.xpose.msra.mxu0 0
  %1721 = vmatprep.subr.bf16.mxu0 0
  %1722 = vmatpush1.bf16.xpose.msra.mxu0 0
  %1723 = vmatprep.subr.bf16.mxu0 0
  %1724 = vmatpush1.bf16.xpose.msra.mxu0 0
  %1725 = vmatprep.subr.bf16.mxu0 0
  %1726 = vmatpush1.bf16.xpose.msra.mxu0 0
  %1727 = vmatprep.subr.bf16.mxu0 0
  %1728 = vmatpush1.bf16.xpose.msra.mxu0 0
  %1729 = vmatprep.mubr.bf16.mxu0 0
  %1730 = vmatmul.mubr.bf16.gmra.mrb[0].mxu0 %v1692
  %v1731 = vpop.f32.mrb[0].mxu0
  %v1732 = vadd.f32 0.0, %v1731
  %v1733 = vpop.f32.mrb[0].mxu0
  %v1734 = vpop.f32.mrb[0].mxu0
  %v1735 = vpop.f32.mrb[0].mxu0
  %1736 = vdwg.mxu0
  %1737 = vrot.lane.b32.xlu0 %v1539, 112
  %v1738 = vpop.permute.xlu0 %1737
  %1739 = vrot.lane.b32.xlu0 %v1539, 80
  %v1740 = vpop.permute.xlu0 %1739
  %v1742 = vsel %vm250, %v1738, 0
  %v1745 = vsel %vm250, %v1740, 0
  %1747 = vmatprep.subr.bf16.mxu0 0
  %1748 = vmatpush1.bf16.xpose.msra.mxu0 %v1745
  %1749 = vmatprep.subr.bf16.mxu0 0
  %1750 = vmatpush1.bf16.xpose.msra.mxu0 0
  %1751 = vmatprep.subr.bf16.mxu0 0
  %1752 = vmatpush1.bf16.xpose.msra.mxu0 0
  %1753 = vmatprep.subr.bf16.mxu0 0
  %1754 = vmatpush1.bf16.xpose.msra.mxu0 0
  %1755 = vmatprep.subr.bf16.mxu0 0
  %1756 = vmatpush1.bf16.xpose.msra.mxu0 0
  %1757 = vmatprep.subr.bf16.mxu0 0
  %1758 = vmatpush1.bf16.xpose.msra.mxu0 0
  %1759 = vmatprep.subr.bf16.mxu0 0
  %1760 = vmatpush1.bf16.xpose.msra.mxu0 0
  %1761 = vmatprep.subr.bf16.mxu0 0
  %1762 = vmatpush1.bf16.xpose.msra.mxu0 0
  %1763 = vmatprep.subr.bf16.mxu0 0
  %1764 = vmatpush1.bf16.xpose.msra.mxu0 0
  %1765 = vmatprep.subr.bf16.mxu0 0
  %1766 = vmatpush1.bf16.xpose.msra.mxu0 0
  %1767 = vmatprep.subr.bf16.mxu0 0
  %1768 = vmatpush1.bf16.xpose.msra.mxu0 0
  %1769 = vmatprep.subr.bf16.mxu0 0
  %1770 = vmatpush1.bf16.xpose.msra.mxu0 0
  %1771 = vmatprep.subr.bf16.mxu0 0
  %1772 = vmatpush1.bf16.xpose.msra.mxu0 0
  %1773 = vmatprep.subr.bf16.mxu0 0
  %1774 = vmatpush1.bf16.xpose.msra.mxu0 0
  %1775 = vmatprep.subr.bf16.mxu0 0
  %1776 = vmatpush1.bf16.xpose.msra.mxu0 0
  %1777 = vmatprep.subr.bf16.mxu0 0
  %1778 = vmatpush1.bf16.xpose.msra.mxu0 0
  %1779 = vmatprep.mubr.bf16.mxu0 0
  %1780 = vmatmul.mubr.bf16.gmra.mrb[0].mxu0 %v1742
  %v1781 = vpop.f32.mrb[0].mxu0
  %v1782 = vadd.f32 0.0, %v1781
  %v1783 = vpop.f32.mrb[0].mxu0
  %v1784 = vpop.f32.mrb[0].mxu0
  %v1785 = vpop.f32.mrb[0].mxu0
  %1786 = vdwg.mxu0
  %1787 = vrot.lane.b32.xlu0 %v1540, 112
  %v1788 = vpop.permute.xlu0 %1787
  %1789 = vrot.lane.b32.xlu0 %v1540, 80
  %v1790 = vpop.permute.xlu0 %1789
  %v1792 = vsel %vm250, %v1788, 0
  %v1795 = vsel %vm250, %v1790, 0
  %1797 = vmatprep.subr.bf16.mxu0 0
  %1798 = vmatpush1.bf16.xpose.msra.mxu0 %v1795
  %1799 = vmatprep.subr.bf16.mxu0 0
  %1800 = vmatpush1.bf16.xpose.msra.mxu0 0
  %1801 = vmatprep.subr.bf16.mxu0 0
  %1802 = vmatpush1.bf16.xpose.msra.mxu0 0
  %1803 = vmatprep.subr.bf16.mxu0 0
  %1804 = vmatpush1.bf16.xpose.msra.mxu0 0
  %1805 = vmatprep.subr.bf16.mxu0 0
  %1806 = vmatpush1.bf16.xpose.msra.mxu0 0
  %1807 = vmatprep.subr.bf16.mxu0 0
  %1808 = vmatpush1.bf16.xpose.msra.mxu0 0
  %1809 = vmatprep.subr.bf16.mxu0 0
  %1810 = vmatpush1.bf16.xpose.msra.mxu0 0
  %1811 = vmatprep.subr.bf16.mxu0 0
  %1812 = vmatpush1.bf16.xpose.msra.mxu0 0
  %1813 = vmatprep.subr.bf16.mxu0 0
  %1814 = vmatpush1.bf16.xpose.msra.mxu0 0
  %1815 = vmatprep.subr.bf16.mxu0 0
  %1816 = vmatpush1.bf16.xpose.msra.mxu0 0
  %1817 = vmatprep.subr.bf16.mxu0 0
  %1818 = vmatpush1.bf16.xpose.msra.mxu0 0
  %1819 = vmatprep.subr.bf16.mxu0 0
  %1820 = vmatpush1.bf16.xpose.msra.mxu0 0
  %1821 = vmatprep.subr.bf16.mxu0 0
  %1822 = vmatpush1.bf16.xpose.msra.mxu0 0
  %1823 = vmatprep.subr.bf16.mxu0 0
  %1824 = vmatpush1.bf16.xpose.msra.mxu0 0
  %1825 = vmatprep.subr.bf16.mxu0 0
  %1826 = vmatpush1.bf16.xpose.msra.mxu0 0
  %1827 = vmatprep.subr.bf16.mxu0 0
  %1828 = vmatpush1.bf16.xpose.msra.mxu0 0
  %1829 = vmatprep.mubr.bf16.mxu0 0
  %1830 = vmatmul.mubr.bf16.gmra.mrb[0].mxu0 %v1792
  %v1831 = vpop.f32.mrb[0].mxu0
  %v1832 = vadd.f32 0.0, %v1831
  %v1833 = vpop.f32.mrb[0].mxu0
  %v1834 = vpop.f32.mrb[0].mxu0
  %v1835 = vpop.f32.mrb[0].mxu0
  %1836 = vdwg.mxu0
  %1837 = vrot.lane.b32.xlu0 %v1539, 104
  %v1838 = vpop.permute.xlu0 %1837
  %1839 = vrot.lane.b32.xlu0 %v1539, 72
  %v1840 = vpop.permute.xlu0 %1839
  %v1842 = vsel %vm250, %v1838, 0
  %v1845 = vsel %vm250, %v1840, 0
  %1847 = vmatprep.subr.bf16.mxu0 0
  %1848 = vmatpush1.bf16.xpose.msra.mxu0 %v1845
  %1849 = vmatprep.subr.bf16.mxu0 0
  %1850 = vmatpush1.bf16.xpose.msra.mxu0 0
  %1851 = vmatprep.subr.bf16.mxu0 0
  %1852 = vmatpush1.bf16.xpose.msra.mxu0 0
  %1853 = vmatprep.subr.bf16.mxu0 0
  %1854 = vmatpush1.bf16.xpose.msra.mxu0 0
  %1855 = vmatprep.subr.bf16.mxu0 0
  %1856 = vmatpush1.bf16.xpose.msra.mxu0 0
  %1857 = vmatprep.subr.bf16.mxu0 0
  %1858 = vmatpush1.bf16.xpose.msra.mxu0 0
  %1859 = vmatprep.subr.bf16.mxu0 0
  %1860 = vmatpush1.bf16.xpose.msra.mxu0 0
  %1861 = vmatprep.subr.bf16.mxu0 0
  %1862 = vmatpush1.bf16.xpose.msra.mxu0 0
  %1863 = vmatprep.subr.bf16.mxu0 0
  %1864 = vmatpush1.bf16.xpose.msra.mxu0 0
  %1865 = vmatprep.subr.bf16.mxu0 0
  %1866 = vmatpush1.bf16.xpose.msra.mxu0 0
  %1867 = vmatprep.subr.bf16.mxu0 0
  %1868 = vmatpush1.bf16.xpose.msra.mxu0 0
  %1869 = vmatprep.subr.bf16.mxu0 0
  %1870 = vmatpush1.bf16.xpose.msra.mxu0 0
  %1871 = vmatprep.subr.bf16.mxu0 0
  %1872 = vmatpush1.bf16.xpose.msra.mxu0 0
  %1873 = vmatprep.subr.bf16.mxu0 0
  %1874 = vmatpush1.bf16.xpose.msra.mxu0 0
  %1875 = vmatprep.subr.bf16.mxu0 0
  %1876 = vmatpush1.bf16.xpose.msra.mxu0 0
  %1877 = vmatprep.subr.bf16.mxu0 0
  %1878 = vmatpush1.bf16.xpose.msra.mxu0 0
  %1879 = vmatprep.mubr.bf16.mxu0 0
  %1880 = vmatmul.mubr.bf16.gmra.mrb[0].mxu0 %v1842
  %v1881 = vpop.f32.mrb[0].mxu0
  %v1882 = vadd.f32 0.0, %v1881
  %v1883 = vpop.f32.mrb[0].mxu0
  %v1884 = vpop.f32.mrb[0].mxu0
  %v1885 = vpop.f32.mrb[0].mxu0
  %1886 = vdwg.mxu0
  %1887 = vrot.lane.b32.xlu0 %v1540, 104
  %v1888 = vpop.permute.xlu0 %1887
  %1889 = vrot.lane.b32.xlu0 %v1540, 72
  %v1890 = vpop.permute.xlu0 %1889
  %v1892 = vsel %vm250, %v1888, 0
  %v1895 = vsel %vm250, %v1890, 0
  %1897 = vmatprep.subr.bf16.mxu0 0
  %1898 = vmatpush1.bf16.xpose.msra.mxu0 %v1895
  %1899 = vmatprep.subr.bf16.mxu0 0
  %1900 = vmatpush1.bf16.xpose.msra.mxu0 0
  %1901 = vmatprep.subr.bf16.mxu0 0
  %1902 = vmatpush1.bf16.xpose.msra.mxu0 0
  %1903 = vmatprep.subr.bf16.mxu0 0
  %1904 = vmatpush1.bf16.xpose.msra.mxu0 0
  %1905 = vmatprep.subr.bf16.mxu0 0
  %1906 = vmatpush1.bf16.xpose.msra.mxu0 0
  %1907 = vmatprep.subr.bf16.mxu0 0
  %1908 = vmatpush1.bf16.xpose.msra.mxu0 0
  %1909 = vmatprep.subr.bf16.mxu0 0
  %1910 = vmatpush1.bf16.xpose.msra.mxu0 0
  %1911 = vmatprep.subr.bf16.mxu0 0
  %1912 = vmatpush1.bf16.xpose.msra.mxu0 0
  %1913 = vmatprep.subr.bf16.mxu0 0
  %1914 = vmatpush1.bf16.xpose.msra.mxu0 0
  %1915 = vmatprep.subr.bf16.mxu0 0
  %1916 = vmatpush1.bf16.xpose.msra.mxu0 0
  %1917 = vmatprep.subr.bf16.mxu0 0
  %1918 = vmatpush1.bf16.xpose.msra.mxu0 0
  %1919 = vmatprep.subr.bf16.mxu0 0
  %1920 = vmatpush1.bf16.xpose.msra.mxu0 0
  %1921 = vmatprep.subr.bf16.mxu0 0
  %1922 = vmatpush1.bf16.xpose.msra.mxu0 0
  %1923 = vmatprep.subr.bf16.mxu0 0
  %1924 = vmatpush1.bf16.xpose.msra.mxu0 0
  %1925 = vmatprep.subr.bf16.mxu0 0
  %1926 = vmatpush1.bf16.xpose.msra.mxu0 0
  %1927 = vmatprep.subr.bf16.mxu0 0
  %1928 = vmatpush1.bf16.xpose.msra.mxu0 0
  %1929 = vmatprep.mubr.bf16.mxu0 0
  %1930 = vmatmul.mubr.bf16.gmra.mrb[0].mxu0 %v1892
  %v1931 = vpop.f32.mrb[0].mxu0
  %v1932 = vadd.f32 0.0, %v1931
  %v1933 = vpop.f32.mrb[0].mxu0
  %v1934 = vpop.f32.mrb[0].mxu0
  %v1935 = vpop.f32.mrb[0].mxu0
  %1936 = vdwg.mxu0
  %v1937 = vsel %vm646, %v1584, -1e+30
  %v1938 = vsel %vm646, %v1632, -1e+30
  %v1939 = vsel %vm646, %v1682, -1e+30
  %v1940 = vsel %vm646, %v1732, -1e+30
  %v1941 = vsel %vm646, %v1782, -1e+30
  %v1942 = vsel %vm646, %v1832, -1e+30
  %v1943 = vsel %vm646, %v1882, -1e+30
  %v1944 = vsel %vm646, %v1932, -1e+30
  %v1945 = vsel %vm250, %v1937, -inf
  %1946 = vmax.xlane.f32.xlu0 %v1945
  %v1947 = vpop.xlane.xlu0 %1946
  %v1948 = vsel %vm250, %v1938, -inf
  %1949 = vmax.xlane.f32.xlu0 %v1948
  %v1950 = vpop.xlane.xlu0 %1949
  %v1951 = vsel %vm250, %v1939, -inf
  %1952 = vmax.xlane.f32.xlu0 %v1951
  %v1953 = vpop.xlane.xlu0 %1952
  %v1954 = vsel %vm250, %v1940, -inf
  %1955 = vmax.xlane.f32.xlu0 %v1954
  %v1956 = vpop.xlane.xlu0 %1955
  %v1957 = vsel %vm250, %v1941, -inf
  %1958 = vmax.xlane.f32.xlu0 %v1957
  %v1959 = vpop.xlane.xlu0 %1958
  %v1960 = vsel %vm250, %v1942, -inf
  %1961 = vmax.xlane.f32.xlu0 %v1960
  %v1962 = vpop.xlane.xlu0 %1961
  %v1963 = vsel %vm250, %v1943, -inf
  %1964 = vmax.xlane.f32.xlu0 %v1963
  %v1965 = vpop.xlane.xlu0 %1964
  %v1966 = vsel %vm250, %v1944, -inf
  %1967 = vmax.xlane.f32.xlu0 %v1966
  %v1968 = vpop.xlane.xlu0 %1967
  %v1969 = vsub.f32 %v1937, %v1947
  %v1970 = vsub.f32 %v1938, %v1950
  %v1971 = vsub.f32 %v1939, %v1953
  %v1972 = vsub.f32 %v1940, %v1956
  %v1973 = vsub.f32 %v1941, %v1959
  %v1974 = vsub.f32 %v1942, %v1962
  %v1975 = vsub.f32 %v1943, %v1965
  %v1976 = vsub.f32 %v1944, %v1968
  %v1977 = vmul.f32 %v1969, 1.442695
  %v1978 = vpow.pop %v1977
  %v1979 = vmul.f32 %v1970, 1.442695
  %v1980 = vpow.pop %v1979
  %v1981 = vmul.f32 %v1971, 1.442695
  %v1982 = vpow.pop %v1981
  %v1983 = vmul.f32 %v1972, 1.442695
  %v1984 = vpow.pop %v1983
  %v1985 = vmul.f32 %v1973, 1.442695
  %v1986 = vpow.pop %v1985
  %v1987 = vmul.f32 %v1974, 1.442695
  %v1988 = vpow.pop %v1987
  %v1989 = vmul.f32 %v1975, 1.442695
  %v1990 = vpow.pop %v1989
  %v1991 = vmul.f32 %v1976, 1.442695
  %v1992 = vpow.pop %v1991
  %v1993 = vsel %vm250, %v1978, 0.0
  %1994 = vadd.xlane.f32.xlu0 %v1993
  %v1995 = vpop.xlane.xlu0 %1994
  %v1996 = vsel %vm250, %v1980, 0.0
  %1997 = vadd.xlane.f32.xlu0 %v1996
  %v1998 = vpop.xlane.xlu0 %1997
  %v1999 = vsel %vm250, %v1982, 0.0
  %2000 = vadd.xlane.f32.xlu0 %v1999
  %v2001 = vpop.xlane.xlu0 %2000
  %v2002 = vsel %vm250, %v1984, 0.0
  %2003 = vadd.xlane.f32.xlu0 %v2002
  %v2004 = vpop.xlane.xlu0 %2003
  %v2005 = vsel %vm250, %v1986, 0.0
  %2006 = vadd.xlane.f32.xlu0 %v2005
  %v2007 = vpop.xlane.xlu0 %2006
  %v2008 = vsel %vm250, %v1988, 0.0
  %2009 = vadd.xlane.f32.xlu0 %v2008
  %v2010 = vpop.xlane.xlu0 %2009
  %v2011 = vsel %vm250, %v1990, 0.0
  %2012 = vadd.xlane.f32.xlu0 %v2011
  %v2013 = vpop.xlane.xlu0 %2012
  %v2014 = vsel %vm250, %v1992, 0.0
  %2015 = vadd.xlane.f32.xlu0 %v2014
  %v2016 = vpop.xlane.xlu0 %2015
  %v2017 = vrcp.pop %v1995
  %v2018 = vrcp.pop %v1998
  %v2019 = vrcp.pop %v2001
  %v2020 = vrcp.pop %v2004
  %v2021 = vrcp.pop %v2007
  %v2022 = vrcp.pop %v2010
  %v2023 = vrcp.pop %v2013
  %v2024 = vrcp.pop %v2016
  %v2025 = vmul.f32 %v1978, %v2017
  %v2026 = vmul.f32 %v1980, %v2018
  %v2027 = vmul.f32 %v1982, %v2019
  %v2028 = vmul.f32 %v1984, %v2020
  %v2029 = vmul.f32 %v1986, %v2021
  %v2030 = vmul.f32 %v1988, %v2022
  %v2031 = vmul.f32 %v1990, %v2023
  %v2032 = vmul.f32 %v1992, %v2024
  %v2033 = vpack.c.bf16 %v2025, %v2025
  %v2034 = vpack.c.bf16 %v2026, %v2026
  %v2035 = vpack.c.bf16 %v2027, %v2027
  %v2036 = vpack.c.bf16 %v2028, %v2028
  %v2037 = vpack.c.bf16 %v2029, %v2029
  %v2038 = vpack.c.bf16 %v2030, %v2030
  %v2039 = vpack.c.bf16 %v2031, %v2031
  %v2040 = vpack.c.bf16 %v2032, %v2032
  %2041 = vrot.lane.b32.xlu0 %v1539, 64
  %v2042 = vpop.permute.xlu0 %2041
  %v2044 = vsel %vm250, %v2033, 0
  %v2047 = vsel %vm756, %v2042, 0
  %2049 = vmatprep.subr.bf16.mxu0 0
  %2050 = vmatpush1.bf16.msra.mxu0 %v2047
  %2051 = vmatprep.subr.bf16.mxu0 0
  %2052 = vmatpush1.bf16.msra.mxu0 0
  %2053 = vmatprep.subr.bf16.mxu0 0
  %2054 = vmatpush1.bf16.msra.mxu0 0
  %2055 = vmatprep.subr.bf16.mxu0 0
  %2056 = vmatpush1.bf16.msra.mxu0 0
  %2057 = vmatprep.subr.bf16.mxu0 0
  %2058 = vmatpush1.bf16.msra.mxu0 0
  %2059 = vmatprep.subr.bf16.mxu0 0
  %2060 = vmatpush1.bf16.msra.mxu0 0
  %2061 = vmatprep.subr.bf16.mxu0 0
  %2062 = vmatpush1.bf16.msra.mxu0 0
  %2063 = vmatprep.subr.bf16.mxu0 0
  %2064 = vmatpush1.bf16.msra.mxu0 0
  %2065 = vmatprep.subr.bf16.mxu0 0
  %2066 = vmatpush1.bf16.msra.mxu0 0
  %2067 = vmatprep.subr.bf16.mxu0 0
  %2068 = vmatpush1.bf16.msra.mxu0 0
  %2069 = vmatprep.subr.bf16.mxu0 0
  %2070 = vmatpush1.bf16.msra.mxu0 0
  %2071 = vmatprep.subr.bf16.mxu0 0
  %2072 = vmatpush1.bf16.msra.mxu0 0
  %2073 = vmatprep.subr.bf16.mxu0 0
  %2074 = vmatpush1.bf16.msra.mxu0 0
  %2075 = vmatprep.subr.bf16.mxu0 0
  %2076 = vmatpush1.bf16.msra.mxu0 0
  %2077 = vmatprep.subr.bf16.mxu0 0
  %2078 = vmatpush1.bf16.msra.mxu0 0
  %2079 = vmatprep.subr.bf16.mxu0 0
  %2080 = vmatpush1.bf16.msra.mxu0 0
  %2081 = vmatprep.mubr.bf16.mxu0 0
  %2082 = vmatmul.mubr.bf16.gmra.mrb[0].mxu0 %v2044
  %v2083 = vpop.f32.mrb[0].mxu0
  %v2084 = vadd.f32 0.0, %v2083
  %v2085 = vpop.f32.mrb[0].mxu0
  %v2086 = vpop.f32.mrb[0].mxu0
  %v2087 = vpop.f32.mrb[0].mxu0
  %2088 = vdwg.mxu0
  %2089 = vrot.lane.b32.xlu0 %v1540, 64
  %v2090 = vpop.permute.xlu0 %2089
  %v2092 = vsel %vm250, %v2034, 0
  %v2095 = vsel %vm756, %v2090, 0
  %2097 = vmatprep.subr.bf16.mxu0 0
  %2098 = vmatpush1.bf16.msra.mxu0 %v2095
  %2099 = vmatprep.subr.bf16.mxu0 0
  %2100 = vmatpush1.bf16.msra.mxu0 0
  %2101 = vmatprep.subr.bf16.mxu0 0
  %2102 = vmatpush1.bf16.msra.mxu0 0
  %2103 = vmatprep.subr.bf16.mxu0 0
  %2104 = vmatpush1.bf16.msra.mxu0 0
  %2105 = vmatprep.subr.bf16.mxu0 0
  %2106 = vmatpush1.bf16.msra.mxu0 0
  %2107 = vmatprep.subr.bf16.mxu0 0
  %2108 = vmatpush1.bf16.msra.mxu0 0
  %2109 = vmatprep.subr.bf16.mxu0 0
  %2110 = vmatpush1.bf16.msra.mxu0 0
  %2111 = vmatprep.subr.bf16.mxu0 0
  %2112 = vmatpush1.bf16.msra.mxu0 0
  %2113 = vmatprep.subr.bf16.mxu0 0
  %2114 = vmatpush1.bf16.msra.mxu0 0
  %2115 = vmatprep.subr.bf16.mxu0 0
  %2116 = vmatpush1.bf16.msra.mxu0 0
  %2117 = vmatprep.subr.bf16.mxu0 0
  %2118 = vmatpush1.bf16.msra.mxu0 0
  %2119 = vmatprep.subr.bf16.mxu0 0
  %2120 = vmatpush1.bf16.msra.mxu0 0
  %2121 = vmatprep.subr.bf16.mxu0 0
  %2122 = vmatpush1.bf16.msra.mxu0 0
  %2123 = vmatprep.subr.bf16.mxu0 0
  %2124 = vmatpush1.bf16.msra.mxu0 0
  %2125 = vmatprep.subr.bf16.mxu0 0
  %2126 = vmatpush1.bf16.msra.mxu0 0
  %2127 = vmatprep.subr.bf16.mxu0 0
  %2128 = vmatpush1.bf16.msra.mxu0 0
  %2129 = vmatprep.mubr.bf16.mxu0 0
  %2130 = vmatmul.mubr.bf16.gmra.mrb[0].mxu0 %v2092
  %v2131 = vpop.f32.mrb[0].mxu0
  %v2132 = vadd.f32 0.0, %v2131
  %v2133 = vpop.f32.mrb[0].mxu0
  %v2134 = vpop.f32.mrb[0].mxu0
  %v2135 = vpop.f32.mrb[0].mxu0
  %2136 = vdwg.mxu0
  %2137 = vrot.lane.b32.xlu0 %v1539, 56
  %v2138 = vpop.permute.xlu0 %2137
  %v2140 = vsel %vm250, %v2035, 0
  %v2143 = vsel %vm756, %v2138, 0
  %2145 = vmatprep.subr.bf16.mxu0 0
  %2146 = vmatpush1.bf16.msra.mxu0 %v2143
  %2147 = vmatprep.subr.bf16.mxu0 0
  %2148 = vmatpush1.bf16.msra.mxu0 0
  %2149 = vmatprep.subr.bf16.mxu0 0
  %2150 = vmatpush1.bf16.msra.mxu0 0
  %2151 = vmatprep.subr.bf16.mxu0 0
  %2152 = vmatpush1.bf16.msra.mxu0 0
  %2153 = vmatprep.subr.bf16.mxu0 0
  %2154 = vmatpush1.bf16.msra.mxu0 0
  %2155 = vmatprep.subr.bf16.mxu0 0
  %2156 = vmatpush1.bf16.msra.mxu0 0
  %2157 = vmatprep.subr.bf16.mxu0 0
  %2158 = vmatpush1.bf16.msra.mxu0 0
  %2159 = vmatprep.subr.bf16.mxu0 0
  %2160 = vmatpush1.bf16.msra.mxu0 0
  %2161 = vmatprep.subr.bf16.mxu0 0
  %2162 = vmatpush1.bf16.msra.mxu0 0
  %2163 = vmatprep.subr.bf16.mxu0 0
  %2164 = vmatpush1.bf16.msra.mxu0 0
  %2165 = vmatprep.subr.bf16.mxu0 0
  %2166 = vmatpush1.bf16.msra.mxu0 0
  %2167 = vmatprep.subr.bf16.mxu0 0
  %2168 = vmatpush1.bf16.msra.mxu0 0
  %2169 = vmatprep.subr.bf16.mxu0 0
  %2170 = vmatpush1.bf16.msra.mxu0 0
  %2171 = vmatprep.subr.bf16.mxu0 0
  %2172 = vmatpush1.bf16.msra.mxu0 0
  %2173 = vmatprep.subr.bf16.mxu0 0
  %2174 = vmatpush1.bf16.msra.mxu0 0
  %2175 = vmatprep.subr.bf16.mxu0 0
  %2176 = vmatpush1.bf16.msra.mxu0 0
  %2177 = vmatprep.mubr.bf16.mxu0 0
  %2178 = vmatmul.mubr.bf16.gmra.mrb[0].mxu0 %v2140
  %v2179 = vpop.f32.mrb[0].mxu0
  %v2180 = vadd.f32 0.0, %v2179
  %v2181 = vpop.f32.mrb[0].mxu0
  %v2182 = vpop.f32.mrb[0].mxu0
  %v2183 = vpop.f32.mrb[0].mxu0
  %2184 = vdwg.mxu0
  %2185 = vrot.lane.b32.xlu0 %v1540, 56
  %v2186 = vpop.permute.xlu0 %2185
  %v2188 = vsel %vm250, %v2036, 0
  %v2191 = vsel %vm756, %v2186, 0
  %2193 = vmatprep.subr.bf16.mxu0 0
  %2194 = vmatpush1.bf16.msra.mxu0 %v2191
  %2195 = vmatprep.subr.bf16.mxu0 0
  %2196 = vmatpush1.bf16.msra.mxu0 0
  %2197 = vmatprep.subr.bf16.mxu0 0
  %2198 = vmatpush1.bf16.msra.mxu0 0
  %2199 = vmatprep.subr.bf16.mxu0 0
  %2200 = vmatpush1.bf16.msra.mxu0 0
  %2201 = vmatprep.subr.bf16.mxu0 0
  %2202 = vmatpush1.bf16.msra.mxu0 0
  %2203 = vmatprep.subr.bf16.mxu0 0
  %2204 = vmatpush1.bf16.msra.mxu0 0
  %2205 = vmatprep.subr.bf16.mxu0 0
  %2206 = vmatpush1.bf16.msra.mxu0 0
  %2207 = vmatprep.subr.bf16.mxu0 0
  %2208 = vmatpush1.bf16.msra.mxu0 0
  %2209 = vmatprep.subr.bf16.mxu0 0
  %2210 = vmatpush1.bf16.msra.mxu0 0
  %2211 = vmatprep.subr.bf16.mxu0 0
  %2212 = vmatpush1.bf16.msra.mxu0 0
  %2213 = vmatprep.subr.bf16.mxu0 0
  %2214 = vmatpush1.bf16.msra.mxu0 0
  %2215 = vmatprep.subr.bf16.mxu0 0
  %2216 = vmatpush1.bf16.msra.mxu0 0
  %2217 = vmatprep.subr.bf16.mxu0 0
  %2218 = vmatpush1.bf16.msra.mxu0 0
  %2219 = vmatprep.subr.bf16.mxu0 0
  %2220 = vmatpush1.bf16.msra.mxu0 0
  %2221 = vmatprep.subr.bf16.mxu0 0
  %2222 = vmatpush1.bf16.msra.mxu0 0
  %2223 = vmatprep.subr.bf16.mxu0 0
  %2224 = vmatpush1.bf16.msra.mxu0 0
  %2225 = vmatprep.mubr.bf16.mxu0 0
  %2226 = vmatmul.mubr.bf16.gmra.mrb[0].mxu0 %v2188
  %v2227 = vpop.f32.mrb[0].mxu0
  %v2228 = vadd.f32 0.0, %v2227
  %v2229 = vpop.f32.mrb[0].mxu0
  %v2230 = vpop.f32.mrb[0].mxu0
  %v2231 = vpop.f32.mrb[0].mxu0
  %2232 = vdwg.mxu0
  %2233 = vrot.lane.b32.xlu0 %v1539, 48
  %v2234 = vpop.permute.xlu0 %2233
  %v2236 = vsel %vm250, %v2037, 0
  %v2239 = vsel %vm756, %v2234, 0
  %2241 = vmatprep.subr.bf16.mxu0 0
  %2242 = vmatpush1.bf16.msra.mxu0 %v2239
  %2243 = vmatprep.subr.bf16.mxu0 0
  %2244 = vmatpush1.bf16.msra.mxu0 0
  %2245 = vmatprep.subr.bf16.mxu0 0
  %2246 = vmatpush1.bf16.msra.mxu0 0
  %2247 = vmatprep.subr.bf16.mxu0 0
  %2248 = vmatpush1.bf16.msra.mxu0 0
  %2249 = vmatprep.subr.bf16.mxu0 0
  %2250 = vmatpush1.bf16.msra.mxu0 0
  %2251 = vmatprep.subr.bf16.mxu0 0
  %2252 = vmatpush1.bf16.msra.mxu0 0
  %2253 = vmatprep.subr.bf16.mxu0 0
  %2254 = vmatpush1.bf16.msra.mxu0 0
  %2255 = vmatprep.subr.bf16.mxu0 0
  %2256 = vmatpush1.bf16.msra.mxu0 0
  %2257 = vmatprep.subr.bf16.mxu0 0
  %2258 = vmatpush1.bf16.msra.mxu0 0
  %2259 = vmatprep.subr.bf16.mxu0 0
  %2260 = vmatpush1.bf16.msra.mxu0 0
  %2261 = vmatprep.subr.bf16.mxu0 0
  %2262 = vmatpush1.bf16.msra.mxu0 0
  %2263 = vmatprep.subr.bf16.mxu0 0
  %2264 = vmatpush1.bf16.msra.mxu0 0
  %2265 = vmatprep.subr.bf16.mxu0 0
  %2266 = vmatpush1.bf16.msra.mxu0 0
  %2267 = vmatprep.subr.bf16.mxu0 0
  %2268 = vmatpush1.bf16.msra.mxu0 0
  %2269 = vmatprep.subr.bf16.mxu0 0
  %2270 = vmatpush1.bf16.msra.mxu0 0
  %2271 = vmatprep.subr.bf16.mxu0 0
  %2272 = vmatpush1.bf16.msra.mxu0 0
  %2273 = vmatprep.mubr.bf16.mxu0 0
  %2274 = vmatmul.mubr.bf16.gmra.mrb[0].mxu0 %v2236
  %v2275 = vpop.f32.mrb[0].mxu0
  %v2276 = vadd.f32 0.0, %v2275
  %v2277 = vpop.f32.mrb[0].mxu0
  %v2278 = vpop.f32.mrb[0].mxu0
  %v2279 = vpop.f32.mrb[0].mxu0
  %2280 = vdwg.mxu0
  %2281 = vrot.lane.b32.xlu0 %v1540, 48
  %v2282 = vpop.permute.xlu0 %2281
  %v2284 = vsel %vm250, %v2038, 0
  %v2287 = vsel %vm756, %v2282, 0
  %2289 = vmatprep.subr.bf16.mxu0 0
  %2290 = vmatpush1.bf16.msra.mxu0 %v2287
  %2291 = vmatprep.subr.bf16.mxu0 0
  %2292 = vmatpush1.bf16.msra.mxu0 0
  %2293 = vmatprep.subr.bf16.mxu0 0
  %2294 = vmatpush1.bf16.msra.mxu0 0
  %2295 = vmatprep.subr.bf16.mxu0 0
  %2296 = vmatpush1.bf16.msra.mxu0 0
  %2297 = vmatprep.subr.bf16.mxu0 0
  %2298 = vmatpush1.bf16.msra.mxu0 0
  %2299 = vmatprep.subr.bf16.mxu0 0
  %2300 = vmatpush1.bf16.msra.mxu0 0
  %2301 = vmatprep.subr.bf16.mxu0 0
  %2302 = vmatpush1.bf16.msra.mxu0 0
  %2303 = vmatprep.subr.bf16.mxu0 0
  %2304 = vmatpush1.bf16.msra.mxu0 0
  %2305 = vmatprep.subr.bf16.mxu0 0
  %2306 = vmatpush1.bf16.msra.mxu0 0
  %2307 = vmatprep.subr.bf16.mxu0 0
  %2308 = vmatpush1.bf16.msra.mxu0 0
  %2309 = vmatprep.subr.bf16.mxu0 0
  %2310 = vmatpush1.bf16.msra.mxu0 0
  %2311 = vmatprep.subr.bf16.mxu0 0
  %2312 = vmatpush1.bf16.msra.mxu0 0
  %2313 = vmatprep.subr.bf16.mxu0 0
  %2314 = vmatpush1.bf16.msra.mxu0 0
  %2315 = vmatprep.subr.bf16.mxu0 0
  %2316 = vmatpush1.bf16.msra.mxu0 0
  %2317 = vmatprep.subr.bf16.mxu0 0
  %2318 = vmatpush1.bf16.msra.mxu0 0
  %2319 = vmatprep.subr.bf16.mxu0 0
  %2320 = vmatpush1.bf16.msra.mxu0 0
  %2321 = vmatprep.mubr.bf16.mxu0 0
  %2322 = vmatmul.mubr.bf16.gmra.mrb[0].mxu0 %v2284
  %v2323 = vpop.f32.mrb[0].mxu0
  %v2324 = vadd.f32 0.0, %v2323
  %v2325 = vpop.f32.mrb[0].mxu0
  %v2326 = vpop.f32.mrb[0].mxu0
  %v2327 = vpop.f32.mrb[0].mxu0
  %2328 = vdwg.mxu0
  %2329 = vrot.lane.b32.xlu0 %v1539, 40
  %v2330 = vpop.permute.xlu0 %2329
  %v2332 = vsel %vm250, %v2039, 0
  %v2335 = vsel %vm756, %v2330, 0
  %2337 = vmatprep.subr.bf16.mxu0 0
  %2338 = vmatpush1.bf16.msra.mxu0 %v2335
  %2339 = vmatprep.subr.bf16.mxu0 0
  %2340 = vmatpush1.bf16.msra.mxu0 0
  %2341 = vmatprep.subr.bf16.mxu0 0
  %2342 = vmatpush1.bf16.msra.mxu0 0
  %2343 = vmatprep.subr.bf16.mxu0 0
  %2344 = vmatpush1.bf16.msra.mxu0 0
  %2345 = vmatprep.subr.bf16.mxu0 0
  %2346 = vmatpush1.bf16.msra.mxu0 0
  %2347 = vmatprep.subr.bf16.mxu0 0
  %2348 = vmatpush1.bf16.msra.mxu0 0
  %2349 = vmatprep.subr.bf16.mxu0 0
  %2350 = vmatpush1.bf16.msra.mxu0 0
  %2351 = vmatprep.subr.bf16.mxu0 0
  %2352 = vmatpush1.bf16.msra.mxu0 0
  %2353 = vmatprep.subr.bf16.mxu0 0
  %2354 = vmatpush1.bf16.msra.mxu0 0
  %2355 = vmatprep.subr.bf16.mxu0 0
  %2356 = vmatpush1.bf16.msra.mxu0 0
  %2357 = vmatprep.subr.bf16.mxu0 0
  %2358 = vmatpush1.bf16.msra.mxu0 0
  %2359 = vmatprep.subr.bf16.mxu0 0
  %2360 = vmatpush1.bf16.msra.mxu0 0
  %2361 = vmatprep.subr.bf16.mxu0 0
  %2362 = vmatpush1.bf16.msra.mxu0 0
  %2363 = vmatprep.subr.bf16.mxu0 0
  %2364 = vmatpush1.bf16.msra.mxu0 0
  %2365 = vmatprep.subr.bf16.mxu0 0
  %2366 = vmatpush1.bf16.msra.mxu0 0
  %2367 = vmatprep.subr.bf16.mxu0 0
  %2368 = vmatpush1.bf16.msra.mxu0 0
  %2369 = vmatprep.mubr.bf16.mxu0 0
  %2370 = vmatmul.mubr.bf16.gmra.mrb[0].mxu0 %v2332
  %v2371 = vpop.f32.mrb[0].mxu0
  %v2372 = vadd.f32 0.0, %v2371
  %v2373 = vpop.f32.mrb[0].mxu0
  %v2374 = vpop.f32.mrb[0].mxu0
  %v2375 = vpop.f32.mrb[0].mxu0
  %2376 = vdwg.mxu0
  %2377 = vrot.lane.b32.xlu0 %v1540, 40
  %v2378 = vpop.permute.xlu0 %2377
  %v2380 = vsel %vm250, %v2040, 0
  %v2383 = vsel %vm756, %v2378, 0
  %2385 = vmatprep.subr.bf16.mxu0 0
  %2386 = vmatpush1.bf16.msra.mxu0 %v2383
  %2387 = vmatprep.subr.bf16.mxu0 0
  %2388 = vmatpush1.bf16.msra.mxu0 0
  %2389 = vmatprep.subr.bf16.mxu0 0
  %2390 = vmatpush1.bf16.msra.mxu0 0
  %2391 = vmatprep.subr.bf16.mxu0 0
  %2392 = vmatpush1.bf16.msra.mxu0 0
  %2393 = vmatprep.subr.bf16.mxu0 0
  %2394 = vmatpush1.bf16.msra.mxu0 0
  %2395 = vmatprep.subr.bf16.mxu0 0
  %2396 = vmatpush1.bf16.msra.mxu0 0
  %2397 = vmatprep.subr.bf16.mxu0 0
  %2398 = vmatpush1.bf16.msra.mxu0 0
  %2399 = vmatprep.subr.bf16.mxu0 0
  %2400 = vmatpush1.bf16.msra.mxu0 0
  %2401 = vmatprep.subr.bf16.mxu0 0
  %2402 = vmatpush1.bf16.msra.mxu0 0
  %2403 = vmatprep.subr.bf16.mxu0 0
  %2404 = vmatpush1.bf16.msra.mxu0 0
  %2405 = vmatprep.subr.bf16.mxu0 0
  %2406 = vmatpush1.bf16.msra.mxu0 0
  %2407 = vmatprep.subr.bf16.mxu0 0
  %2408 = vmatpush1.bf16.msra.mxu0 0
  %2409 = vmatprep.subr.bf16.mxu0 0
  %2410 = vmatpush1.bf16.msra.mxu0 0
  %2411 = vmatprep.subr.bf16.mxu0 0
  %2412 = vmatpush1.bf16.msra.mxu0 0
  %2413 = vmatprep.subr.bf16.mxu0 0
  %2414 = vmatpush1.bf16.msra.mxu0 0
  %2415 = vmatprep.subr.bf16.mxu0 0
  %2416 = vmatpush1.bf16.msra.mxu0 0
  %2417 = vmatprep.mubr.bf16.mxu0 0
  %2418 = vmatmul.mubr.bf16.gmra.mrb[0].mxu0 %v2380
  %v2419 = vpop.f32.mrb[0].mxu0
  %v2420 = vadd.f32 0.0, %v2419
  %v2421 = vpop.f32.mrb[0].mxu0
  %v2422 = vpop.f32.mrb[0].mxu0
  %v2423 = vpop.f32.mrb[0].mxu0
  %2424 = vdwg.mxu0
  %2427 = vrot.lane.b32.xlu0 %v2180, 8
  %v2428 = vpop.permute.xlu0 %2427
  %2429 = vrot.lane.b32.xlu0 %v2228, 8
  %v2430 = vpop.permute.xlu0 %2429
  %2435 = vrot.lane.b32.xlu0 %v2276, 16
  %v2436 = vpop.permute.xlu0 %2435
  %2437 = vrot.lane.b32.xlu0 %v2324, 16
  %v2438 = vpop.permute.xlu0 %2437
  %2443 = vrot.lane.b32.xlu0 %v2372, 24
  %v2444 = vpop.permute.xlu0 %2443
  %2445 = vrot.lane.b32.xlu0 %v2420, 24
  %v2446 = vpop.permute.xlu0 %2445
  %v2449 = vsel %vm250, %v2084, %v2428
  %v2450 = vsel %vm250, %v2132, %v2430
  %v2451 = vsel %vm1162, %v2449, %v2436
  %v2452 = vsel %vm1162, %v2450, %v2438
  %v2453 = vsel %vm1165, %v2451, %v2444
  %v2454 = vsel %vm1165, %v2452, %v2446
  %v2455 = vpack.c.bf16 %v2454, %v2453
  %v2456 = vlaneseq
  %v2457 = vshrl.u32 %v2456, 7
  %v2458 = vsub.s32 1, %v2457
  %v2459 = vrot.slane %v1439, %v2458
  %2460 = vrot.lane.b32.xlu0 %v1487, 32
  %v2461 = vpop.permute.xlu0 %2460
  %2462 = vrot.lane.b32.xlu0 %v1488, 32
  %v2463 = vpop.permute.xlu0 %2462
  %v2467 = vsel %vm77, %v2455, 0
  %2469 = vmatprep.subr.bf16.mxu0 0
  %2470 = vmatpush1.bf16.msra.mxu0 %v2461
  %2471 = vmatprep.subr.bf16.mxu0 0
  %2472 = vmatpush1.bf16.msra.mxu0 %v2463
  %2473 = vmatprep.subr.bf16.mxu0 0
  %2474 = vmatpush1.bf16.msra.mxu0 0
  %2475 = vmatprep.subr.bf16.mxu0 0
  %2476 = vmatpush1.bf16.msra.mxu0 0
  %2477 = vmatprep.subr.bf16.mxu0 0
  %2478 = vmatpush1.bf16.msra.mxu0 0
  %2479 = vmatprep.subr.bf16.mxu0 0
  %2480 = vmatpush1.bf16.msra.mxu0 0
  %2481 = vmatprep.subr.bf16.mxu0 0
  %2482 = vmatpush1.bf16.msra.mxu0 0
  %2483 = vmatprep.subr.bf16.mxu0 0
  %2484 = vmatpush1.bf16.msra.mxu0 0
  %2485 = vmatprep.subr.bf16.mxu0 0
  %2486 = vmatpush1.bf16.msra.mxu0 0
  %2487 = vmatprep.subr.bf16.mxu0 0
  %2488 = vmatpush1.bf16.msra.mxu0 0
  %2489 = vmatprep.subr.bf16.mxu0 0
  %2490 = vmatpush1.bf16.msra.mxu0 0
  %2491 = vmatprep.subr.bf16.mxu0 0
  %2492 = vmatpush1.bf16.msra.mxu0 0
  %2493 = vmatprep.subr.bf16.mxu0 0
  %2494 = vmatpush1.bf16.msra.mxu0 0
  %2495 = vmatprep.subr.bf16.mxu0 0
  %2496 = vmatpush1.bf16.msra.mxu0 0
  %2497 = vmatprep.subr.bf16.mxu0 0
  %2498 = vmatpush1.bf16.msra.mxu0 0
  %2499 = vmatprep.subr.bf16.mxu0 0
  %2500 = vmatpush1.bf16.msra.mxu0 0
  %2501 = vmatprep.mubr.bf16.mxu0 0
  %2502 = vmatmul.mubr.bf16.gmra.mrb[0].mxu0 %v2467
  %v2503 = vpop.f32.mrb[0].mxu0
  %v2504 = vadd.f32 %v2459, %v2503
  %v2505 = vpop.f32.mrb[0].mxu0
  %v2506 = vpop.f32.mrb[0].mxu0
  %v2507 = vadd.f32 %v2459, %v2506
  %v2508 = vpop.f32.mrb[0].mxu0
  %2509 = vdwg.mxu0
  %v2510 = vadd.f32 %v1414, %v2504
  %v2511 = vadd.f32 %v1415, %v2507
  %v2512 = vsel %vm77, %v2510, 0.0
  %2513 = vadd.xlane.f32.xlu0 %v2512
  %v2514 = vpop.xlane.xlu0 %2513
  %v2515 = vsel %vm77, %v2511, 0.0
  %2516 = vadd.xlane.f32.xlu0 %v2515
  %v2517 = vpop.xlane.xlu0 %2516
  %v2518 = vmul.f32 %v2514, %v152
  %v2519 = vmul.f32 %v2517, %v152
  %v2520 = vsub.f32 %v2510, %v2518
  %v2521 = vsub.f32 %v2511, %v2519
  %v2522 = vmul.f32 %v2520, %v2520
  %v2523 = vmul.f32 %v2521, %v2521
  %v2524 = vsel %vm77, %v2522, 0.0
  %2525 = vadd.xlane.f32.xlu0 %v2524
  %v2526 = vpop.xlane.xlu0 %2525
  %v2527 = vsel %vm77, %v2523, 0.0
  %2528 = vadd.xlane.f32.xlu0 %v2527
  %v2529 = vpop.xlane.xlu0 %2528
  %v2530 = vmul.f32 %v2526, %v152
  %v2531 = vmul.f32 %v2529, %v152
  %v2532 = vadd.f32 %v2530, 1e-05
  %v2533 = vadd.f32 %v2531, 1e-05
  %v2534 = vrsqrt.pop %v2532
  %v2535 = vrsqrt.pop %v2533
  %v2536 = vmul.f32 %v2520, %v2534
  %v2537 = vmul.f32 %v2521, %v2535
  %2538 = vrot.lane.b32.xlu0 %v1469, 64
  %v2539 = vpop.permute.xlu0 %2538
  %v2541 = vmul.f32 %v2536, %v2539
  %v2542 = vmul.f32 %v2537, %v2539
  %2543 = vrot.lane.b32.xlu0 %v1469, 32
  %v2544 = vpop.permute.xlu0 %2543
  %v2546 = vadd.f32 %v2541, %v2544
  %v2547 = vadd.f32 %v2542, %v2544
  %v2548 = vpack.c.bf16 %v2547, %v2546
  %v2549 = vlaneseq
  %v2550 = vshrl.u32 %v2549, 7
  %v2551 = vsub.s32 2, %v2550
  %v2552 = vrot.slane %v1439, %v2551
  %v2553 = vunpack.c.h.b16 %v1417
  %v2554 = vunpack.c.h.b16 %v1418
  %v2555 = vunpack.c.h.b16 %v1419
  %v2556 = vunpack.c.h.b16 %v1420
  %v2557 = vpack.c.b16 %v2554, %v2553
  %v2558 = vpack.c.b16 %v2556, %v2555
  %v2562 = vsel %vm77, %v2548, 0
  %2564 = vmatprep.subr.bf16.mxu0 0
  %2565 = vmatpush1.bf16.msra.mxu0 %v2557
  %2566 = vmatprep.subr.bf16.mxu0 0
  %2567 = vmatpush1.bf16.msra.mxu0 %v2558
  %2568 = vmatprep.subr.bf16.mxu0 0
  %2569 = vmatpush1.bf16.msra.mxu0 0
  %2570 = vmatprep.subr.bf16.mxu0 0
  %2571 = vmatpush1.bf16.msra.mxu0 0
  %2572 = vmatprep.subr.bf16.mxu0 0
  %2573 = vmatpush1.bf16.msra.mxu0 0
  %2574 = vmatprep.subr.bf16.mxu0 0
  %2575 = vmatpush1.bf16.msra.mxu0 0
  %2576 = vmatprep.subr.bf16.mxu0 0
  %2577 = vmatpush1.bf16.msra.mxu0 0
  %2578 = vmatprep.subr.bf16.mxu0 0
  %2579 = vmatpush1.bf16.msra.mxu0 0
  %2580 = vmatprep.subr.bf16.mxu0 0
  %2581 = vmatpush1.bf16.msra.mxu0 0
  %2582 = vmatprep.subr.bf16.mxu0 0
  %2583 = vmatpush1.bf16.msra.mxu0 0
  %2584 = vmatprep.subr.bf16.mxu0 0
  %2585 = vmatpush1.bf16.msra.mxu0 0
  %2586 = vmatprep.subr.bf16.mxu0 0
  %2587 = vmatpush1.bf16.msra.mxu0 0
  %2588 = vmatprep.subr.bf16.mxu0 0
  %2589 = vmatpush1.bf16.msra.mxu0 0
  %2590 = vmatprep.subr.bf16.mxu0 0
  %2591 = vmatpush1.bf16.msra.mxu0 0
  %2592 = vmatprep.subr.bf16.mxu0 0
  %2593 = vmatpush1.bf16.msra.mxu0 0
  %2594 = vmatprep.subr.bf16.mxu0 0
  %2595 = vmatpush1.bf16.msra.mxu0 0
  %2596 = vmatprep.mubr.bf16.mxu0 0
  %2597 = vmatmul.mubr.bf16.gmra.mrb[0].mxu0 %v2562
  %v2598 = vpop.f32.mrb[0].mxu0
  %v2599 = vadd.f32 %v2552, %v2598
  %v2600 = vpop.f32.mrb[0].mxu0
  %v2601 = vpop.f32.mrb[0].mxu0
  %v2602 = vadd.f32 %v2552, %v2601
  %v2603 = vpop.f32.mrb[0].mxu0
  %2604 = vdwg.mxu0
  %v2605 = vmax.f32 %v2599, 0.0
  %v2606 = vmax.f32 %v2602, 0.0
  %v2607 = vpack.c.bf16 %v2606, %v2605
  %v2624 = vunpack.c.l.b16 %v1422
  %v2625 = vunpack.c.l.b16 %v1423
  %v2626 = vunpack.c.l.b16 %v1424
  %v2627 = vunpack.c.l.b16 %v1425
  %v2628 = vunpack.c.l.b16 %v1426
  %v2629 = vunpack.c.l.b16 %v1427
  %v2630 = vunpack.c.l.b16 %v1428
  %v2631 = vunpack.c.l.b16 %v1429
  %v2632 = vunpack.c.l.b16 %v1430
  %v2633 = vunpack.c.l.b16 %v1431
  %v2634 = vunpack.c.l.b16 %v1432
  %v2635 = vunpack.c.l.b16 %v1433
  %v2636 = vunpack.c.l.b16 %v1434
  %v2637 = vunpack.c.l.b16 %v1435
  %v2638 = vunpack.c.l.b16 %v1436
  %v2639 = vunpack.c.l.b16 %v1437
  %v2640 = vpack.c.b16 %v2625, %v2624
  %v2641 = vpack.c.b16 %v2627, %v2626
  %v2642 = vpack.c.b16 %v2629, %v2628
  %v2643 = vpack.c.b16 %v2631, %v2630
  %v2644 = vpack.c.b16 %v2633, %v2632
  %v2645 = vpack.c.b16 %v2635, %v2634
  %v2646 = vpack.c.b16 %v2637, %v2636
  %v2647 = vpack.c.b16 %v2639, %v2638
  %2657 = vrot.lane.b32.xlu0 %v2459, 96
  %v2658 = vpop.permute.xlu0 %2657
  %2660 = vmatprep.subr.bf16.mxu0 0
  %2661 = vmatpush1.bf16.msra.mxu0 %v2640
  %2662 = vmatprep.subr.bf16.mxu0 0
  %2663 = vmatpush1.bf16.msra.mxu0 %v2641
  %2664 = vmatprep.subr.bf16.mxu0 0
  %2665 = vmatpush1.bf16.msra.mxu0 %v2642
  %2666 = vmatprep.subr.bf16.mxu0 0
  %2667 = vmatpush1.bf16.msra.mxu0 %v2643
  %2668 = vmatprep.subr.bf16.mxu0 0
  %2669 = vmatpush1.bf16.msra.mxu0 %v2644
  %2670 = vmatprep.subr.bf16.mxu0 0
  %2671 = vmatpush1.bf16.msra.mxu0 %v2645
  %2672 = vmatprep.subr.bf16.mxu0 0
  %2673 = vmatpush1.bf16.msra.mxu0 %v2646
  %2674 = vmatprep.subr.bf16.mxu0 0
  %2675 = vmatpush1.bf16.msra.mxu0 %v2647
  %2676 = vmatprep.subr.bf16.mxu0 0
  %2677 = vmatpush1.bf16.msra.mxu0 0
  %2678 = vmatprep.subr.bf16.mxu0 0
  %2679 = vmatpush1.bf16.msra.mxu0 0
  %2680 = vmatprep.subr.bf16.mxu0 0
  %2681 = vmatpush1.bf16.msra.mxu0 0
  %2682 = vmatprep.subr.bf16.mxu0 0
  %2683 = vmatpush1.bf16.msra.mxu0 0
  %2684 = vmatprep.subr.bf16.mxu0 0
  %2685 = vmatpush1.bf16.msra.mxu0 0
  %2686 = vmatprep.subr.bf16.mxu0 0
  %2687 = vmatpush1.bf16.msra.mxu0 0
  %2688 = vmatprep.subr.bf16.mxu0 0
  %2689 = vmatpush1.bf16.msra.mxu0 0
  %2690 = vmatprep.subr.bf16.mxu0 0
  %2691 = vmatpush1.bf16.msra.mxu0 0
  %2692 = vmatprep.mubr.bf16.mxu0 0
  %2693 = vmatmul.mubr.bf16.gmra.mrb[0].mxu0 %v2607
  %v2694 = vpop.f32.mrb[0].mxu0
  %v2695 = vadd.f32 %v2658, %v2694
  %v2696 = vpop.f32.mrb[0].mxu0
  %v2697 = vpop.f32.mrb[0].mxu0
  %v2698 = vadd.f32 %v2658, %v2697
  %v2699 = vpop.f32.mrb[0].mxu0
  %2700 = vdwg.mxu0
  %v2701 = vadd.f32 %v2510, %v2695
  %v2702 = vadd.f32 %v2511, %v2698
  %s2703 = scalar_lea.vmem %s5, 8
  %v2704 = vld [vmem:[%s2703] sm:$0x7]
  %v2705 = vsel %vm77, %v2701, 0.0
  %2706 = vadd.xlane.f32.xlu0 %v2705
  %v2707 = vpop.xlane.xlu0 %2706
  %v2708 = vsel %vm77, %v2702, 0.0
  %2709 = vadd.xlane.f32.xlu0 %v2708
  %v2710 = vpop.xlane.xlu0 %2709
  %v2711 = vmul.f32 %v2707, %v152
  %v2712 = vmul.f32 %v2710, %v152
  %v2713 = vsub.f32 %v2701, %v2711
  %v2714 = vsub.f32 %v2702, %v2712
  %v2715 = vmul.f32 %v2713, %v2713
  %v2716 = vmul.f32 %v2714, %v2714
  %v2717 = vsel %vm77, %v2715, 0.0
  %2718 = vadd.xlane.f32.xlu0 %v2717
  %v2719 = vpop.xlane.xlu0 %2718
  %v2720 = vsel %vm77, %v2716, 0.0
  %2721 = vadd.xlane.f32.xlu0 %v2720
  %v2722 = vpop.xlane.xlu0 %2721
  %v2723 = vmul.f32 %v2719, %v152
  %v2724 = vmul.f32 %v2722, %v152
  %v2725 = vadd.f32 %v2723, 1e-05
  %v2726 = vadd.f32 %v2724, 1e-05
  %v2727 = vrsqrt.pop %v2725
  %v2728 = vrsqrt.pop %v2726
  %v2729 = vmul.f32 %v2713, %v2727
  %v2730 = vmul.f32 %v2714, %v2728
  %v2731 = vlaneseq
  %v2732 = vshrl.u32 %v2731, 7
  %v2733 = vsub.s32 0, %v2732
  %v2734 = vrot.slane %v2704, %v2733
  %v2735 = vmul.f32 %v2729, %v2734
  %v2736 = vmul.f32 %v2730, %v2734
  %2738 = vrot.lane.b32.xlu0 %v2734, 96
  %v2739 = vpop.permute.xlu0 %2738
  %v2741 = vadd.f32 %v2735, %v2739
  %v2742 = vadd.f32 %v2736, %v2739
  %v2743 = vpack.c.bf16 %v2742, %v2741
  %v2744 = vld [vmem:[%s4] sm:$0xf]
  %v2745 = vld [vmem:[%s4 + $0x4] sm:$0xf]
  %v2746 = vld [vmem:[%s4 + $0x8] sm:$0xf]
  %v2747 = vld [vmem:[%s4 + $0xc] sm:$0xf]
  %v2748 = vlaneseq
  %v2749 = vshrl.u32 %v2748, 7
  %v2750 = vsub.s32 1, %v2749
  %v2751 = vrot.slane %v2704, %v2750
  %v2756 = vunpack.c.l.b16 %v2744
  %v2757 = vunpack.c.l.b16 %v2745
  %v2758 = vunpack.c.l.b16 %v2746
  %v2759 = vunpack.c.l.b16 %v2747
  %v2760 = vpack.c.b16 %v2757, %v2756
  %v2761 = vpack.c.b16 %v2759, %v2758
  %v2765 = vsel %vm77, %v2743, 0
  %2767 = vmatprep.subr.bf16.mxu0 0
  %2768 = vmatpush1.bf16.msra.mxu0 %v2760
  %2769 = vmatprep.subr.bf16.mxu0 0
  %2770 = vmatpush1.bf16.msra.mxu0 %v2761
  %2771 = vmatprep.subr.bf16.mxu0 0
  %2772 = vmatpush1.bf16.msra.mxu0 0
  %2773 = vmatprep.subr.bf16.mxu0 0
  %2774 = vmatpush1.bf16.msra.mxu0 0
  %2775 = vmatprep.subr.bf16.mxu0 0
  %2776 = vmatpush1.bf16.msra.mxu0 0
  %2777 = vmatprep.subr.bf16.mxu0 0
  %2778 = vmatpush1.bf16.msra.mxu0 0
  %2779 = vmatprep.subr.bf16.mxu0 0
  %2780 = vmatpush1.bf16.msra.mxu0 0
  %2781 = vmatprep.subr.bf16.mxu0 0
  %2782 = vmatpush1.bf16.msra.mxu0 0
  %2783 = vmatprep.subr.bf16.mxu0 0
  %2784 = vmatpush1.bf16.msra.mxu0 0
  %2785 = vmatprep.subr.bf16.mxu0 0
  %2786 = vmatpush1.bf16.msra.mxu0 0
  %2787 = vmatprep.subr.bf16.mxu0 0
  %2788 = vmatpush1.bf16.msra.mxu0 0
  %2789 = vmatprep.subr.bf16.mxu0 0
  %2790 = vmatpush1.bf16.msra.mxu0 0
  %2791 = vmatprep.subr.bf16.mxu0 0
  %2792 = vmatpush1.bf16.msra.mxu0 0
  %2793 = vmatprep.subr.bf16.mxu0 0
  %2794 = vmatpush1.bf16.msra.mxu0 0
  %2795 = vmatprep.subr.bf16.mxu0 0
  %2796 = vmatpush1.bf16.msra.mxu0 0
  %2797 = vmatprep.subr.bf16.mxu0 0
  %2798 = vmatpush1.bf16.msra.mxu0 0
  %2799 = vmatprep.mubr.bf16.mxu0 0
  %2800 = vmatmul.mubr.bf16.gmra.mrb[0].mxu0 %v2765
  %v2801 = vpop.f32.mrb[0].mxu0
  %v2802 = vadd.f32 %v2751, %v2801
  %v2803 = vpop.f32.mrb[0].mxu0
  %v2804 = vpop.f32.mrb[0].mxu0
  %v2805 = vadd.f32 %v2751, %v2804
  %v2806 = vpop.f32.mrb[0].mxu0
  %2807 = vdwg.mxu0
  %2808 = vst [vmem:[%s6] sm:$0xff] %v2802
  %2809 = vst [vmem:[%s6 + $0x8] sm:$0xff] %v2805
  // Predicated region
  $region26: #{specialized_gpt_forward.1} parent=0 // pred_check
    _
  $region27: #{specialized_gpt_forward.1} parent=0 // pred_check_branch
    %2811 = sbr.rel (0) target = $region29
  $region28: #{specialized_gpt_forward.1} parent=0 // pred_region
    _
  $region29: #{specialized_gpt_forward.1} parent=0 // pred_fallthru
    _
  // Predicated region
  $region30: #{specialized_gpt_forward.1} parent=0 // pred_check
    _
  $region31: #{specialized_gpt_forward.1} parent=0 // pred_check_branch
    %2813 = sbr.rel (0) target = $region33
  $region32: #{specialized_gpt_forward.1} parent=0 // pred_region
    _
  $region33: #{specialized_gpt_forward.1} parent=0 // pred_fallthru
    _

</llo_original>
